<compile_context>
chip_gen: v5e
topology: v5e:2x2
jax: 0.10.0
libtpu: 0.0.40
codegen_flags: <defaults>
</compile_context>

<pallas_src>
import functools

import jax
import jax.numpy as jnp
from jax import lax
from jax.experimental import pallas as pl
from jax.experimental.pallas import tpu as pltpu

# Scaled-down, module-consistent config (original: n_embd=384, n_head=6,
# block_size=256).  C kept a multiple of 128 for lane-dense stores.
N_EMBD = 128
N_HEAD = 4
LN_EPS = 1e-5  # torch.nn.LayerNorm default


def _layernorm(x, gamma, beta):
    mu = jnp.mean(x, axis=-1, keepdims=True)
    var = jnp.mean((x - mu) ** 2, axis=-1, keepdims=True)
    return (x - mu) * lax.rsqrt(var + LN_EPS) * gamma + beta


def block_kernel(x_ref,
                 ln1_g_ref, ln1_b_ref,
                 wqkv_ref, wo_ref, bo_ref,
                 ln2_g_ref, ln2_b_ref,
                 w1_ref, b1_ref, w2_ref, b2_ref,
                 out_ref, *, n_head, mm_dtype):
    # One tile of `BB` batch elements per grid step; everything lives in VMEM.
    BB, T, C = x_ref.shape
    H = n_head
    hs = C // H
    R = BB * T                                   # rows fed to every GEMM

    def mm(a, b):                                # MXU matmul, f32 accumulate
        return jnp.dot(a.astype(mm_dtype), b, preferred_element_type=jnp.float32)

    x = x_ref[...].astype(jnp.float32).reshape(R, C)        # (R, C)

    # ---------------- self-attention branch ----------------
    h1 = _layernorm(x, ln1_g_ref[0], ln1_b_ref[0])           # ln1, (R, C)

    # Fused QKV projection: ONE wide GEMM, q columns pre-scaled by C**-0.5.
    qkv = mm(h1, wqkv_ref[...])                               # (R, 3C) f32
    q = qkv[:, :C]                                            # 128-lane aligned slices
    k = qkv[:, C:2 * C]
    v = qkv[:, 2 * C:]

    # Split heads into a merged leading batch dim for batched score/PV einsums.
    def to_heads(m):                                          # (R, C) -> (BB*H, T, hs)
        return m.reshape(BB, T, H, hs).transpose(0, 2, 1, 3).reshape(BB * H, T, hs)

    qh = to_heads(q)
    kh = to_heads(k)
    vh = to_heads(v)

    s = jnp.einsum('bqd,bkd->bqk', qh.astype(mm_dtype), kh.astype(mm_dtype),
                   preferred_element_type=jnp.float32)        # (BB*H, T, T)

    # Causal mask built in-kernel (no (T,T) bias DMA); -1e30 exps to 0.
    row = lax.broadcasted_iota(jnp.int32, (T, T), 0)
    col = lax.broadcasted_iota(jnp.int32, (T, T), 1)
    s = jnp.where((col <= row)[None, :, :], s, -1e30)

    # numerically stable softmax; divide goes to the EUP via approx reciprocal
    s = s - jnp.max(s, axis=-1, keepdims=True)
    p = jnp.exp(s)
    p = p * pl.reciprocal(jnp.sum(p, axis=-1, keepdims=True), approx=True)
    # (dropout on attention weights: identity in eval mode)

    o = jnp.einsum('bqk,bkd->bqd', p.astype(mm_dtype), vh.astype(mm_dtype),
                   preferred_element_type=jnp.float32)        # (BB*H, T, hs)

    # Merge heads back into lanes (reverse of to_heads) -> ONE full-K out-proj GEMM.
    o = o.reshape(BB, H, T, hs).transpose(0, 2, 1, 3).reshape(R, C)
    sa = mm(o, wo_ref[...]) + bo_ref[0]                        # (R, C)

    x1 = x + sa                                  # first residual

    # ---------------- feed-forward branch ----------------
    h2 = _layernorm(x1, ln2_g_ref[0], ln2_b_ref[0])            # ln2
    f = mm(h2, w1_ref[...]) + b1_ref[0]
    f = jnp.maximum(f, 0.0)                                    # ReLU
    f = mm(f, w2_ref[...]) + b2_ref[0]
    # (dropout after second linear: identity in eval mode)

    out_ref[...] = (x1 + f).reshape(BB, T, C).astype(out_ref.dtype)  # second residual


def transformer_block(x, params, n_head=N_HEAD, batch_block=2,
                      matmul_dtype=jnp.float32):
    (ln1_g, ln1_b, wq, wk, wv, wo, bo,
     ln2_g, ln2_b, w1, b1, w2, b2) = params
    B, T, C = x.shape
    Hf = w1.shape[1]
    BB = min(batch_block, B)
    assert B % BB == 0 and C % n_head == 0

    # ---- parameter repacking (pure XLA, once per call, outside the kernel) ----
    # Fold the attention scale into the q columns; pack q|k|v into one (C, 3C)
    # weight so the kernel runs a single wide GEMM.  Matmul weights optionally
    # cast to bf16 for the v6e/v7x MXU; biases / LN params stay f32.
    wqkv = jnp.concatenate([wq * (C ** -0.5), wk, wv], axis=1).astype(matmul_dtype)
    wo_m = wo.astype(matmul_dtype)
    w1_m = w1.astype(matmul_dtype)
    w2_m = w2.astype(matmul_dtype)

    def const_spec(shape):
        # full-array block; index_map ignores the batch grid index
        nd = len(shape)
        return pl.BlockSpec(shape, lambda b, _nd=nd: (0,) * _nd)

    in_specs = [
        pl.BlockSpec((BB, T, C), lambda b: (b, 0, 0)),   # x tile
        const_spec((1, C)), const_spec((1, C)),          # ln1 gamma/beta
        const_spec((C, 3 * C)),                          # fused QKV weight
        const_spec((C, C)), const_spec((1, C)),          # out-proj W, b
        const_spec((1, C)), const_spec((1, C)),          # ln2 gamma/beta
        const_spec((C, Hf)), const_spec((1, Hf)),        # ffwd W1, b1
        const_spec((Hf, C)), const_spec((1, C)),         # ffwd W2, b2
    ]

    kernel = functools.partial(block_kernel, n_head=n_head, mm_dtype=matmul_dtype)

    return pl.pallas_call(
        kernel,
        out_shape=jax.ShapeDtypeStruct((B, T, C), x.dtype),
        grid_spec=pltpu.PrefetchScalarGridSpec(
            num_scalar_prefetch=0,
            grid=(B // BB,),                             # weights fetched once
            in_specs=in_specs,
            out_specs=pl.BlockSpec((BB, T, C), lambda b: (b, 0, 0)),
        ),
        compiler_params=pltpu.CompilerParams(
            dimension_semantics=("parallel",)),          # megacore sharding on v7x
    )(x, ln1_g, ln1_b, wqkv, wo_m, bo, ln2_g, ln2_b, w1_m, b1, w2_m, b2)


def reference_block(x, params, n_head=N_HEAD):
    (ln1_g, ln1_b, wq, wk, wv, wo, bo,
     ln2_g, ln2_b, w1, b1, w2, b2) = params
    B, T, C = x.shape
    hs = C // n_head

    def ln(v, g, b):
        mu = jnp.mean(v, -1, keepdims=True)
        var = jnp.mean((v - mu) ** 2, -1, keepdims=True)
        return (v - mu) / jnp.sqrt(var + LN_EPS) * g + b

    h = ln(x, ln1_g, ln1_b)
    q, k, v = h @ wq, h @ wk, h @ wv
    mask = jnp.tril(jnp.ones((T, T), bool))
    outs = []
    for hd in range(n_head):
        sl = slice(hd * hs, (hd + 1) * hs)
        wei = (q[..., sl] @ jnp.swapaxes(k[..., sl], -1, -2)) * C ** (-0.5)
        wei = jnp.where(mask, wei, -jnp.inf)
        wei = jax.nn.softmax(wei, axis=-1)
        outs.append(wei @ v[..., sl])
    sa = jnp.concatenate(outs, -1) @ wo + bo
    x1 = x + sa
    h2 = ln(x1, ln2_g, ln2_b)
    f = jnp.maximum(h2 @ w1 + b1, 0.0) @ w2 + b2
    return x1 + f


if __name__ == "__main__":
    B, T, C = 4, 32, N_EMBD
    Hf = 4 * C
    key = jax.random.PRNGKey(0)
    keys = jax.random.split(key, 10)

    x = jax.random.normal(keys[0], (B, T, C), jnp.float32)

    s = 0.02
    params = (
        jnp.ones((1, C), jnp.float32),                         # ln1 gamma
        jnp.zeros((1, C), jnp.float32),                        # ln1 beta
        s * jax.random.normal(keys[1], (C, C), jnp.float32),   # Wq
        s * jax.random.normal(keys[2], (C, C), jnp.float32),   # Wk
        s * jax.random.normal(keys[3], (C, C), jnp.float32),   # Wv
        s * jax.random.normal(keys[4], (C, C), jnp.float32),   # proj W
        s * jax.random.normal(keys[5], (1, C), jnp.float32),   # proj b
        jnp.ones((1, C), jnp.float32),                         # ln2 gamma
        jnp.zeros((1, C), jnp.float32),                        # ln2 beta
        s * jax.random.normal(keys[6], (C, Hf), jnp.float32),  # ffwd W1
        s * jax.random.normal(keys[7], (1, Hf), jnp.float32),  # ffwd b1
        s * jax.random.normal(keys[8], (Hf, C), jnp.float32),  # ffwd W2
        s * jax.random.normal(keys[9], (1, C), jnp.float32),   # ffwd b2
    )

    ref = reference_block(x, params)

    # f32 MXU operands: tight parity with the f32 reference.
    out = jax.block_until_ready(transformer_block(x, params, batch_block=2))
    assert out.shape == (B, T, C)
    assert jnp.allclose(out, ref, atol=1e-3, rtol=1e-3), "f32 kernel mismatch vs reference"

    # bf16 MXU operands (v6e/v7x-native path), f32 accumulation: looser tolerance.
    out_bf16 = jax.block_until_ready(
        transformer_block(x, params, batch_block=2, matmul_dtype=jnp.bfloat16))
    assert jnp.allclose(out_bf16, ref, atol=2e-2, rtol=2e-2), "bf16 kernel mismatch vs reference"

    print("KERNEL_OK")
</pallas_src>

<mosaic_0001>
module attributes {stable_mosaic.version = 11 : i64} {
  func.func @block_kernel(%arg0: i32, %arg1: memref<2x32x128xf32, #tpu.memory_space<vmem>>, %arg2: memref<1x128xf32, #tpu.memory_space<vmem>>, %arg3: memref<1x128xf32, #tpu.memory_space<vmem>>, %arg4: memref<128x384xf32, #tpu.memory_space<vmem>>, %arg5: memref<128x128xf32, #tpu.memory_space<vmem>>, %arg6: memref<1x128xf32, #tpu.memory_space<vmem>>, %arg7: memref<1x128xf32, #tpu.memory_space<vmem>>, %arg8: memref<1x128xf32, #tpu.memory_space<vmem>>, %arg9: memref<128x512xf32, #tpu.memory_space<vmem>>, %arg10: memref<1x512xf32, #tpu.memory_space<vmem>>, %arg11: memref<512x128xf32, #tpu.memory_space<vmem>>, %arg12: memref<1x128xf32, #tpu.memory_space<vmem>>, %arg13: memref<2x32x128xf32, #tpu.memory_space<vmem>>) attributes {dimension_semantics = [#tpu.dimension_semantics<parallel>], iteration_bounds = array<i64: 2>, scalar_prefetch = 0 : i64, scratch_operands = 0 : i64, tpu.core_type = #tpu.core_type<tc>, window_params = [{transform_indices = @transform_0, window_bounds = array<i64: 2, 32, 128>}, {pipeline_mode = #tpu.pipeline_mode<synchronous>, transform_indices = @transform_1, window_bounds = array<i64: 1, 128>}, {pipeline_mode = #tpu.pipeline_mode<synchronous>, transform_indices = @transform_2, window_bounds = array<i64: 1, 128>}, {pipeline_mode = #tpu.pipeline_mode<synchronous>, transform_indices = @transform_3, window_bounds = array<i64: 128, 384>}, {pipeline_mode = #tpu.pipeline_mode<synchronous>, transform_indices = @transform_4, window_bounds = array<i64: 128, 128>}, {pipeline_mode = #tpu.pipeline_mode<synchronous>, transform_indices = @transform_5, window_bounds = array<i64: 1, 128>}, {pipeline_mode = #tpu.pipeline_mode<synchronous>, transform_indices = @transform_6, window_bounds = array<i64: 1, 128>}, {pipeline_mode = #tpu.pipeline_mode<synchronous>, transform_indices = @transform_7, window_bounds = array<i64: 1, 128>}, {pipeline_mode = #tpu.pipeline_mode<synchronous>, transform_indices = @transform_8, window_bounds = array<i64: 128, 512>}, {pipeline_mode = #tpu.pipeline_mode<synchronous>, transform_indices = @transform_9, window_bounds = array<i64: 1, 512>}, {pipeline_mode = #tpu.pipeline_mode<synchronous>, transform_indices = @transform_10, window_bounds = array<i64: 512, 128>}, {pipeline_mode = #tpu.pipeline_mode<synchronous>, transform_indices = @transform_11, window_bounds = array<i64: 1, 128>}, {transform_indices = @transform_12, window_bounds = array<i64: 2, 32, 128>}]} {
    %c0 = arith.constant 0 : index
    %c0_0 = arith.constant 0 : index
    %c0_1 = arith.constant 0 : index
    %0 = vector.load %arg1[%c0, %c0_0, %c0_1] : memref<2x32x128xf32, #tpu.memory_space<vmem>>, vector<2x32x128xf32>
    %1 = vector.shape_cast %0 : vector<2x32x128xf32> to vector<64x128xf32>
    %c0_2 = arith.constant 0 : index
    %c0_3 = arith.constant 0 : index
    %2 = vector.load %arg2[%c0_2, %c0_3] : memref<1x128xf32, #tpu.memory_space<vmem>>, vector<1x128xf32>
    %3 = vector.shape_cast %2 : vector<1x128xf32> to vector<128xf32>
    %c0_4 = arith.constant 0 : index
    %c0_5 = arith.constant 0 : index
    %4 = vector.load %arg3[%c0_4, %c0_5] : memref<1x128xf32, #tpu.memory_space<vmem>>, vector<1x128xf32>
    %5 = vector.shape_cast %4 : vector<1x128xf32> to vector<128xf32>
    %cst = arith.constant dense<0.000000e+00> : vector<64xf32>
    %6 = vector.multi_reduction <add>, %1, %cst [1] : vector<64x128xf32> to vector<64xf32>
    %7 = vector.shape_cast %6 : vector<64xf32> to vector<64x1xf32>
    %cst_6 = arith.constant 1.280000e+02 : f32
    %8 = vector.broadcast %cst_6 : f32 to vector<64x1xf32>
    %9 = arith.divf %7, %8 : vector<64x1xf32>
    %10 = vector.broadcast %9 : vector<64x1xf32> to vector<64x128xf32>
    %11 = arith.subf %1, %10 : vector<64x128xf32>
    %12 = arith.mulf %11, %11 : vector<64x128xf32>
    %cst_7 = arith.constant dense<0.000000e+00> : vector<64xf32>
    %13 = vector.multi_reduction <add>, %12, %cst_7 [1] : vector<64x128xf32> to vector<64xf32>
    %14 = vector.shape_cast %13 : vector<64xf32> to vector<64x1xf32>
    %cst_8 = arith.constant 1.280000e+02 : f32
    %15 = vector.broadcast %cst_8 : f32 to vector<64x1xf32>
    %16 = arith.divf %14, %15 : vector<64x1xf32>
    %17 = vector.broadcast %9 : vector<64x1xf32> to vector<64x128xf32>
    %18 = arith.subf %1, %17 : vector<64x128xf32>
    %cst_9 = arith.constant 9.99999974E-6 : f32
    %19 = vector.broadcast %cst_9 : f32 to vector<64x1xf32>
    %20 = arith.addf %16, %19 : vector<64x1xf32>
    %21 = math.rsqrt %20 : vector<64x1xf32>
    %22 = vector.broadcast %21 : vector<64x1xf32> to vector<64x128xf32>
    %23 = arith.mulf %18, %22 : vector<64x128xf32>
    %24 = vector.shape_cast %3 : vector<128xf32> to vector<1x128xf32>
    %25 = vector.broadcast %24 : vector<1x128xf32> to vector<64x128xf32>
    %26 = arith.mulf %23, %25 : vector<64x128xf32>
    %27 = vector.shape_cast %5 : vector<128xf32> to vector<1x128xf32>
    %28 = vector.broadcast %27 : vector<1x128xf32> to vector<64x128xf32>
    %29 = arith.addf %26, %28 : vector<64x128xf32>
    %c0_10 = arith.constant 0 : index
    %c0_11 = arith.constant 0 : index
    %30 = vector.load %arg4[%c0_10, %c0_11] : memref<128x384xf32, #tpu.memory_space<vmem>>, vector<128x384xf32>
    %cst_12 = arith.constant dense<0.000000e+00> : vector<64x384xf32>
    %31 = tpu.matmul %29, %30, %cst_12 {dimension_numbers = #tpu.dot_dimension_numbers<[1], [0], [0], [1], [0, 0, 1, 1], [], []>} : vector<64x128xf32>, vector<128x384xf32>, vector<64x384xf32> -> vector<64x384xf32>
    %32 = vector.extract_strided_slice %31 {offsets = [0, 0], sizes = [64, 128], strides = [1, 1]} : vector<64x384xf32> to vector<64x128xf32>
    %33 = vector.extract_strided_slice %31 {offsets = [0, 128], sizes = [64, 128], strides = [1, 1]} : vector<64x384xf32> to vector<64x128xf32>
    %34 = vector.extract_strided_slice %31 {offsets = [0, 256], sizes = [64, 128], strides = [1, 1]} : vector<64x384xf32> to vector<64x128xf32>
    %35 = vector.shape_cast %32 : vector<64x128xf32> to vector<2x32x4x32xf32>
    %36 = tpu.transpose %35, [0, 2, 1, 3] : vector<2x32x4x32xf32> -> vector<2x4x32x32xf32>
    %37 = vector.shape_cast %36 : vector<2x4x32x32xf32> to vector<8x32x32xf32>
    %38 = vector.shape_cast %33 : vector<64x128xf32> to vector<2x32x4x32xf32>
    %39 = tpu.transpose %38, [0, 2, 1, 3] : vector<2x32x4x32xf32> -> vector<2x4x32x32xf32>
    %40 = vector.shape_cast %39 : vector<2x4x32x32xf32> to vector<8x32x32xf32>
    %41 = vector.shape_cast %34 : vector<64x128xf32> to vector<2x32x4x32xf32>
    %42 = tpu.transpose %41, [0, 2, 1, 3] : vector<2x32x4x32xf32> -> vector<2x4x32x32xf32>
    %43 = vector.shape_cast %42 : vector<2x4x32x32xf32> to vector<8x32x32xf32>
    "tpu.trace_start"() <{level = 10 : i32, message = "bqd,bkd->bqk"}> : () -> ()
    %cst_13 = arith.constant dense<0.000000e+00> : vector<8x32x32xf32>
    %44 = tpu.matmul %37, %40, %cst_13 {dimension_numbers = #tpu.dot_dimension_numbers<[2], [2], [1], [1], [0, 0, 0, 1, 1, 1], [0], [0]>} : vector<8x32x32xf32>, vector<8x32x32xf32>, vector<8x32x32xf32> -> vector<8x32x32xf32>
    "tpu.trace_stop"() : () -> ()
    %45 = tpu.iota {dimensions = array<i32: 0>} : vector<32x32xi32>
    %46 = tpu.iota {dimensions = array<i32: 1>} : vector<32x32xi32>
    %47 = arith.cmpi sle, %46, %45 : vector<32x32xi32>
    %48 = vector.shape_cast %47 : vector<32x32xi1> to vector<1x32x32xi1>
    %cst_14 = arith.constant -1.000000e+30 : f32
    %49 = vector.shape_cast %48 : vector<1x32x32xi1> to vector<1x32x32xi1>
    %50 = vector.broadcast %49 : vector<1x32x32xi1> to vector<8x32x32xi1>
    %51 = vector.broadcast %cst_14 : f32 to vector<8x32x32xf32>
    %52 = arith.select %50, %44, %51 : vector<8x32x32xi1>, vector<8x32x32xf32>
    %cst_15 = arith.constant dense<0xFF800000> : vector<8x32xf32>
    %53 = vector.multi_reduction <maximumf>, %52, %cst_15 [2] : vector<8x32x32xf32> to vector<8x32xf32>
    %54 = vector.shape_cast %53 : vector<8x32xf32> to vector<8x32x1xf32>
    %55 = vector.broadcast %54 : vector<8x32x1xf32> to vector<8x32x32xf32>
    %56 = arith.subf %52, %55 : vector<8x32x32xf32>
    %57 = math.exp %56 : vector<8x32x32xf32>
    %cst_16 = arith.constant dense<0.000000e+00> : vector<8x32xf32>
    %58 = vector.multi_reduction <add>, %57, %cst_16 [2] : vector<8x32x32xf32> to vector<8x32xf32>
    %59 = vector.shape_cast %58 : vector<8x32xf32> to vector<8x32x1xf32>
    %60 = tpu.reciprocal %59 {approx = true} : vector<8x32x1xf32> -> vector<8x32x1xf32>
    %61 = vector.broadcast %60 : vector<8x32x1xf32> to vector<8x32x32xf32>
    %62 = arith.mulf %57, %61 : vector<8x32x32xf32>
    "tpu.trace_start"() <{level = 10 : i32, message = "bqk,bkd->bqd"}> : () -> ()
    %cst_17 = arith.constant dense<0.000000e+00> : vector<8x32x32xf32>
    %63 = tpu.matmul %62, %43, %cst_17 {dimension_numbers = #tpu.dot_dimension_numbers<[2], [1], [1], [2], [0, 0, 0, 1, 1, 2], [0], [0]>} : vector<8x32x32xf32>, vector<8x32x32xf32>, vector<8x32x32xf32> -> vector<8x32x32xf32>
    "tpu.trace_stop"() : () -> ()
    %64 = vector.shape_cast %63 : vector<8x32x32xf32> to vector<2x4x32x32xf32>
    %65 = tpu.transpose %64, [0, 2, 1, 3] : vector<2x4x32x32xf32> -> vector<2x32x4x32xf32>
    %66 = vector.shape_cast %65 : vector<2x32x4x32xf32> to vector<64x128xf32>
    %c0_18 = arith.constant 0 : index
    %c0_19 = arith.constant 0 : index
    %67 = vector.load %arg5[%c0_18, %c0_19] : memref<128x128xf32, #tpu.memory_space<vmem>>, vector<128x128xf32>
    %cst_20 = arith.constant dense<0.000000e+00> : vector<64x128xf32>
    %68 = tpu.matmul %66, %67, %cst_20 {dimension_numbers = #tpu.dot_dimension_numbers<[1], [0], [0], [1], [0, 0, 1, 1], [], []>} : vector<64x128xf32>, vector<128x128xf32>, vector<64x128xf32> -> vector<64x128xf32>
    %c0_21 = arith.constant 0 : index
    %c0_22 = arith.constant 0 : index
    %69 = vector.load %arg6[%c0_21, %c0_22] : memref<1x128xf32, #tpu.memory_space<vmem>>, vector<1x128xf32>
    %70 = vector.shape_cast %69 : vector<1x128xf32> to vector<128xf32>
    %71 = vector.shape_cast %70 : vector<128xf32> to vector<1x128xf32>
    %72 = vector.broadcast %71 : vector<1x128xf32> to vector<64x128xf32>
    %73 = arith.addf %68, %72 : vector<64x128xf32>
    %74 = arith.addf %1, %73 : vector<64x128xf32>
    %c0_23 = arith.constant 0 : index
    %c0_24 = arith.constant 0 : index
    %75 = vector.load %arg7[%c0_23, %c0_24] : memref<1x128xf32, #tpu.memory_space<vmem>>, vector<1x128xf32>
    %76 = vector.shape_cast %75 : vector<1x128xf32> to vector<128xf32>
    %c0_25 = arith.constant 0 : index
    %c0_26 = arith.constant 0 : index
    %77 = vector.load %arg8[%c0_25, %c0_26] : memref<1x128xf32, #tpu.memory_space<vmem>>, vector<1x128xf32>
    %78 = vector.shape_cast %77 : vector<1x128xf32> to vector<128xf32>
    %cst_27 = arith.constant dense<0.000000e+00> : vector<64xf32>
    %79 = vector.multi_reduction <add>, %74, %cst_27 [1] : vector<64x128xf32> to vector<64xf32>
    %80 = vector.shape_cast %79 : vector<64xf32> to vector<64x1xf32>
    %cst_28 = arith.constant 1.280000e+02 : f32
    %81 = vector.broadcast %cst_28 : f32 to vector<64x1xf32>
    %82 = arith.divf %80, %81 : vector<64x1xf32>
    %83 = vector.broadcast %82 : vector<64x1xf32> to vector<64x128xf32>
    %84 = arith.subf %74, %83 : vector<64x128xf32>
    %85 = arith.mulf %84, %84 : vector<64x128xf32>
    %cst_29 = arith.constant dense<0.000000e+00> : vector<64xf32>
    %86 = vector.multi_reduction <add>, %85, %cst_29 [1] : vector<64x128xf32> to vector<64xf32>
    %87 = vector.shape_cast %86 : vector<64xf32> to vector<64x1xf32>
    %cst_30 = arith.constant 1.280000e+02 : f32
    %88 = vector.broadcast %cst_30 : f32 to vector<64x1xf32>
    %89 = arith.divf %87, %88 : vector<64x1xf32>
    %90 = vector.broadcast %82 : vector<64x1xf32> to vector<64x128xf32>
    %91 = arith.subf %74, %90 : vector<64x128xf32>
    %cst_31 = arith.constant 9.99999974E-6 : f32
    %92 = vector.broadcast %cst_31 : f32 to vector<64x1xf32>
    %93 = arith.addf %89, %92 : vector<64x1xf32>
    %94 = math.rsqrt %93 : vector<64x1xf32>
    %95 = vector.broadcast %94 : vector<64x1xf32> to vector<64x128xf32>
    %96 = arith.mulf %91, %95 : vector<64x128xf32>
    %97 = vector.shape_cast %76 : vector<128xf32> to vector<1x128xf32>
    %98 = vector.broadcast %97 : vector<1x128xf32> to vector<64x128xf32>
    %99 = arith.mulf %96, %98 : vector<64x128xf32>
    %100 = vector.shape_cast %78 : vector<128xf32> to vector<1x128xf32>
    %101 = vector.broadcast %100 : vector<1x128xf32> to vector<64x128xf32>
    %102 = arith.addf %99, %101 : vector<64x128xf32>
    %c0_32 = arith.constant 0 : index
    %c0_33 = arith.constant 0 : index
    %103 = vector.load %arg9[%c0_32, %c0_33] : memref<128x512xf32, #tpu.memory_space<vmem>>, vector<128x512xf32>
    %cst_34 = arith.constant dense<0.000000e+00> : vector<64x512xf32>
    %104 = tpu.matmul %102, %103, %cst_34 {dimension_numbers = #tpu.dot_dimension_numbers<[1], [0], [0], [1], [0, 0, 1, 1], [], []>} : vector<64x128xf32>, vector<128x512xf32>, vector<64x512xf32> -> vector<64x512xf32>
    %c0_35 = arith.constant 0 : index
    %c0_36 = arith.constant 0 : index
    %105 = vector.load %arg10[%c0_35, %c0_36] : memref<1x512xf32, #tpu.memory_space<vmem>>, vector<1x512xf32>
    %106 = vector.shape_cast %105 : vector<1x512xf32> to vector<512xf32>
    %107 = vector.shape_cast %106 : vector<512xf32> to vector<1x512xf32>
    %108 = vector.broadcast %107 : vector<1x512xf32> to vector<64x512xf32>
    %109 = arith.addf %104, %108 : vector<64x512xf32>
    %cst_37 = arith.constant 0.000000e+00 : f32
    %110 = vector.broadcast %cst_37 : f32 to vector<64x512xf32>
    %111 = arith.maximumf %109, %110 : vector<64x512xf32>
    %c0_38 = arith.constant 0 : index
    %c0_39 = arith.constant 0 : index
    %112 = vector.load %arg11[%c0_38, %c0_39] : memref<512x128xf32, #tpu.memory_space<vmem>>, vector<512x128xf32>
    %cst_40 = arith.constant dense<0.000000e+00> : vector<64x128xf32>
    %113 = tpu.matmul %111, %112, %cst_40 {dimension_numbers = #tpu.dot_dimension_numbers<[1], [0], [0], [1], [0, 0, 1, 1], [], []>} : vector<64x512xf32>, vector<512x128xf32>, vector<64x128xf32> -> vector<64x128xf32>
    %c0_41 = arith.constant 0 : index
    %c0_42 = arith.constant 0 : index
    %114 = vector.load %arg12[%c0_41, %c0_42] : memref<1x128xf32, #tpu.memory_space<vmem>>, vector<1x128xf32>
    %115 = vector.shape_cast %114 : vector<1x128xf32> to vector<128xf32>
    %116 = vector.shape_cast %115 : vector<128xf32> to vector<1x128xf32>
    %117 = vector.broadcast %116 : vector<1x128xf32> to vector<64x128xf32>
    %118 = arith.addf %113, %117 : vector<64x128xf32>
    %119 = arith.addf %74, %118 : vector<64x128xf32>
    %120 = vector.shape_cast %119 : vector<64x128xf32> to vector<2x32x128xf32>
    %c0_43 = arith.constant 0 : index
    %c0_44 = arith.constant 0 : index
    %c0_45 = arith.constant 0 : index
    %121 = vector.load %arg13[%c0_43, %c0_44, %c0_45] : memref<2x32x128xf32, #tpu.memory_space<vmem>>, vector<2x32x128xf32>
    tpu.vector_store %arg13[%c0_43, %c0_44, %c0_45], %120 {strides = array<i32>} : memref<2x32x128xf32, #tpu.memory_space<vmem>>, vector<2x32x128xf32>,
    return
  }
  func.func @transform_0(%arg0: i32) -> (i32, i32, i32) {
    %c0_i32 = arith.constant 0 : i32
    %c0_i32_0 = arith.constant 0 : i32
    %c0_i32_1 = arith.constant 0 : i32
    return %arg0, %c0_i32, %c0_i32_0 : i32, i32, i32
  }
  func.func @transform_1(%arg0: i32) -> (i32, i32) {
    %c0_i32 = arith.constant 0 : i32
    %c0_i32_0 = arith.constant 0 : i32
    %c0_i32_1 = arith.constant 0 : i32
    return %c0_i32, %c0_i32_0 : i32, i32
  }
  func.func @transform_2(%arg0: i32) -> (i32, i32) {
    %c0_i32 = arith.constant 0 : i32
    %c0_i32_0 = arith.constant 0 : i32
    %c0_i32_1 = arith.constant 0 : i32
    return %c0_i32, %c0_i32_0 : i32, i32
  }
  func.func @transform_3(%arg0: i32) -> (i32, i32) {
    %c0_i32 = arith.constant 0 : i32
    %c0_i32_0 = arith.constant 0 : i32
    %c0_i32_1 = arith.constant 0 : i32
    return %c0_i32, %c0_i32_0 : i32, i32
  }
  func.func @transform_4(%arg0: i32) -> (i32, i32) {
    %c0_i32 = arith.constant 0 : i32
    %c0_i32_0 = arith.constant 0 : i32
    %c0_i32_1 = arith.constant 0 : i32
    return %c0_i32, %c0_i32_0 : i32, i32
  }
  func.func @transform_5(%arg0: i32) -> (i32, i32) {
    %c0_i32 = arith.constant 0 : i32
    %c0_i32_0 = arith.constant 0 : i32
    %c0_i32_1 = arith.constant 0 : i32
    return %c0_i32, %c0_i32_0 : i32, i32
  }
  func.func @transform_6(%arg0: i32) -> (i32, i32) {
    %c0_i32 = arith.constant 0 : i32
    %c0_i32_0 = arith.constant 0 : i32
    %c0_i32_1 = arith.constant 0 : i32
    return %c0_i32, %c0_i32_0 : i32, i32
  }
  func.func @transform_7(%arg0: i32) -> (i32, i32) {
    %c0_i32 = arith.constant 0 : i32
    %c0_i32_0 = arith.constant 0 : i32
    %c0_i32_1 = arith.constant 0 : i32
    return %c0_i32, %c0_i32_0 : i32, i32
  }
  func.func @transform_8(%arg0: i32) -> (i32, i32) {
    %c0_i32 = arith.constant 0 : i32
    %c0_i32_0 = arith.constant 0 : i32
    %c0_i32_1 = arith.constant 0 : i32
    return %c0_i32, %c0_i32_0 : i32, i32
  }
  func.func @transform_9(%arg0: i32) -> (i32, i32) {
    %c0_i32 = arith.constant 0 : i32
    %c0_i32_0 = arith.constant 0 : i32
    %c0_i32_1 = arith.constant 0 : i32
    return %c0_i32, %c0_i32_0 : i32, i32
  }
  func.func @transform_10(%arg0: i32) -> (i32, i32) {
    %c0_i32 = arith.constant 0 : i32
    %c0_i32_0 = arith.constant 0 : i32
    %c0_i32_1 = arith.constant 0 : i32
    return %c0_i32, %c0_i32_0 : i32, i32
  }
  func.func @transform_11(%arg0: i32) -> (i32, i32) {
    %c0_i32 = arith.constant 0 : i32
    %c0_i32_0 = arith.constant 0 : i32
    %c0_i32_1 = arith.constant 0 : i32
    return %c0_i32, %c0_i32_0 : i32, i32
  }
  func.func @transform_12(%arg0: i32) -> (i32, i32, i32) {
    %c0_i32 = arith.constant 0 : i32
    %c0_i32_0 = arith.constant 0 : i32
    %c0_i32_1 = arith.constant 0 : i32
    return %arg0, %c0_i32, %c0_i32_0 : i32, i32, i32
  }
}

</mosaic_0001>

<llo_original>
// kernel: tpu_custom_call.1
$region0: #{tpu_custom_call.1}
  #allocation0 [shape = 'u32[]', space=smem, size = 0x4, offset = 0x4, fixed_abs, tag = 'smem constant byte address 0x4 - core index']
  #allocation1 [shape = 'u32[72,128]{1,0:T(1,128)}', space=vmem, size = 0x9000, scoped, tag = 'internal scratch']
  %s0 = inlined_call_operand.hbm [shape: f32[4,32,128], index: 0, kind: input, shape index: {}]
  %s1 = inlined_call_operand.hbm [shape: f32[1,128], index: 1, kind: input, shape index: {}]
  %s2 = inlined_call_operand.vmem [shape: f32[1,128], index: 2, kind: input, shape index: {}]
  %s3 = inlined_call_operand.hbm [shape: f32[128,384], index: 3, kind: input, shape index: {}]
  %s4 = inlined_call_operand.hbm [shape: f32[128,128], index: 4, kind: input, shape index: {}]
  %s5 = inlined_call_operand.vmem [shape: f32[1,128], index: 5, kind: input, shape index: {}]
  %s6 = inlined_call_operand.vmem [shape: f32[1,128], index: 6, kind: input, shape index: {}]
  %s7 = inlined_call_operand.hbm [shape: f32[1,128], index: 7, kind: input, shape index: {}]
  %s8 = inlined_call_operand.hbm [shape: f32[128,512], index: 8, kind: input, shape index: {}]
  %s9 = inlined_call_operand.vmem [shape: f32[1,512], index: 9, kind: input, shape index: {}]
  %s10 = inlined_call_operand.hbm [shape: f32[512,128], index: 10, kind: input, shape index: {}]
  %s11 = inlined_call_operand.vmem [shape: f32[1,128], index: 11, kind: input, shape index: {}]
  %s12 = inlined_call_operand.hbm [shape: f32[4,32,128], index: 12, kind: output, shape index: {}]
  %s13 = sld [smem:[#allocation0]]
  $region109: #{tpu_custom_call.1} parent=0
    _
  %s15 = ssub.s32 1, %s13
  %s16 = scalar_select 0, %s15, %s13
  $region1: #{tpu_custom_call.1} parent=0
    #allocation2 [shape = 'u8[65536]{0}', space=vmem, size = 0x10000, scoped, tag = 'input window, operand 0']
    #allocation3 [shape = 's32[2]{0}', space=sflag, size = 0x8, scoped, tag = 'scoped memory for tpu_custom_call.1']
    #allocation4 [shape = 's32[2]{0}', space=sflag, size = 0x8, scoped, tag = 'scoped memory for tpu_custom_call.1']
    #allocation5 [shape = 'u8[512]{0}', space=vmem, size = 0x400, scoped, tag = 'input window, operand 1, single buffered']
    #allocation6 [shape = 's32[1]{0}', space=sflag, size = 0x4, scoped, tag = 'scoped memory for tpu_custom_call.1']
    #allocation7 [shape = 'u8[196608]{0}', space=vmem, size = 0x30000, scoped, tag = 'input window, operand 3, single buffered']
    #allocation8 [shape = 'u8[65536]{0}', space=vmem, size = 0x10000, scoped, tag = 'input window, operand 4, single buffered']
    #allocation9 [shape = 's32[1]{0}', space=sflag, size = 0x4, scoped, tag = 'scoped memory for tpu_custom_call.1']
    #allocation10 [shape = 'u8[512]{0}', space=vmem, size = 0x400, scoped, tag = 'input window, operand 7, single buffered']
    #allocation11 [shape = 'u8[262144]{0}', space=vmem, size = 0x40000, scoped, tag = 'input window, operand 8, single buffered']
    #allocation12 [shape = 's32[1]{0}', space=sflag, size = 0x4, scoped, tag = 'scoped memory for tpu_custom_call.1']
    #allocation13 [shape = 'u8[262144]{0}', space=vmem, size = 0x40000, scoped, tag = 'input window, operand 10, single buffered']
    #allocation14 [shape = 'u8[65536]{0}', space=vmem, size = 0x10000, scoped, tag = 'output window, operand 0']
    %17 = vsyncpa [#allocation3], 0
    %s18 = scalar_lea.sflag [#allocation3], 1
    %19 = vsyncpa %s18, 0
    %20 = vsyncpa [#allocation6], 0
    %21 = vsyncpa [#allocation9], 0
    %22 = vsyncpa [#allocation12], 0
    %23 = vsyncpa [#allocation4], 0
    %s24 = scalar_lea.sflag [#allocation4], 1
    %25 = vsyncpa %s24, 0
    loop: start=0, step=1, limit=4
    $region2: #{tpu_custom_call.1} parent=1 // loop_pre_header
      _
    $region3: #{tpu_custom_call.1} parent=1 // loop_header
      %s27 = sphi 0, %s31
      %p28 = scmp.ge.s32.totalorder %s27, 4
      %s37 = sphi 0, %s39
      %s40 = sphi 0, %s37
      %s41 = sphi 0, %s40
      %s57 = sphi 0, %s41
      %s61 = sphi 0, %s61
      %s63 = sphi 0, %s61
      %s64 = sphi 0, %s63
      %s78 = sphi 0, %s64
      %s82 = sphi 0, %s82
      %s84 = sphi 0, %s82
      %s85 = sphi 0, %s84
      %s99 = sphi 0, %s85
      %s103 = sphi 0, %s103
      %s105 = sphi 0, %s103
      %s106 = sphi 0, %s105
      %s120 = sphi 0, %s106
      %s124 = sphi 0, %s124
      %s126 = sphi 0, %s124
      %s127 = sphi 0, %s126
      %s141 = sphi 0, %s127
      %s145 = sphi 0, %s145
      %s147 = sphi 0, %s145
      %s148 = sphi 0, %s147
      %s162 = sphi 0, %s148
      %s166 = sphi 0, %s166
      %s168 = sphi 0, %s166
      %s169 = sphi 0, %s168
      %s183 = sphi 0, %s169
      %s187 = sphi 0, %s187
      %s189 = sphi 0, %s187
      %s190 = sphi 0, %s189
      %s204 = sphi 0, %s190
      %s208 = sphi 0, %s208
      %s210 = sphi 0, %s208
      %s211 = sphi 0, %s210
      %s225 = sphi 0, %s211
      %s229 = sphi 0, %s229
      %s231 = sphi 0, %s229
      %s232 = sphi 0, %s231
      %s246 = sphi 0, %s232
      %s250 = sphi 0, %s250
      %s252 = sphi 0, %s250
      %s253 = sphi 0, %s252
      %s267 = sphi 0, %s253
      %s271 = sphi 0, %s271
      %s273 = sphi 0, %s271
      %s274 = sphi 0, %s273
      %s288 = sphi 0, %s274
      %s294 = sphi 0, %s296
      %s297 = sphi 0, %s294
      %s298 = sphi 0, %s297
      %s314 = sphi 0, %s298
    $region4: #{tpu_custom_call.1} parent=1 // loop_header_branch
      %30 = sbr.rel (%p28) target = $region8
    $region5: #{tpu_custom_call.1} parent=1 // loop_body
      %s32 = ssub.s32 %s27, 1
      %s33 = ssub.s32 %s27, 2
      %s34 = sadd.s32 %s27, 1
      %s35 = ssub.s32 %s27, %s34
      %p36 = scmp.eq.s32.totalorder %s35, 0
      %s38 = sadd.s32 %s37, 1
      %s39 = scalar_select %p36, %s37, %s38
      %p42 = pneg %p36
      %p43 = scmp.eq.s32.totalorder %s27, 1
      %p44 = por %p42, %p43
      %p45 = scmp.ne.s32.totalorder %s37, %s40
      %p46 = scmp.eq.s32.totalorder %s27, 0
      %p47 = por %p45, %p46
      %p48 = scmp.ne.s32.totalorder %s37, %s40
      %p49 = scmp.eq.s32.totalorder %s32, 1
      %p50 = por %p48, %p49
      %p51 = scmp.ne.s32.totalorder %s40, %s41
      %p52 = scmp.eq.s32.totalorder %s32, 0
      %p53 = por %p51, %p52
      %p54 = scmp.ne.s32.totalorder %s40, %s41
      %p55 = scmp.eq.s32.totalorder %s33, 1
      %p56 = por %p54, %p55
      %p58 = scmp.ne.s32.totalorder %s41, %s57
      %p59 = scmp.eq.s32.totalorder %s33, 0
      %p60 = por %p58, %p59
      %s62 = sadd.s32 %s61, 1
      %p65 = scmp.eq.s32.totalorder %s27, 1
      %p66 = scmp.ne.s32.totalorder %s61, %s63
      %p67 = scmp.eq.s32.totalorder %s27, 0
      %p68 = por %p66, %p67
      %p69 = scmp.ne.s32.totalorder %s61, %s63
      %p70 = scmp.eq.s32.totalorder %s32, 1
      %p71 = por %p69, %p70
      %p72 = scmp.ne.s32.totalorder %s63, %s64
      %p73 = scmp.eq.s32.totalorder %s32, 0
      %p74 = por %p72, %p73
      %p75 = scmp.ne.s32.totalorder %s63, %s64
      %p76 = scmp.eq.s32.totalorder %s33, 1
      %p77 = por %p75, %p76
      %p79 = scmp.ne.s32.totalorder %s64, %s78
      %p80 = scmp.eq.s32.totalorder %s33, 0
      %p81 = por %p79, %p80
      %s83 = sadd.s32 %s82, 1
      %p86 = scmp.eq.s32.totalorder %s27, 1
      %p87 = scmp.ne.s32.totalorder %s82, %s84
      %p88 = scmp.eq.s32.totalorder %s27, 0
      %p89 = por %p87, %p88
      %p90 = scmp.ne.s32.totalorder %s82, %s84
      %p91 = scmp.eq.s32.totalorder %s32, 1
      %p92 = por %p90, %p91
      %p93 = scmp.ne.s32.totalorder %s84, %s85
      %p94 = scmp.eq.s32.totalorder %s32, 0
      %p95 = por %p93, %p94
      %p96 = scmp.ne.s32.totalorder %s84, %s85
      %p97 = scmp.eq.s32.totalorder %s33, 1
      %p98 = por %p96, %p97
      %p100 = scmp.ne.s32.totalorder %s85, %s99
      %p101 = scmp.eq.s32.totalorder %s33, 0
      %p102 = por %p100, %p101
      %s104 = sadd.s32 %s103, 1
      %p107 = scmp.eq.s32.totalorder %s27, 1
      %p108 = scmp.ne.s32.totalorder %s103, %s105
      %p109 = scmp.eq.s32.totalorder %s27, 0
      %p110 = por %p108, %p109
      %p111 = scmp.ne.s32.totalorder %s103, %s105
      %p112 = scmp.eq.s32.totalorder %s32, 1
      %p113 = por %p111, %p112
      %p114 = scmp.ne.s32.totalorder %s105, %s106
      %p115 = scmp.eq.s32.totalorder %s32, 0
      %p116 = por %p114, %p115
      %p117 = scmp.ne.s32.totalorder %s105, %s106
      %p118 = scmp.eq.s32.totalorder %s33, 1
      %p119 = por %p117, %p118
      %p121 = scmp.ne.s32.totalorder %s106, %s120
      %p122 = scmp.eq.s32.totalorder %s33, 0
      %p123 = por %p121, %p122
      %s125 = sadd.s32 %s124, 1
      %p128 = scmp.eq.s32.totalorder %s27, 1
      %p129 = scmp.ne.s32.totalorder %s124, %s126
      %p130 = scmp.eq.s32.totalorder %s27, 0
      %p131 = por %p129, %p130
      %p132 = scmp.ne.s32.totalorder %s124, %s126
      %p133 = scmp.eq.s32.totalorder %s32, 1
      %p134 = por %p132, %p133
      %p135 = scmp.ne.s32.totalorder %s126, %s127
      %p136 = scmp.eq.s32.totalorder %s32, 0
      %p137 = por %p135, %p136
      %p138 = scmp.ne.s32.totalorder %s126, %s127
      %p139 = scmp.eq.s32.totalorder %s33, 1
      %p140 = por %p138, %p139
      %p142 = scmp.ne.s32.totalorder %s127, %s141
      %p143 = scmp.eq.s32.totalorder %s33, 0
      %p144 = por %p142, %p143
      %s146 = sadd.s32 %s145, 1
      %p149 = scmp.eq.s32.totalorder %s27, 1
      %p150 = scmp.ne.s32.totalorder %s145, %s147
      %p151 = scmp.eq.s32.totalorder %s27, 0
      %p152 = por %p150, %p151
      %p153 = scmp.ne.s32.totalorder %s145, %s147
      %p154 = scmp.eq.s32.totalorder %s32, 1
      %p155 = por %p153, %p154
      %p156 = scmp.ne.s32.totalorder %s147, %s148
      %p157 = scmp.eq.s32.totalorder %s32, 0
      %p158 = por %p156, %p157
      %p159 = scmp.ne.s32.totalorder %s147, %s148
      %p160 = scmp.eq.s32.totalorder %s33, 1
      %p161 = por %p159, %p160
      %p163 = scmp.ne.s32.totalorder %s148, %s162
      %p164 = scmp.eq.s32.totalorder %s33, 0
      %p165 = por %p163, %p164
      %s167 = sadd.s32 %s166, 1
      %p170 = scmp.eq.s32.totalorder %s27, 1
      %p171 = scmp.ne.s32.totalorder %s166, %s168
      %p172 = scmp.eq.s32.totalorder %s27, 0
      %p173 = por %p171, %p172
      %p174 = scmp.ne.s32.totalorder %s166, %s168
      %p175 = scmp.eq.s32.totalorder %s32, 1
      %p176 = por %p174, %p175
      %p177 = scmp.ne.s32.totalorder %s168, %s169
      %p178 = scmp.eq.s32.totalorder %s32, 0
      %p179 = por %p177, %p178
      %p180 = scmp.ne.s32.totalorder %s168, %s169
      %p181 = scmp.eq.s32.totalorder %s33, 1
      %p182 = por %p180, %p181
      %p184 = scmp.ne.s32.totalorder %s169, %s183
      %p185 = scmp.eq.s32.totalorder %s33, 0
      %p186 = por %p184, %p185
      %s188 = sadd.s32 %s187, 1
      %p191 = scmp.eq.s32.totalorder %s27, 1
      %p192 = scmp.ne.s32.totalorder %s187, %s189
      %p193 = scmp.eq.s32.totalorder %s27, 0
      %p194 = por %p192, %p193
      %p195 = scmp.ne.s32.totalorder %s187, %s189
      %p196 = scmp.eq.s32.totalorder %s32, 1
      %p197 = por %p195, %p196
      %p198 = scmp.ne.s32.totalorder %s189, %s190
      %p199 = scmp.eq.s32.totalorder %s32, 0
      %p200 = por %p198, %p199
      %p201 = scmp.ne.s32.totalorder %s189, %s190
      %p202 = scmp.eq.s32.totalorder %s33, 1
      %p203 = por %p201, %p202
      %p205 = scmp.ne.s32.totalorder %s190, %s204
      %p206 = scmp.eq.s32.totalorder %s33, 0
      %p207 = por %p205, %p206
      %s209 = sadd.s32 %s208, 1
      %p212 = scmp.eq.s32.totalorder %s27, 1
      %p213 = scmp.ne.s32.totalorder %s208, %s210
      %p214 = scmp.eq.s32.totalorder %s27, 0
      %p215 = por %p213, %p214
      %p216 = scmp.ne.s32.totalorder %s208, %s210
      %p217 = scmp.eq.s32.totalorder %s32, 1
      %p218 = por %p216, %p217
      %p219 = scmp.ne.s32.totalorder %s210, %s211
      %p220 = scmp.eq.s32.totalorder %s32, 0
      %p221 = por %p219, %p220
      %p222 = scmp.ne.s32.totalorder %s210, %s211
      %p223 = scmp.eq.s32.totalorder %s33, 1
      %p224 = por %p222, %p223
      %p226 = scmp.ne.s32.totalorder %s211, %s225
      %p227 = scmp.eq.s32.totalorder %s33, 0
      %p228 = por %p226, %p227
      %s230 = sadd.s32 %s229, 1
      %p233 = scmp.eq.s32.totalorder %s27, 1
      %p234 = scmp.ne.s32.totalorder %s229, %s231
      %p235 = scmp.eq.s32.totalorder %s27, 0
      %p236 = por %p234, %p235
      %p237 = scmp.ne.s32.totalorder %s229, %s231
      %p238 = scmp.eq.s32.totalorder %s32, 1
      %p239 = por %p237, %p238
      %p240 = scmp.ne.s32.totalorder %s231, %s232
      %p241 = scmp.eq.s32.totalorder %s32, 0
      %p242 = por %p240, %p241
      %p243 = scmp.ne.s32.totalorder %s231, %s232
      %p244 = scmp.eq.s32.totalorder %s33, 1
      %p245 = por %p243, %p244
      %p247 = scmp.ne.s32.totalorder %s232, %s246
      %p248 = scmp.eq.s32.totalorder %s33, 0
      %p249 = por %p247, %p248
      %s251 = sadd.s32 %s250, 1
      %p254 = scmp.eq.s32.totalorder %s27, 1
      %p255 = scmp.ne.s32.totalorder %s250, %s252
      %p256 = scmp.eq.s32.totalorder %s27, 0
      %p257 = por %p255, %p256
      %p258 = scmp.ne.s32.totalorder %s250, %s252
      %p259 = scmp.eq.s32.totalorder %s32, 1
      %p260 = por %p258, %p259
      %p261 = scmp.ne.s32.totalorder %s252, %s253
      %p262 = scmp.eq.s32.totalorder %s32, 0
      %p263 = por %p261, %p262
      %p264 = scmp.ne.s32.totalorder %s252, %s253
      %p265 = scmp.eq.s32.totalorder %s33, 1
      %p266 = por %p264, %p265
      %p268 = scmp.ne.s32.totalorder %s253, %s267
      %p269 = scmp.eq.s32.totalorder %s33, 0
      %p270 = por %p268, %p269
      %s272 = sadd.s32 %s271, 1
      %p275 = scmp.eq.s32.totalorder %s27, 1
      %p276 = scmp.ne.s32.totalorder %s271, %s273
      %p277 = scmp.eq.s32.totalorder %s27, 0
      %p278 = por %p276, %p277
      %p279 = scmp.ne.s32.totalorder %s271, %s273
      %p280 = scmp.eq.s32.totalorder %s32, 1
      %p281 = por %p279, %p280
      %p282 = scmp.ne.s32.totalorder %s273, %s274
      %p283 = scmp.eq.s32.totalorder %s32, 0
      %p284 = por %p282, %p283
      %p285 = scmp.ne.s32.totalorder %s273, %s274
      %p286 = scmp.eq.s32.totalorder %s33, 1
      %p287 = por %p285, %p286
      %p289 = scmp.ne.s32.totalorder %s274, %s288
      %p290 = scmp.eq.s32.totalorder %s33, 0
      %p291 = por %p289, %p290
      %s292 = ssub.s32 %s27, %s34
      %p293 = scmp.eq.s32.totalorder %s292, 0
      %s295 = sadd.s32 %s294, 1
      %s296 = scalar_select %p293, %s294, %s295
      %p299 = pneg %p293
      %p300 = scmp.eq.s32.totalorder %s27, 1
      %p301 = por %p299, %p300
      %p302 = scmp.ne.s32.totalorder %s294, %s297
      %p303 = scmp.eq.s32.totalorder %s27, 0
      %p304 = por %p302, %p303
      %p305 = scmp.ne.s32.totalorder %s294, %s297
      %p306 = scmp.eq.s32.totalorder %s32, 1
      %p307 = por %p305, %p306
      %p308 = scmp.ne.s32.totalorder %s297, %s298
      %p309 = scmp.eq.s32.totalorder %s32, 0
      %p310 = por %p308, %p309
      %p311 = scmp.ne.s32.totalorder %s297, %s298
      %p312 = scmp.eq.s32.totalorder %s33, 1
      %p313 = por %p311, %p312
      %p315 = scmp.ne.s32.totalorder %s298, %s314
      %p316 = scmp.eq.s32.totalorder %s33, 0
      %p317 = por %p315, %p316
      %p318 = scmp.le.s32.totalorder 1, %s27
      %p319 = scmp.lt.s32.totalorder %s27, 3
      %p320 = pnand %p318, %p319
      %p321 = pneg %p320
      // Predicated region
      $region9: #{tpu_custom_call.1} parent=5 // pred_check
        _
      $region10: #{tpu_custom_call.1} parent=5 // pred_check_branch
        %323 = sbr.rel (%p320) target = $region12
      $region11: #{tpu_custom_call.1} parent=5 // pred_region
        %s324 = ssub.s32 %s27, 1
        // Predicated region
        $region13: #{tpu_custom_call.1} parent=11 // pred_check
          %p325 = pneg %p74
        $region14: #{tpu_custom_call.1} parent=11 // pred_check_branch
          %327 = sbr.rel (%p325) target = $region16
        $region15: #{tpu_custom_call.1} parent=11 // pred_region
          %329 = vsyncadd [#allocation6], 0
          %s331 = sshll.u32 %s1, 4
          %s332 = int_to_ptr.hbm [resolvable:$true] %s331
          %s333 = sshll.u32 [#allocation5], 4
          %s334 = int_to_ptr.vmem [resolvable:$true] %s333
          %336 = dma.hbm_to_vmem [thread:$0]  %s332, 16, %s334, [#allocation6]
        $region16: #{tpu_custom_call.1} parent=11 // pred_fallthru
          _
        // Predicated region
        $region17: #{tpu_custom_call.1} parent=11 // pred_check
          %p337 = pneg %p95
        $region18: #{tpu_custom_call.1} parent=11 // pred_check_branch
          %339 = sbr.rel (%p337) target = $region20
        $region19: #{tpu_custom_call.1} parent=11 // pred_region
          _
        $region20: #{tpu_custom_call.1} parent=11 // pred_fallthru
          _
        // Predicated region
        $region21: #{tpu_custom_call.1} parent=11 // pred_check
          %p340 = pneg %p116
        $region22: #{tpu_custom_call.1} parent=11 // pred_check_branch
          %342 = sbr.rel (%p340) target = $region24
        $region23: #{tpu_custom_call.1} parent=11 // pred_region
          %344 = vsyncadd [#allocation6], 0
          %s345 = sshll.u32 %s3, 4
          %s346 = int_to_ptr.hbm [resolvable:$true] %s345
          %s347 = sshll.u32 [#allocation7], 4
          %s348 = int_to_ptr.vmem [resolvable:$true] %s347
          %353 = dma.hbm_to_vmem [thread:$0]  %s346, 6144, %s348, [#allocation6], 384, 384, 24
        $region24: #{tpu_custom_call.1} parent=11 // pred_fallthru
          _
        // Predicated region
        $region25: #{tpu_custom_call.1} parent=11 // pred_check
          %p354 = pneg %p137
        $region26: #{tpu_custom_call.1} parent=11 // pred_check_branch
          %356 = sbr.rel (%p354) target = $region28
        $region27: #{tpu_custom_call.1} parent=11 // pred_region
          %358 = vsyncadd [#allocation9], 0
          %s359 = sshll.u32 %s4, 4
          %s360 = int_to_ptr.hbm [resolvable:$true] %s359
          %s361 = sshll.u32 [#allocation8], 4
          %s362 = int_to_ptr.vmem [resolvable:$true] %s361
          %367 = dma.hbm_to_vmem [thread:$0]  %s360, 2048, %s362, [#allocation9], 128, 128, 8
        $region28: #{tpu_custom_call.1} parent=11 // pred_fallthru
          _
        // Predicated region
        $region29: #{tpu_custom_call.1} parent=11 // pred_check
          %p368 = pneg %p158
        $region30: #{tpu_custom_call.1} parent=11 // pred_check_branch
          %370 = sbr.rel (%p368) target = $region32
        $region31: #{tpu_custom_call.1} parent=11 // pred_region
          _
        $region32: #{tpu_custom_call.1} parent=11 // pred_fallthru
          _
        // Predicated region
        $region33: #{tpu_custom_call.1} parent=11 // pred_check
          %p371 = pneg %p179
        $region34: #{tpu_custom_call.1} parent=11 // pred_check_branch
          %373 = sbr.rel (%p371) target = $region36
        $region35: #{tpu_custom_call.1} parent=11 // pred_region
          _
        $region36: #{tpu_custom_call.1} parent=11 // pred_fallthru
          _
        // Predicated region
        $region37: #{tpu_custom_call.1} parent=11 // pred_check
          %p374 = pneg %p200
        $region38: #{tpu_custom_call.1} parent=11 // pred_check_branch
          %376 = sbr.rel (%p374) target = $region40
        $region39: #{tpu_custom_call.1} parent=11 // pred_region
          %378 = vsyncadd [#allocation9], 0
          %s380 = sshll.u32 %s7, 4
          %s381 = int_to_ptr.hbm [resolvable:$true] %s380
          %s382 = sshll.u32 [#allocation10], 4
          %s383 = int_to_ptr.vmem [resolvable:$true] %s382
          %385 = dma.hbm_to_vmem [thread:$0]  %s381, 16, %s383, [#allocation9]
        $region40: #{tpu_custom_call.1} parent=11 // pred_fallthru
          _
        // Predicated region
        $region41: #{tpu_custom_call.1} parent=11 // pred_check
          %p386 = pneg %p221
        $region42: #{tpu_custom_call.1} parent=11 // pred_check_branch
          %388 = sbr.rel (%p386) target = $region44
        $region43: #{tpu_custom_call.1} parent=11 // pred_region
          %390 = vsyncadd [#allocation12], 0
          %s391 = sshll.u32 %s8, 4
          %s392 = int_to_ptr.hbm [resolvable:$true] %s391
          %s393 = sshll.u32 [#allocation11], 4
          %s394 = int_to_ptr.vmem [resolvable:$true] %s393
          %399 = dma.hbm_to_vmem [thread:$0]  %s392, 8192, %s394, [#allocation12], 512, 512, 32
        $region44: #{tpu_custom_call.1} parent=11 // pred_fallthru
          _
        // Predicated region
        $region45: #{tpu_custom_call.1} parent=11 // pred_check
          %p400 = pneg %p242
        $region46: #{tpu_custom_call.1} parent=11 // pred_check_branch
          %402 = sbr.rel (%p400) target = $region48
        $region47: #{tpu_custom_call.1} parent=11 // pred_region
          _
        $region48: #{tpu_custom_call.1} parent=11 // pred_fallthru
          _
        // Predicated region
        $region49: #{tpu_custom_call.1} parent=11 // pred_check
          %p403 = pneg %p263
        $region50: #{tpu_custom_call.1} parent=11 // pred_check_branch
          %405 = sbr.rel (%p403) target = $region52
        $region51: #{tpu_custom_call.1} parent=11 // pred_region
          %407 = vsyncadd [#allocation12], 0
          %s408 = sshll.u32 %s10, 4
          %s409 = int_to_ptr.hbm [resolvable:$true] %s408
          %s410 = sshll.u32 [#allocation13], 4
          %s411 = int_to_ptr.vmem [resolvable:$true] %s410
          %416 = dma.hbm_to_vmem [thread:$0]  %s409, 8192, %s411, [#allocation12], 128, 128, 8
        $region52: #{tpu_custom_call.1} parent=11 // pred_fallthru
          _
        // Predicated region
        $region53: #{tpu_custom_call.1} parent=11 // pred_check
          %p417 = pneg %p284
        $region54: #{tpu_custom_call.1} parent=11 // pred_check_branch
          %419 = sbr.rel (%p417) target = $region56
        $region55: #{tpu_custom_call.1} parent=11 // pred_region
          _
        $region56: #{tpu_custom_call.1} parent=11 // pred_fallthru
          _
      $region12: #{tpu_custom_call.1} parent=5 // pred_fallthru
        _
      %p420 = scmp.lt.s32.totalorder %s27, 2
      // Predicated region
      $region57: #{tpu_custom_call.1} parent=5 // pred_check
        %p421 = pneg %p420
      $region58: #{tpu_custom_call.1} parent=5 // pred_check_branch
        %423 = sbr.rel (%p421) target = $region60
      $region59: #{tpu_custom_call.1} parent=5 // pred_region
        // Predicated region
        $region61: #{tpu_custom_call.1} parent=59 // pred_check
          %p424 = pneg %p47
        $region62: #{tpu_custom_call.1} parent=59 // pred_check_branch
          %426 = sbr.rel (%p424) target = $region64
        $region63: #{tpu_custom_call.1} parent=59 // pred_region
          %s427 = sand.u32 %s37, 1
          %s428 = scalar_lea.sflag [#allocation3], %s427
          %s429 = sand.u32 %s37, 1
          %s430 = smul.addr %s429, 64
          %s431 = scalar_lea.vmem [#allocation2], %s430
          %s432 = smul.u32 2, %s27
          %434 = vsyncadd %s428, 0
          %s435 = smul.addr %s432, 4
          %s436 = smul.addr %s435, 8
          %s437 = scalar_lea.hbm %s0, %s436
          %s438 = sshll.u32 %s437, 4
          %s439 = int_to_ptr.hbm [resolvable:$true] %s438
          %s440 = sshll.u32 %s431, 4
          %s441 = int_to_ptr.vmem [resolvable:$true] %s440
          %446 = dma.hbm_to_vmem [thread:$0]  %s439, 1024, %s441, %s428, 128, 128, 8
        $region64: #{tpu_custom_call.1} parent=59 // pred_fallthru
          _
      $region60: #{tpu_custom_call.1} parent=5 // pred_fallthru
        _
      %p447 = scmp.le.s32.totalorder 1, %s27
      %p448 = scmp.lt.s32.totalorder %s27, 3
      %p449 = pnand %p447, %p448
      %p450 = pneg %p449
      // Predicated region
      $region65: #{tpu_custom_call.1} parent=5 // pred_check
        _
      $region66: #{tpu_custom_call.1} parent=5 // pred_check_branch
        %452 = sbr.rel (%p449) target = $region68
      $region67: #{tpu_custom_call.1} parent=5 // pred_region
        %s453 = ssub.s32 %s27, 1
        %s454 = sand.u32 %s40, 1
        %s455 = scalar_lea.sflag [#allocation3], %s454
        %s456 = sand.u32 %s40, 1
        %s457 = smul.addr %s456, 64
        %s458 = scalar_lea.vmem [#allocation2], %s457
        // Predicated region
        $region69: #{tpu_custom_call.1} parent=67 // pred_check
          %p459 = pneg %p53
        $region70: #{tpu_custom_call.1} parent=67 // pred_check_branch
          %461 = sbr.rel (%p459) target = $region72
        $region71: #{tpu_custom_call.1} parent=67 // pred_region
          %463 = dma.done %s455, 1024
        $region72: #{tpu_custom_call.1} parent=67 // pred_fallthru
          _
        // Predicated region
        $region73: #{tpu_custom_call.1} parent=67 // pred_check
          %p464 = pneg %p74
        $region74: #{tpu_custom_call.1} parent=67 // pred_check_branch
          %466 = sbr.rel (%p464) target = $region76
        $region75: #{tpu_custom_call.1} parent=67 // pred_region
          %468 = dma.done [#allocation6], 16
        $region76: #{tpu_custom_call.1} parent=67 // pred_fallthru
          _
        // Predicated region
        $region77: #{tpu_custom_call.1} parent=67 // pred_check
          %p469 = pneg %p116
        $region78: #{tpu_custom_call.1} parent=67 // pred_check_branch
          %471 = sbr.rel (%p469) target = $region80
        $region79: #{tpu_custom_call.1} parent=67 // pred_region
          %473 = dma.done [#allocation6], 6144
        $region80: #{tpu_custom_call.1} parent=67 // pred_fallthru
          _
        // Predicated region
        $region81: #{tpu_custom_call.1} parent=67 // pred_check
          %p474 = pneg %p137
        $region82: #{tpu_custom_call.1} parent=67 // pred_check_branch
          %476 = sbr.rel (%p474) target = $region84
        $region83: #{tpu_custom_call.1} parent=67 // pred_region
          %478 = dma.done [#allocation9], 2048
        $region84: #{tpu_custom_call.1} parent=67 // pred_fallthru
          _
        // Predicated region
        $region85: #{tpu_custom_call.1} parent=67 // pred_check
          %p479 = pneg %p200
        $region86: #{tpu_custom_call.1} parent=67 // pred_check_branch
          %481 = sbr.rel (%p479) target = $region88
        $region87: #{tpu_custom_call.1} parent=67 // pred_region
          %483 = dma.done [#allocation9], 16
        $region88: #{tpu_custom_call.1} parent=67 // pred_fallthru
          _
        // Predicated region
        $region89: #{tpu_custom_call.1} parent=67 // pred_check
          %p484 = pneg %p221
        $region90: #{tpu_custom_call.1} parent=67 // pred_check_branch
          %486 = sbr.rel (%p484) target = $region92
        $region91: #{tpu_custom_call.1} parent=67 // pred_region
          %488 = dma.done [#allocation12], 8192
        $region92: #{tpu_custom_call.1} parent=67 // pred_fallthru
          _
        // Predicated region
        $region93: #{tpu_custom_call.1} parent=67 // pred_check
          %p489 = pneg %p263
        $region94: #{tpu_custom_call.1} parent=67 // pred_check_branch
          %491 = sbr.rel (%p489) target = $region96
        $region95: #{tpu_custom_call.1} parent=67 // pred_region
          %493 = dma.done [#allocation12], 8192
        $region96: #{tpu_custom_call.1} parent=67 // pred_fallthru
          _
        %s494 = sand.u32 %s40, 1
        %s495 = scalar_lea.sflag [#allocation3], %s494
        %s496 = sand.u32 %s40, 1
        %s497 = smul.addr %s496, 64
        %s498 = scalar_lea.vmem [#allocation2], %s497
        %p499 = pneg %p53
        %p500 = pneg %p50
        %p501 = pneg %p74
        %p502 = pneg %p71
        %p503 = pneg %p95
        %p504 = pneg %p92
        %p505 = pneg %p116
        %p506 = pneg %p113
        %p507 = pneg %p137
        %p508 = pneg %p134
        %p509 = pneg %p158
        %p510 = pneg %p155
        %p511 = pneg %p179
        %p512 = pneg %p176
        %p513 = pneg %p200
        %p514 = pneg %p197
        %p515 = pneg %p221
        %p516 = pneg %p218
        %p517 = pneg %p242
        %p518 = pneg %p239
        %p519 = pneg %p263
        %p520 = pneg %p260
        %p521 = pneg %p284
        %p522 = pneg %p281
        %p523 = pneg %p310
        %p524 = pneg %p307
        %s525 = sand.u32 %s297, 1
        %s526 = scalar_lea.sflag [#allocation4], %s525
        %s527 = sand.u32 %s297, 1
        %s528 = smul.addr %s527, 64
        %s529 = scalar_lea.vmem [#allocation14], %s528
        %s530 = smul.u32 2, %s32
        %s531 = smul.u32 2, %s32
        %v532 = vld [vmem:[%s458] sm:$0xff]
        %v533 = vld [vmem:[%s458 + $0x8] sm:$0xff]
        %v534 = vld [vmem:[%s458 + $0x10] sm:$0xff]
        %v535 = vld [vmem:[%s458 + $0x18] sm:$0xff]
        %v536 = vld [vmem:[%s458 + $0x20] sm:$0xff]
        %v537 = vld [vmem:[%s458 + $0x28] sm:$0xff]
        %v538 = vld [vmem:[%s458 + $0x30] sm:$0xff]
        %v539 = vld [vmem:[%s458 + $0x38] sm:$0xff]
        %v540 = vld [vmem:[#allocation5] sm:$0x1]
        %v541 = vld [vmem:[%s2] sm:$0x1]
        %542 = vadd.xlane.f32.xlu0 %v532
        %v543 = vpop.xlane.xlu0 %542
        %544 = vadd.xlane.f32.xlu0 %v533
        %v545 = vpop.xlane.xlu0 %544
        %546 = vadd.xlane.f32.xlu0 %v534
        %v547 = vpop.xlane.xlu0 %546
        %548 = vadd.xlane.f32.xlu0 %v535
        %v549 = vpop.xlane.xlu0 %548
        %550 = vadd.xlane.f32.xlu0 %v536
        %v551 = vpop.xlane.xlu0 %550
        %552 = vadd.xlane.f32.xlu0 %v537
        %v553 = vpop.xlane.xlu0 %552
        %554 = vadd.xlane.f32.xlu0 %v538
        %v555 = vpop.xlane.xlu0 %554
        %556 = vadd.xlane.f32.xlu0 %v539
        %v557 = vpop.xlane.xlu0 %556
        %v558 = vrcp.pop 128.0
        %v559 = vmul.f32 128.0, %v558
        %v560 = vsub.f32 1.0, %v559
        %v561 = vmul.f32 %v558, %v560
        %v562 = vadd.f32 %v558, %v561
        %vm563 = vweird.f32 %v558
        %v564 = vsel %vm563, %v558, %v562
        %v565 = vmul.f32 %v543, %v564
        %v566 = vmul.f32 %v545, %v564
        %v567 = vmul.f32 %v547, %v564
        %v568 = vmul.f32 %v549, %v564
        %v569 = vmul.f32 %v551, %v564
        %v570 = vmul.f32 %v553, %v564
        %v571 = vmul.f32 %v555, %v564
        %v572 = vmul.f32 %v557, %v564
        %v573 = vsub.f32 %v532, %v565
        %v574 = vsub.f32 %v533, %v566
        %v575 = vsub.f32 %v534, %v567
        %v576 = vsub.f32 %v535, %v568
        %v577 = vsub.f32 %v536, %v569
        %v578 = vsub.f32 %v537, %v570
        %v579 = vsub.f32 %v538, %v571
        %v580 = vsub.f32 %v539, %v572
        %v581 = vmul.f32 %v573, %v573
        %v582 = vmul.f32 %v574, %v574
        %v583 = vmul.f32 %v575, %v575
        %v584 = vmul.f32 %v576, %v576
        %v585 = vmul.f32 %v577, %v577
        %v586 = vmul.f32 %v578, %v578
        %v587 = vmul.f32 %v579, %v579
        %v588 = vmul.f32 %v580, %v580
        %589 = vadd.xlane.f32.xlu0 %v581
        %v590 = vpop.xlane.xlu0 %589
        %591 = vadd.xlane.f32.xlu0 %v582
        %v592 = vpop.xlane.xlu0 %591
        %593 = vadd.xlane.f32.xlu0 %v583
        %v594 = vpop.xlane.xlu0 %593
        %595 = vadd.xlane.f32.xlu0 %v584
        %v596 = vpop.xlane.xlu0 %595
        %597 = vadd.xlane.f32.xlu0 %v585
        %v598 = vpop.xlane.xlu0 %597
        %599 = vadd.xlane.f32.xlu0 %v586
        %v600 = vpop.xlane.xlu0 %599
        %601 = vadd.xlane.f32.xlu0 %v587
        %v602 = vpop.xlane.xlu0 %601
        %603 = vadd.xlane.f32.xlu0 %v588
        %v604 = vpop.xlane.xlu0 %603
        %v605 = vmul.f32 %v590, %v564
        %v606 = vmul.f32 %v592, %v564
        %v607 = vmul.f32 %v594, %v564
        %v608 = vmul.f32 %v596, %v564
        %v609 = vmul.f32 %v598, %v564
        %v610 = vmul.f32 %v600, %v564
        %v611 = vmul.f32 %v602, %v564
        %v612 = vmul.f32 %v604, %v564
        %v613 = vadd.f32 %v605, 1e-05
        %v614 = vadd.f32 %v606, 1e-05
        %v615 = vadd.f32 %v607, 1e-05
        %v616 = vadd.f32 %v608, 1e-05
        %v617 = vadd.f32 %v609, 1e-05
        %v618 = vadd.f32 %v610, 1e-05
        %v619 = vadd.f32 %v611, 1e-05
        %v620 = vadd.f32 %v612, 1e-05
        %v621 = vrsqrt.pop %v613
        %v622 = vmul.f32 %v621, %v613
        %v623 = vmul.f32 %v622, %v621
        %v624 = vmul.f32 0.5, %v623
        %v625 = vsub.f32 1.5, %v624
        %v626 = vmul.f32 %v621, %v625
        %vm627 = vweird.f32 %v613
        %vm628 = vweird.f32 %v621
        %vm629 = vmor %vm627, %vm628
        %v630 = vsel %vm629, %v621, %v626
        %v631 = vrsqrt.pop %v614
        %v632 = vmul.f32 %v631, %v614
        %v633 = vmul.f32 %v632, %v631
        %v634 = vmul.f32 0.5, %v633
        %v635 = vsub.f32 1.5, %v634
        %v636 = vmul.f32 %v631, %v635
        %vm637 = vweird.f32 %v614
        %vm638 = vweird.f32 %v631
        %vm639 = vmor %vm637, %vm638
        %v640 = vsel %vm639, %v631, %v636
        %v641 = vrsqrt.pop %v615
        %v642 = vmul.f32 %v641, %v615
        %v643 = vmul.f32 %v642, %v641
        %v644 = vmul.f32 0.5, %v643
        %v645 = vsub.f32 1.5, %v644
        %v646 = vmul.f32 %v641, %v645
        %vm647 = vweird.f32 %v615
        %vm648 = vweird.f32 %v641
        %vm649 = vmor %vm647, %vm648
        %v650 = vsel %vm649, %v641, %v646
        %v651 = vrsqrt.pop %v616
        %v652 = vmul.f32 %v651, %v616
        %v653 = vmul.f32 %v652, %v651
        %v654 = vmul.f32 0.5, %v653
        %v655 = vsub.f32 1.5, %v654
        %v656 = vmul.f32 %v651, %v655
        %vm657 = vweird.f32 %v616
        %vm658 = vweird.f32 %v651
        %vm659 = vmor %vm657, %vm658
        %v660 = vsel %vm659, %v651, %v656
        %v661 = vrsqrt.pop %v617
        %v662 = vmul.f32 %v661, %v617
        %v663 = vmul.f32 %v662, %v661
        %v664 = vmul.f32 0.5, %v663
        %v665 = vsub.f32 1.5, %v664
        %v666 = vmul.f32 %v661, %v665
        %vm667 = vweird.f32 %v617
        %vm668 = vweird.f32 %v661
        %vm669 = vmor %vm667, %vm668
        %v670 = vsel %vm669, %v661, %v666
        %v671 = vrsqrt.pop %v618
        %v672 = vmul.f32 %v671, %v618
        %v673 = vmul.f32 %v672, %v671
        %v674 = vmul.f32 0.5, %v673
        %v675 = vsub.f32 1.5, %v674
        %v676 = vmul.f32 %v671, %v675
        %vm677 = vweird.f32 %v618
        %vm678 = vweird.f32 %v671
        %vm679 = vmor %vm677, %vm678
        %v680 = vsel %vm679, %v671, %v676
        %v681 = vrsqrt.pop %v619
        %v682 = vmul.f32 %v681, %v619
        %v683 = vmul.f32 %v682, %v681
        %v684 = vmul.f32 0.5, %v683
        %v685 = vsub.f32 1.5, %v684
        %v686 = vmul.f32 %v681, %v685
        %vm687 = vweird.f32 %v619
        %vm688 = vweird.f32 %v681
        %vm689 = vmor %vm687, %vm688
        %v690 = vsel %vm689, %v681, %v686
        %v691 = vrsqrt.pop %v620
        %v692 = vmul.f32 %v691, %v620
        %v693 = vmul.f32 %v692, %v691
        %v694 = vmul.f32 0.5, %v693
        %v695 = vsub.f32 1.5, %v694
        %v696 = vmul.f32 %v691, %v695
        %vm697 = vweird.f32 %v620
        %vm698 = vweird.f32 %v691
        %vm699 = vmor %vm697, %vm698
        %v700 = vsel %vm699, %v691, %v696
        %v701 = vmul.f32 %v573, %v630
        %v702 = vmul.f32 %v574, %v640
        %v703 = vmul.f32 %v575, %v650
        %v704 = vmul.f32 %v576, %v660
        %v705 = vmul.f32 %v577, %v670
        %v706 = vmul.f32 %v578, %v680
        %v707 = vmul.f32 %v579, %v690
        %v708 = vmul.f32 %v580, %v700
        %v710 = vperm.slane %v540, 0
        %v712 = vmul.f32 %v701, %v710
        %v713 = vmul.f32 %v702, %v710
        %v714 = vmul.f32 %v703, %v710
        %v715 = vmul.f32 %v704, %v710
        %v716 = vmul.f32 %v705, %v710
        %v717 = vmul.f32 %v706, %v710
        %v718 = vmul.f32 %v707, %v710
        %v719 = vmul.f32 %v708, %v710
        %v721 = vperm.slane %v541, 0
        %v723 = vadd.f32 %v712, %v721
        %v724 = vadd.f32 %v713, %v721
        %v725 = vadd.f32 %v714, %v721
        %v726 = vadd.f32 %v715, %v721
        %v727 = vadd.f32 %v716, %v721
        %v728 = vadd.f32 %v717, %v721
        %v729 = vadd.f32 %v718, %v721
        %v730 = vadd.f32 %v719, %v721
        %v731 = vld [vmem:[#allocation7] sm:$0xff]
        %v732 = vld [vmem:[#allocation7 + $0x8] sm:$0xff]
        %v733 = vld [vmem:[#allocation7 + $0x10] sm:$0xff]
        %v734 = vld [vmem:[#allocation7 + $0x18] sm:$0xff]
        %v735 = vld [vmem:[#allocation7 + $0x20] sm:$0xff]
        %v736 = vld [vmem:[#allocation7 + $0x28] sm:$0xff]
        %v737 = vld [vmem:[#allocation7 + $0x30] sm:$0xff]
        %v738 = vld [vmem:[#allocation7 + $0x38] sm:$0xff]
        %v739 = vld [vmem:[#allocation7 + $0x40] sm:$0xff]
        %v740 = vld [vmem:[#allocation7 + $0x48] sm:$0xff]
        %v741 = vld [vmem:[#allocation7 + $0x50] sm:$0xff]
        %v742 = vld [vmem:[#allocation7 + $0x58] sm:$0xff]
        %v743 = vld [vmem:[#allocation7 + $0x60] sm:$0xff]
        %v744 = vld [vmem:[#allocation7 + $0x68] sm:$0xff]
        %v745 = vld [vmem:[#allocation7 + $0x70] sm:$0xff]
        %v746 = vld [vmem:[#allocation7 + $0x78] sm:$0xff]
        %v747 = vld [vmem:[#allocation7 + $0x80] sm:$0xff]
        %v748 = vld [vmem:[#allocation7 + $0x88] sm:$0xff]
        %v749 = vld [vmem:[#allocation7 + $0x90] sm:$0xff]
        %v750 = vld [vmem:[#allocation7 + $0x98] sm:$0xff]
        %v751 = vld [vmem:[#allocation7 + $0xa0] sm:$0xff]
        %v752 = vld [vmem:[#allocation7 + $0xa8] sm:$0xff]
        %v753 = vld [vmem:[#allocation7 + $0xb0] sm:$0xff]
        %v754 = vld [vmem:[#allocation7 + $0xb8] sm:$0xff]
        %v755 = vld [vmem:[#allocation7 + $0xc0] sm:$0xff]
        %v756 = vld [vmem:[#allocation7 + $0xc8] sm:$0xff]
        %v757 = vld [vmem:[#allocation7 + $0xd0] sm:$0xff]
        %v758 = vld [vmem:[#allocation7 + $0xd8] sm:$0xff]
        %v759 = vld [vmem:[#allocation7 + $0xe0] sm:$0xff]
        %v760 = vld [vmem:[#allocation7 + $0xe8] sm:$0xff]
        %v761 = vld [vmem:[#allocation7 + $0xf0] sm:$0xff]
        %v762 = vld [vmem:[#allocation7 + $0xf8] sm:$0xff]
        %v763 = vld [vmem:[#allocation7 + $0x100] sm:$0xff]
        %v764 = vld [vmem:[#allocation7 + $0x108] sm:$0xff]
        %v765 = vld [vmem:[#allocation7 + $0x110] sm:$0xff]
        %v766 = vld [vmem:[#allocation7 + $0x118] sm:$0xff]
        %v767 = vld [vmem:[#allocation7 + $0x120] sm:$0xff]
        %v768 = vld [vmem:[#allocation7 + $0x128] sm:$0xff]
        %v769 = vld [vmem:[#allocation7 + $0x130] sm:$0xff]
        %v770 = vld [vmem:[#allocation7 + $0x138] sm:$0xff]
        %v771 = vld [vmem:[#allocation7 + $0x140] sm:$0xff]
        %v772 = vld [vmem:[#allocation7 + $0x148] sm:$0xff]
        %v773 = vld [vmem:[#allocation7 + $0x150] sm:$0xff]
        %v774 = vld [vmem:[#allocation7 + $0x158] sm:$0xff]
        %v775 = vld [vmem:[#allocation7 + $0x160] sm:$0xff]
        %v776 = vld [vmem:[#allocation7 + $0x168] sm:$0xff]
        %v777 = vld [vmem:[#allocation7 + $0x170] sm:$0xff]
        %v778 = vld [vmem:[#allocation7 + $0x178] sm:$0xff]
        %779 = vmatpush.msra.mxu0 %v776
        %780 = vmatpush.msra.mxu0 %v773
        %781 = vmatpush.msra.mxu0 %v770
        %782 = vmatpush.msra.mxu0 %v767
        %783 = vmatpush.msra.mxu0 %v764
        %784 = vmatpush.msra.mxu0 %v761
        %785 = vmatpush.msra.mxu0 %v758
        %786 = vmatpush.msra.mxu0 %v755
        %787 = vmatpush.msra.mxu0 %v752
        %788 = vmatpush.msra.mxu0 %v749
        %789 = vmatpush.msra.mxu0 %v746
        %790 = vmatpush.msra.mxu0 %v743
        %791 = vmatpush.msra.mxu0 %v740
        %792 = vmatpush.msra.mxu0 %v737
        %793 = vmatpush.msra.mxu0 %v734
        %794 = vmatpush.msra.mxu0 %v731
        %795 = vmatmul.f32.gmra.mxu0 %v723
        %v796 = vpop.f32.mrf.mxu0
        %v797 = vadd.f32 0.0, %v796
        %798 = vmatmul.f32.gmra.mxu0 %v724
        %v799 = vpop.f32.mrf.mxu0
        %v800 = vadd.f32 0.0, %v799
        %801 = vmatmul.f32.gmra.mxu0 %v725
        %v802 = vpop.f32.mrf.mxu0
        %v803 = vadd.f32 0.0, %v802
        %804 = vmatmul.f32.gmra.mxu0 %v726
        %v805 = vpop.f32.mrf.mxu0
        %v806 = vadd.f32 0.0, %v805
        %807 = vmatmul.f32.gmra.mxu0 %v727
        %v808 = vpop.f32.mrf.mxu0
        %v809 = vadd.f32 0.0, %v808
        %810 = vmatmul.f32.gmra.mxu0 %v728
        %v811 = vpop.f32.mrf.mxu0
        %v812 = vadd.f32 0.0, %v811
        %813 = vmatmul.f32.gmra.mxu0 %v729
        %v814 = vpop.f32.mrf.mxu0
        %v815 = vadd.f32 0.0, %v814
        %816 = vmatmul.f32.gmra.mxu0 %v730
        %v817 = vpop.f32.mrf.mxu0
        %v818 = vadd.f32 0.0, %v817
        %819 = vdwg.mxu0
        %820 = vmatpush.msra.mxu0 %v777
        %821 = vmatpush.msra.mxu0 %v774
        %822 = vmatpush.msra.mxu0 %v771
        %823 = vmatpush.msra.mxu0 %v768
        %824 = vmatpush.msra.mxu0 %v765
        %825 = vmatpush.msra.mxu0 %v762
        %826 = vmatpush.msra.mxu0 %v759
        %827 = vmatpush.msra.mxu0 %v756
        %828 = vmatpush.msra.mxu0 %v753
        %829 = vmatpush.msra.mxu0 %v750
        %830 = vmatpush.msra.mxu0 %v747
        %831 = vmatpush.msra.mxu0 %v744
        %832 = vmatpush.msra.mxu0 %v741
        %833 = vmatpush.msra.mxu0 %v738
        %834 = vmatpush.msra.mxu0 %v735
        %835 = vmatpush.msra.mxu0 %v732
        %836 = vmatmul.f32.gmra.mxu0 %v723
        %v837 = vpop.f32.mrf.mxu0
        %v838 = vadd.f32 0.0, %v837
        %839 = vmatmul.f32.gmra.mxu0 %v724
        %v840 = vpop.f32.mrf.mxu0
        %v841 = vadd.f32 0.0, %v840
        %842 = vmatmul.f32.gmra.mxu0 %v725
        %v843 = vpop.f32.mrf.mxu0
        %v844 = vadd.f32 0.0, %v843
        %845 = vmatmul.f32.gmra.mxu0 %v726
        %v846 = vpop.f32.mrf.mxu0
        %v847 = vadd.f32 0.0, %v846
        %848 = vmatmul.f32.gmra.mxu0 %v727
        %v849 = vpop.f32.mrf.mxu0
        %v850 = vadd.f32 0.0, %v849
        %851 = vmatmul.f32.gmra.mxu0 %v728
        %v852 = vpop.f32.mrf.mxu0
        %v853 = vadd.f32 0.0, %v852
        %854 = vmatmul.f32.gmra.mxu0 %v729
        %v855 = vpop.f32.mrf.mxu0
        %v856 = vadd.f32 0.0, %v855
        %857 = vmatmul.f32.gmra.mxu0 %v730
        %v858 = vpop.f32.mrf.mxu0
        %v859 = vadd.f32 0.0, %v858
        %860 = vdwg.mxu0
        %861 = vmatpush.msra.mxu0 %v778
        %862 = vmatpush.msra.mxu0 %v775
        %863 = vmatpush.msra.mxu0 %v772
        %864 = vmatpush.msra.mxu0 %v769
        %865 = vmatpush.msra.mxu0 %v766
        %866 = vmatpush.msra.mxu0 %v763
        %867 = vmatpush.msra.mxu0 %v760
        %868 = vmatpush.msra.mxu0 %v757
        %869 = vmatpush.msra.mxu0 %v754
        %870 = vmatpush.msra.mxu0 %v751
        %871 = vmatpush.msra.mxu0 %v748
        %872 = vmatpush.msra.mxu0 %v745
        %873 = vmatpush.msra.mxu0 %v742
        %874 = vmatpush.msra.mxu0 %v739
        %875 = vmatpush.msra.mxu0 %v736
        %876 = vmatpush.msra.mxu0 %v733
        %877 = vmatmul.f32.gmra.mxu0 %v723
        %v878 = vpop.f32.mrf.mxu0
        %v879 = vadd.f32 0.0, %v878
        %880 = vmatmul.f32.gmra.mxu0 %v724
        %v881 = vpop.f32.mrf.mxu0
        %v882 = vadd.f32 0.0, %v881
        %883 = vmatmul.f32.gmra.mxu0 %v725
        %v884 = vpop.f32.mrf.mxu0
        %v885 = vadd.f32 0.0, %v884
        %886 = vmatmul.f32.gmra.mxu0 %v726
        %v887 = vpop.f32.mrf.mxu0
        %v888 = vadd.f32 0.0, %v887
        %889 = vmatmul.f32.gmra.mxu0 %v727
        %v890 = vpop.f32.mrf.mxu0
        %v891 = vadd.f32 0.0, %v890
        %892 = vmatmul.f32.gmra.mxu0 %v728
        %v893 = vpop.f32.mrf.mxu0
        %v894 = vadd.f32 0.0, %v893
        %895 = vmatmul.f32.gmra.mxu0 %v729
        %v896 = vpop.f32.mrf.mxu0
        %v897 = vadd.f32 0.0, %v896
        %898 = vmatmul.f32.gmra.mxu0 %v730
        %v899 = vpop.f32.mrf.mxu0
        %v900 = vadd.f32 0.0, %v899
        %901 = vdwg.mxu0
        %910 = vrot.lane.b32.xlu0 %v797, 96
        %v911 = vpop.permute.xlu0 %910
        %912 = vrot.lane.b32.xlu0 %v800, 96
        %v913 = vpop.permute.xlu0 %912
        %914 = vrot.lane.b32.xlu0 %v803, 96
        %v915 = vpop.permute.xlu0 %914
        %916 = vrot.lane.b32.xlu0 %v806, 96
        %v917 = vpop.permute.xlu0 %916
        %918 = vrot.lane.b32.xlu0 %v809, 96
        %v919 = vpop.permute.xlu0 %918
        %920 = vrot.lane.b32.xlu0 %v812, 96
        %v921 = vpop.permute.xlu0 %920
        %922 = vrot.lane.b32.xlu0 %v815, 96
        %v923 = vpop.permute.xlu0 %922
        %924 = vrot.lane.b32.xlu0 %v818, 96
        %v925 = vpop.permute.xlu0 %924
        %934 = vrot.lane.b32.xlu0 %v797, 64
        %v935 = vpop.permute.xlu0 %934
        %936 = vrot.lane.b32.xlu0 %v800, 64
        %v937 = vpop.permute.xlu0 %936
        %938 = vrot.lane.b32.xlu0 %v803, 64
        %v939 = vpop.permute.xlu0 %938
        %940 = vrot.lane.b32.xlu0 %v806, 64
        %v941 = vpop.permute.xlu0 %940
        %942 = vrot.lane.b32.xlu0 %v809, 64
        %v943 = vpop.permute.xlu0 %942
        %944 = vrot.lane.b32.xlu0 %v812, 64
        %v945 = vpop.permute.xlu0 %944
        %946 = vrot.lane.b32.xlu0 %v815, 64
        %v947 = vpop.permute.xlu0 %946
        %948 = vrot.lane.b32.xlu0 %v818, 64
        %v949 = vpop.permute.xlu0 %948
        %958 = vrot.lane.b32.xlu0 %v797, 32
        %v959 = vpop.permute.xlu0 %958
        %960 = vrot.lane.b32.xlu0 %v800, 32
        %v961 = vpop.permute.xlu0 %960
        %962 = vrot.lane.b32.xlu0 %v803, 32
        %v963 = vpop.permute.xlu0 %962
        %964 = vrot.lane.b32.xlu0 %v806, 32
        %v965 = vpop.permute.xlu0 %964
        %966 = vrot.lane.b32.xlu0 %v809, 32
        %v967 = vpop.permute.xlu0 %966
        %968 = vrot.lane.b32.xlu0 %v812, 32
        %v969 = vpop.permute.xlu0 %968
        %970 = vrot.lane.b32.xlu0 %v815, 32
        %v971 = vpop.permute.xlu0 %970
        %972 = vrot.lane.b32.xlu0 %v818, 32
        %v973 = vpop.permute.xlu0 %972
        %v982 = vrot.slane %v935, 4
        %vm983 = vcmask 1047556
        %v984 = vsel %vm983, %v982, %v797
        %v985 = vrot.slane %v797, 4
        %v986 = vsel %vm983, %v935, %v985
        %v988 = vunpack.c.l.s4 1983009808
        %v989 = vunpack.c.0.s8 %v988
        %v990 = vperm.slane %v984, %v989
        %v992 = vunpack.c.l.s4 1983009808
        %v993 = vunpack.c.0.s8 %v992
        %v994 = vperm.slane %v986, %v993
        %v995 = vrot.slane %v959, 4
        %v996 = vsel %vm983, %v995, %v911
        %v997 = vrot.slane %v911, 4
        %v998 = vsel %vm983, %v959, %v997
        %v1000 = vunpack.c.l.s4 1983009808
        %v1001 = vunpack.c.0.s8 %v1000
        %v1002 = vperm.slane %v996, %v1001
        %v1004 = vunpack.c.l.s4 1983009808
        %v1005 = vunpack.c.0.s8 %v1004
        %v1006 = vperm.slane %v998, %v1005
        %v1007 = vrot.slane %v1002, 4
        %v1008 = vsel %vm983, %v1007, %v990
        %v1009 = vrot.slane %v990, 4
        %v1010 = vsel %vm983, %v1002, %v1009
        %v1012 = vunpack.c.l.s4 1934713408
        %v1013 = vunpack.c.0.s8 %v1012
        %v1014 = vperm.slane %v1008, %v1013
        %v1016 = vunpack.c.l.s4 1934713408
        %v1017 = vunpack.c.0.s8 %v1016
        %v1018 = vperm.slane %v1010, %v1017
        %v1019 = vrot.slane %v1006, 4
        %v1020 = vsel %vm983, %v1019, %v994
        %v1021 = vrot.slane %v994, 4
        %v1022 = vsel %vm983, %v1006, %v1021
        %v1024 = vunpack.c.l.s4 1934713408
        %v1025 = vunpack.c.0.s8 %v1024
        %v1026 = vperm.slane %v1020, %v1025
        %v1028 = vunpack.c.l.s4 1934713408
        %v1029 = vunpack.c.0.s8 %v1028
        %v1030 = vperm.slane %v1022, %v1029
        %v1031 = vrot.slane %v1014, 4
        %v1032 = vsel %vm983, 0.0, %v1031
        %v1033 = vrot.slane %v1018, 4
        %v1034 = vsel %vm983, 0.0, %v1033
        %v1035 = vrot.slane %v1026, 4
        %v1036 = vsel %vm983, 0.0, %v1035
        %v1037 = vrot.slane %v1030, 4
        %v1038 = vsel %vm983, 0.0, %v1037
        %v1039 = vrot.slane %v937, 4
        %v1040 = vsel %vm983, %v1039, %v800
        %v1041 = vrot.slane %v800, 4
        %v1042 = vsel %vm983, %v937, %v1041
        %v1044 = vunpack.c.l.s4 1983009808
        %v1045 = vunpack.c.0.s8 %v1044
        %v1046 = vperm.slane %v1040, %v1045
        %v1048 = vunpack.c.l.s4 1983009808
        %v1049 = vunpack.c.0.s8 %v1048
        %v1050 = vperm.slane %v1042, %v1049
        %v1051 = vrot.slane %v961, 4
        %v1052 = vsel %vm983, %v1051, %v913
        %v1053 = vrot.slane %v913, 4
        %v1054 = vsel %vm983, %v961, %v1053
        %v1056 = vunpack.c.l.s4 1983009808
        %v1057 = vunpack.c.0.s8 %v1056
        %v1058 = vperm.slane %v1052, %v1057
        %v1060 = vunpack.c.l.s4 1983009808
        %v1061 = vunpack.c.0.s8 %v1060
        %v1062 = vperm.slane %v1054, %v1061
        %v1063 = vrot.slane %v1058, 4
        %v1064 = vsel %vm983, %v1063, %v1046
        %v1065 = vrot.slane %v1046, 4
        %v1066 = vsel %vm983, %v1058, %v1065
        %v1068 = vunpack.c.l.s4 1934713408
        %v1069 = vunpack.c.0.s8 %v1068
        %v1070 = vperm.slane %v1064, %v1069
        %v1072 = vunpack.c.l.s4 1934713408
        %v1073 = vunpack.c.0.s8 %v1072
        %v1074 = vperm.slane %v1066, %v1073
        %v1075 = vrot.slane %v1062, 4
        %v1076 = vsel %vm983, %v1075, %v1050
        %v1077 = vrot.slane %v1050, 4
        %v1078 = vsel %vm983, %v1062, %v1077
        %v1080 = vunpack.c.l.s4 1934713408
        %v1081 = vunpack.c.0.s8 %v1080
        %v1082 = vperm.slane %v1076, %v1081
        %v1084 = vunpack.c.l.s4 1934713408
        %v1085 = vunpack.c.0.s8 %v1084
        %v1086 = vperm.slane %v1078, %v1085
        %v1087 = vrot.slane %v1070, 4
        %v1088 = vsel %vm983, 0.0, %v1087
        %v1089 = vrot.slane %v1074, 4
        %v1090 = vsel %vm983, 0.0, %v1089
        %v1091 = vrot.slane %v1082, 4
        %v1092 = vsel %vm983, 0.0, %v1091
        %v1093 = vrot.slane %v1086, 4
        %v1094 = vsel %vm983, 0.0, %v1093
        %v1095 = vrot.slane %v939, 4
        %v1096 = vsel %vm983, %v1095, %v803
        %v1097 = vrot.slane %v803, 4
        %v1098 = vsel %vm983, %v939, %v1097
        %v1100 = vunpack.c.l.s4 1983009808
        %v1101 = vunpack.c.0.s8 %v1100
        %v1102 = vperm.slane %v1096, %v1101
        %v1104 = vunpack.c.l.s4 1983009808
        %v1105 = vunpack.c.0.s8 %v1104
        %v1106 = vperm.slane %v1098, %v1105
        %v1107 = vrot.slane %v963, 4
        %v1108 = vsel %vm983, %v1107, %v915
        %v1109 = vrot.slane %v915, 4
        %v1110 = vsel %vm983, %v963, %v1109
        %v1112 = vunpack.c.l.s4 1983009808
        %v1113 = vunpack.c.0.s8 %v1112
        %v1114 = vperm.slane %v1108, %v1113
        %v1116 = vunpack.c.l.s4 1983009808
        %v1117 = vunpack.c.0.s8 %v1116
        %v1118 = vperm.slane %v1110, %v1117
        %v1119 = vrot.slane %v1114, 4
        %v1120 = vsel %vm983, %v1119, %v1102
        %v1121 = vrot.slane %v1102, 4
        %v1122 = vsel %vm983, %v1114, %v1121
        %v1124 = vunpack.c.l.s4 1934713408
        %v1125 = vunpack.c.0.s8 %v1124
        %v1126 = vperm.slane %v1120, %v1125
        %v1128 = vunpack.c.l.s4 1934713408
        %v1129 = vunpack.c.0.s8 %v1128
        %v1130 = vperm.slane %v1122, %v1129
        %v1131 = vrot.slane %v1118, 4
        %v1132 = vsel %vm983, %v1131, %v1106
        %v1133 = vrot.slane %v1106, 4
        %v1134 = vsel %vm983, %v1118, %v1133
        %v1136 = vunpack.c.l.s4 1934713408
        %v1137 = vunpack.c.0.s8 %v1136
        %v1138 = vperm.slane %v1132, %v1137
        %v1140 = vunpack.c.l.s4 1934713408
        %v1141 = vunpack.c.0.s8 %v1140
        %v1142 = vperm.slane %v1134, %v1141
        %v1143 = vrot.slane %v1126, 4
        %v1144 = vsel %vm983, 0.0, %v1143
        %v1145 = vrot.slane %v1130, 4
        %v1146 = vsel %vm983, 0.0, %v1145
        %v1147 = vrot.slane %v1138, 4
        %v1148 = vsel %vm983, 0.0, %v1147
        %v1149 = vrot.slane %v1142, 4
        %v1150 = vsel %vm983, 0.0, %v1149
        %v1151 = vrot.slane %v941, 4
        %v1152 = vsel %vm983, %v1151, %v806
        %v1153 = vrot.slane %v806, 4
        %v1154 = vsel %vm983, %v941, %v1153
        %v1156 = vunpack.c.l.s4 1983009808
        %v1157 = vunpack.c.0.s8 %v1156
        %v1158 = vperm.slane %v1152, %v1157
        %v1160 = vunpack.c.l.s4 1983009808
        %v1161 = vunpack.c.0.s8 %v1160
        %v1162 = vperm.slane %v1154, %v1161
        %v1163 = vrot.slane %v965, 4
        %v1164 = vsel %vm983, %v1163, %v917
        %v1165 = vrot.slane %v917, 4
        %v1166 = vsel %vm983, %v965, %v1165
        %v1168 = vunpack.c.l.s4 1983009808
        %v1169 = vunpack.c.0.s8 %v1168
        %v1170 = vperm.slane %v1164, %v1169
        %v1172 = vunpack.c.l.s4 1983009808
        %v1173 = vunpack.c.0.s8 %v1172
        %v1174 = vperm.slane %v1166, %v1173
        %v1175 = vrot.slane %v1170, 4
        %v1176 = vsel %vm983, %v1175, %v1158
        %v1177 = vrot.slane %v1158, 4
        %v1178 = vsel %vm983, %v1170, %v1177
        %v1180 = vunpack.c.l.s4 1934713408
        %v1181 = vunpack.c.0.s8 %v1180
        %v1182 = vperm.slane %v1176, %v1181
        %v1184 = vunpack.c.l.s4 1934713408
        %v1185 = vunpack.c.0.s8 %v1184
        %v1186 = vperm.slane %v1178, %v1185
        %v1187 = vrot.slane %v1174, 4
        %v1188 = vsel %vm983, %v1187, %v1162
        %v1189 = vrot.slane %v1162, 4
        %v1190 = vsel %vm983, %v1174, %v1189
        %v1192 = vunpack.c.l.s4 1934713408
        %v1193 = vunpack.c.0.s8 %v1192
        %v1194 = vperm.slane %v1188, %v1193
        %v1196 = vunpack.c.l.s4 1934713408
        %v1197 = vunpack.c.0.s8 %v1196
        %v1198 = vperm.slane %v1190, %v1197
        %v1199 = vrot.slane %v1182, 4
        %v1200 = vsel %vm983, 0.0, %v1199
        %v1201 = vrot.slane %v1186, 4
        %v1202 = vsel %vm983, 0.0, %v1201
        %v1203 = vrot.slane %v1194, 4
        %v1204 = vsel %vm983, 0.0, %v1203
        %v1205 = vrot.slane %v1198, 4
        %v1206 = vsel %vm983, 0.0, %v1205
        %v1207 = vrot.slane %v943, 4
        %v1208 = vsel %vm983, %v1207, %v809
        %v1209 = vrot.slane %v809, 4
        %v1210 = vsel %vm983, %v943, %v1209
        %v1212 = vunpack.c.l.s4 1983009808
        %v1213 = vunpack.c.0.s8 %v1212
        %v1214 = vperm.slane %v1208, %v1213
        %v1216 = vunpack.c.l.s4 1983009808
        %v1217 = vunpack.c.0.s8 %v1216
        %v1218 = vperm.slane %v1210, %v1217
        %v1219 = vrot.slane %v967, 4
        %v1220 = vsel %vm983, %v1219, %v919
        %v1221 = vrot.slane %v919, 4
        %v1222 = vsel %vm983, %v967, %v1221
        %v1224 = vunpack.c.l.s4 1983009808
        %v1225 = vunpack.c.0.s8 %v1224
        %v1226 = vperm.slane %v1220, %v1225
        %v1228 = vunpack.c.l.s4 1983009808
        %v1229 = vunpack.c.0.s8 %v1228
        %v1230 = vperm.slane %v1222, %v1229
        %v1231 = vrot.slane %v1226, 4
        %v1232 = vsel %vm983, %v1231, %v1214
        %v1233 = vrot.slane %v1214, 4
        %v1234 = vsel %vm983, %v1226, %v1233
        %v1236 = vunpack.c.l.s4 1934713408
        %v1237 = vunpack.c.0.s8 %v1236
        %v1238 = vperm.slane %v1232, %v1237
        %v1240 = vunpack.c.l.s4 1934713408
        %v1241 = vunpack.c.0.s8 %v1240
        %v1242 = vperm.slane %v1234, %v1241
        %v1243 = vrot.slane %v1230, 4
        %v1244 = vsel %vm983, %v1243, %v1218
        %v1245 = vrot.slane %v1218, 4
        %v1246 = vsel %vm983, %v1230, %v1245
        %v1248 = vunpack.c.l.s4 1934713408
        %v1249 = vunpack.c.0.s8 %v1248
        %v1250 = vperm.slane %v1244, %v1249
        %v1252 = vunpack.c.l.s4 1934713408
        %v1253 = vunpack.c.0.s8 %v1252
        %v1254 = vperm.slane %v1246, %v1253
        %v1255 = vrot.slane %v1238, 4
        %v1256 = vsel %vm983, 0.0, %v1255
        %v1257 = vrot.slane %v1242, 4
        %v1258 = vsel %vm983, 0.0, %v1257
        %v1259 = vrot.slane %v1250, 4
        %v1260 = vsel %vm983, 0.0, %v1259
        %v1261 = vrot.slane %v1254, 4
        %v1262 = vsel %vm983, 0.0, %v1261
        %v1263 = vrot.slane %v945, 4
        %v1264 = vsel %vm983, %v1263, %v812
        %v1265 = vrot.slane %v812, 4
        %v1266 = vsel %vm983, %v945, %v1265
        %v1268 = vunpack.c.l.s4 1983009808
        %v1269 = vunpack.c.0.s8 %v1268
        %v1270 = vperm.slane %v1264, %v1269
        %v1272 = vunpack.c.l.s4 1983009808
        %v1273 = vunpack.c.0.s8 %v1272
        %v1274 = vperm.slane %v1266, %v1273
        %v1275 = vrot.slane %v969, 4
        %v1276 = vsel %vm983, %v1275, %v921
        %v1277 = vrot.slane %v921, 4
        %v1278 = vsel %vm983, %v969, %v1277
        %v1280 = vunpack.c.l.s4 1983009808
        %v1281 = vunpack.c.0.s8 %v1280
        %v1282 = vperm.slane %v1276, %v1281
        %v1284 = vunpack.c.l.s4 1983009808
        %v1285 = vunpack.c.0.s8 %v1284
        %v1286 = vperm.slane %v1278, %v1285
        %v1287 = vrot.slane %v1282, 4
        %v1288 = vsel %vm983, %v1287, %v1270
        %v1289 = vrot.slane %v1270, 4
        %v1290 = vsel %vm983, %v1282, %v1289
        %v1292 = vunpack.c.l.s4 1934713408
        %v1293 = vunpack.c.0.s8 %v1292
        %v1294 = vperm.slane %v1288, %v1293
        %v1296 = vunpack.c.l.s4 1934713408
        %v1297 = vunpack.c.0.s8 %v1296
        %v1298 = vperm.slane %v1290, %v1297
        %v1299 = vrot.slane %v1286, 4
        %v1300 = vsel %vm983, %v1299, %v1274
        %v1301 = vrot.slane %v1274, 4
        %v1302 = vsel %vm983, %v1286, %v1301
        %v1304 = vunpack.c.l.s4 1934713408
        %v1305 = vunpack.c.0.s8 %v1304
        %v1306 = vperm.slane %v1300, %v1305
        %v1308 = vunpack.c.l.s4 1934713408
        %v1309 = vunpack.c.0.s8 %v1308
        %v1310 = vperm.slane %v1302, %v1309
        %v1311 = vrot.slane %v1294, 4
        %v1312 = vsel %vm983, 0.0, %v1311
        %v1313 = vrot.slane %v1298, 4
        %v1314 = vsel %vm983, 0.0, %v1313
        %v1315 = vrot.slane %v1306, 4
        %v1316 = vsel %vm983, 0.0, %v1315
        %v1317 = vrot.slane %v1310, 4
        %v1318 = vsel %vm983, 0.0, %v1317
        %v1319 = vrot.slane %v947, 4
        %v1320 = vsel %vm983, %v1319, %v815
        %v1321 = vrot.slane %v815, 4
        %v1322 = vsel %vm983, %v947, %v1321
        %v1324 = vunpack.c.l.s4 1983009808
        %v1325 = vunpack.c.0.s8 %v1324
        %v1326 = vperm.slane %v1320, %v1325
        %v1328 = vunpack.c.l.s4 1983009808
        %v1329 = vunpack.c.0.s8 %v1328
        %v1330 = vperm.slane %v1322, %v1329
        %v1331 = vrot.slane %v971, 4
        %v1332 = vsel %vm983, %v1331, %v923
        %v1333 = vrot.slane %v923, 4
        %v1334 = vsel %vm983, %v971, %v1333
        %v1336 = vunpack.c.l.s4 1983009808
        %v1337 = vunpack.c.0.s8 %v1336
        %v1338 = vperm.slane %v1332, %v1337
        %v1340 = vunpack.c.l.s4 1983009808
        %v1341 = vunpack.c.0.s8 %v1340
        %v1342 = vperm.slane %v1334, %v1341
        %v1343 = vrot.slane %v1338, 4
        %v1344 = vsel %vm983, %v1343, %v1326
        %v1345 = vrot.slane %v1326, 4
        %v1346 = vsel %vm983, %v1338, %v1345
        %v1348 = vunpack.c.l.s4 1934713408
        %v1349 = vunpack.c.0.s8 %v1348
        %v1350 = vperm.slane %v1344, %v1349
        %v1352 = vunpack.c.l.s4 1934713408
        %v1353 = vunpack.c.0.s8 %v1352
        %v1354 = vperm.slane %v1346, %v1353
        %v1355 = vrot.slane %v1342, 4
        %v1356 = vsel %vm983, %v1355, %v1330
        %v1357 = vrot.slane %v1330, 4
        %v1358 = vsel %vm983, %v1342, %v1357
        %v1360 = vunpack.c.l.s4 1934713408
        %v1361 = vunpack.c.0.s8 %v1360
        %v1362 = vperm.slane %v1356, %v1361
        %v1364 = vunpack.c.l.s4 1934713408
        %v1365 = vunpack.c.0.s8 %v1364
        %v1366 = vperm.slane %v1358, %v1365
        %v1367 = vrot.slane %v1350, 4
        %v1368 = vsel %vm983, 0.0, %v1367
        %v1369 = vrot.slane %v1354, 4
        %v1370 = vsel %vm983, 0.0, %v1369
        %v1371 = vrot.slane %v1362, 4
        %v1372 = vsel %vm983, 0.0, %v1371
        %v1373 = vrot.slane %v1366, 4
        %v1374 = vsel %vm983, 0.0, %v1373
        %v1375 = vrot.slane %v949, 4
        %v1376 = vsel %vm983, %v1375, %v818
        %v1377 = vrot.slane %v818, 4
        %v1378 = vsel %vm983, %v949, %v1377
        %v1380 = vunpack.c.l.s4 1983009808
        %v1381 = vunpack.c.0.s8 %v1380
        %v1382 = vperm.slane %v1376, %v1381
        %v1384 = vunpack.c.l.s4 1983009808
        %v1385 = vunpack.c.0.s8 %v1384
        %v1386 = vperm.slane %v1378, %v1385
        %v1387 = vrot.slane %v973, 4
        %v1388 = vsel %vm983, %v1387, %v925
        %v1389 = vrot.slane %v925, 4
        %v1390 = vsel %vm983, %v973, %v1389
        %v1392 = vunpack.c.l.s4 1983009808
        %v1393 = vunpack.c.0.s8 %v1392
        %v1394 = vperm.slane %v1388, %v1393
        %v1396 = vunpack.c.l.s4 1983009808
        %v1397 = vunpack.c.0.s8 %v1396
        %v1398 = vperm.slane %v1390, %v1397
        %v1399 = vrot.slane %v1394, 4
        %v1400 = vsel %vm983, %v1399, %v1382
        %v1401 = vrot.slane %v1382, 4
        %v1402 = vsel %vm983, %v1394, %v1401
        %v1404 = vunpack.c.l.s4 1934713408
        %v1405 = vunpack.c.0.s8 %v1404
        %v1406 = vperm.slane %v1400, %v1405
        %v1408 = vunpack.c.l.s4 1934713408
        %v1409 = vunpack.c.0.s8 %v1408
        %v1410 = vperm.slane %v1402, %v1409
        %v1411 = vrot.slane %v1398, 4
        %v1412 = vsel %vm983, %v1411, %v1386
        %v1413 = vrot.slane %v1386, 4
        %v1414 = vsel %vm983, %v1398, %v1413
        %v1416 = vunpack.c.l.s4 1934713408
        %v1417 = vunpack.c.0.s8 %v1416
        %v1418 = vperm.slane %v1412, %v1417
        %v1420 = vunpack.c.l.s4 1934713408
        %v1421 = vunpack.c.0.s8 %v1420
        %v1422 = vperm.slane %v1414, %v1421
        %v1423 = vrot.slane %v1406, 4
        %v1424 = vsel %vm983, 0.0, %v1423
        %v1425 = vrot.slane %v1410, 4
        %v1426 = vsel %vm983, 0.0, %v1425
        %v1427 = vrot.slane %v1418, 4
        %v1428 = vsel %vm983, 0.0, %v1427
        %v1429 = vrot.slane %v1422, 4
        %v1430 = vsel %vm983, 0.0, %v1429
        %v1431 = vsel %vm983, %v1033, %v1014
        %v1433 = vunpack.c.l.s4 1983009808
        %v1434 = vunpack.c.0.s8 %v1433
        %v1435 = vperm.slane %v1431, %v1434
        %v1436 = vrot.slane %v1034, 4
        %v1437 = vsel %vm983, %v1436, %v1032
        %v1439 = vunpack.c.l.s4 1983009808
        %v1440 = vunpack.c.0.s8 %v1439
        %v1441 = vperm.slane %v1437, %v1440
        %v1442 = vsel %vm983, %v1037, %v1026
        %v1444 = vunpack.c.l.s4 1983009808
        %v1445 = vunpack.c.0.s8 %v1444
        %v1446 = vperm.slane %v1442, %v1445
        %v1447 = vrot.slane %v1038, 4
        %v1448 = vsel %vm983, %v1447, %v1036
        %v1450 = vunpack.c.l.s4 1983009808
        %v1451 = vunpack.c.0.s8 %v1450
        %v1452 = vperm.slane %v1448, %v1451
        %v1453 = vrot.slane %v1441, 4
        %v1454 = vsel %vm983, %v1453, %v1435
        %v1455 = vrot.slane %v1435, 4
        %v1456 = vsel %vm983, %v1441, %v1455
        %v1458 = vunpack.c.l.s4 1934713408
        %v1459 = vunpack.c.0.s8 %v1458
        %v1460 = vperm.slane %v1454, %v1459
        %v1462 = vunpack.c.l.s4 1934713408
        %v1463 = vunpack.c.0.s8 %v1462
        %v1464 = vperm.slane %v1456, %v1463
        %v1465 = vrot.slane %v1452, 4
        %v1466 = vsel %vm983, %v1465, %v1446
        %v1467 = vrot.slane %v1446, 4
        %v1468 = vsel %vm983, %v1452, %v1467
        %v1470 = vunpack.c.l.s4 1934713408
        %v1471 = vunpack.c.0.s8 %v1470
        %v1472 = vperm.slane %v1466, %v1471
        %v1474 = vunpack.c.l.s4 1934713408
        %v1475 = vunpack.c.0.s8 %v1474
        %v1476 = vperm.slane %v1468, %v1475
        %v1477 = vrot.slane %v1472, 4
        %v1478 = vsel %vm983, %v1477, %v1460
        %v1479 = vrot.slane %v1460, 4
        %v1480 = vsel %vm983, %v1472, %v1479
        %v1481 = vrot.slane %v1476, 4
        %v1482 = vsel %vm983, %v1481, %v1464
        %v1483 = vrot.slane %v1464, 4
        %v1484 = vsel %vm983, %v1476, %v1483
        %v1485 = vsel %vm983, %v1089, %v1070
        %v1487 = vunpack.c.l.s4 1983009808
        %v1488 = vunpack.c.0.s8 %v1487
        %v1489 = vperm.slane %v1485, %v1488
        %v1490 = vrot.slane %v1090, 4
        %v1491 = vsel %vm983, %v1490, %v1088
        %v1493 = vunpack.c.l.s4 1983009808
        %v1494 = vunpack.c.0.s8 %v1493
        %v1495 = vperm.slane %v1491, %v1494
        %v1496 = vsel %vm983, %v1093, %v1082
        %v1498 = vunpack.c.l.s4 1983009808
        %v1499 = vunpack.c.0.s8 %v1498
        %v1500 = vperm.slane %v1496, %v1499
        %v1501 = vrot.slane %v1094, 4
        %v1502 = vsel %vm983, %v1501, %v1092
        %v1504 = vunpack.c.l.s4 1983009808
        %v1505 = vunpack.c.0.s8 %v1504
        %v1506 = vperm.slane %v1502, %v1505
        %v1507 = vrot.slane %v1495, 4
        %v1508 = vsel %vm983, %v1507, %v1489
        %v1509 = vrot.slane %v1489, 4
        %v1510 = vsel %vm983, %v1495, %v1509
        %v1512 = vunpack.c.l.s4 1934713408
        %v1513 = vunpack.c.0.s8 %v1512
        %v1514 = vperm.slane %v1508, %v1513
        %v1516 = vunpack.c.l.s4 1934713408
        %v1517 = vunpack.c.0.s8 %v1516
        %v1518 = vperm.slane %v1510, %v1517
        %v1519 = vrot.slane %v1506, 4
        %v1520 = vsel %vm983, %v1519, %v1500
        %v1521 = vrot.slane %v1500, 4
        %v1522 = vsel %vm983, %v1506, %v1521
        %v1524 = vunpack.c.l.s4 1934713408
        %v1525 = vunpack.c.0.s8 %v1524
        %v1526 = vperm.slane %v1520, %v1525
        %v1528 = vunpack.c.l.s4 1934713408
        %v1529 = vunpack.c.0.s8 %v1528
        %v1530 = vperm.slane %v1522, %v1529
        %v1531 = vrot.slane %v1526, 4
        %v1532 = vsel %vm983, %v1531, %v1514
        %v1533 = vrot.slane %v1514, 4
        %v1534 = vsel %vm983, %v1526, %v1533
        %v1535 = vrot.slane %v1530, 4
        %v1536 = vsel %vm983, %v1535, %v1518
        %v1537 = vrot.slane %v1518, 4
        %v1538 = vsel %vm983, %v1530, %v1537
        %v1539 = vsel %vm983, %v1145, %v1126
        %v1541 = vunpack.c.l.s4 1983009808
        %v1542 = vunpack.c.0.s8 %v1541
        %v1543 = vperm.slane %v1539, %v1542
        %v1544 = vrot.slane %v1146, 4
        %v1545 = vsel %vm983, %v1544, %v1144
        %v1547 = vunpack.c.l.s4 1983009808
        %v1548 = vunpack.c.0.s8 %v1547
        %v1549 = vperm.slane %v1545, %v1548
        %v1550 = vsel %vm983, %v1149, %v1138
        %v1552 = vunpack.c.l.s4 1983009808
        %v1553 = vunpack.c.0.s8 %v1552
        %v1554 = vperm.slane %v1550, %v1553
        %v1555 = vrot.slane %v1150, 4
        %v1556 = vsel %vm983, %v1555, %v1148
        %v1558 = vunpack.c.l.s4 1983009808
        %v1559 = vunpack.c.0.s8 %v1558
        %v1560 = vperm.slane %v1556, %v1559
        %v1561 = vrot.slane %v1549, 4
        %v1562 = vsel %vm983, %v1561, %v1543
        %v1563 = vrot.slane %v1543, 4
        %v1564 = vsel %vm983, %v1549, %v1563
        %v1566 = vunpack.c.l.s4 1934713408
        %v1567 = vunpack.c.0.s8 %v1566
        %v1568 = vperm.slane %v1562, %v1567
        %v1570 = vunpack.c.l.s4 1934713408
        %v1571 = vunpack.c.0.s8 %v1570
        %v1572 = vperm.slane %v1564, %v1571
        %v1573 = vrot.slane %v1560, 4
        %v1574 = vsel %vm983, %v1573, %v1554
        %v1575 = vrot.slane %v1554, 4
        %v1576 = vsel %vm983, %v1560, %v1575
        %v1578 = vunpack.c.l.s4 1934713408
        %v1579 = vunpack.c.0.s8 %v1578
        %v1580 = vperm.slane %v1574, %v1579
        %v1582 = vunpack.c.l.s4 1934713408
        %v1583 = vunpack.c.0.s8 %v1582
        %v1584 = vperm.slane %v1576, %v1583
        %v1585 = vrot.slane %v1580, 4
        %v1586 = vsel %vm983, %v1585, %v1568
        %v1587 = vrot.slane %v1568, 4
        %v1588 = vsel %vm983, %v1580, %v1587
        %v1589 = vrot.slane %v1584, 4
        %v1590 = vsel %vm983, %v1589, %v1572
        %v1591 = vrot.slane %v1572, 4
        %v1592 = vsel %vm983, %v1584, %v1591
        %v1593 = vsel %vm983, %v1201, %v1182
        %v1595 = vunpack.c.l.s4 1983009808
        %v1596 = vunpack.c.0.s8 %v1595
        %v1597 = vperm.slane %v1593, %v1596
        %v1598 = vrot.slane %v1202, 4
        %v1599 = vsel %vm983, %v1598, %v1200
        %v1601 = vunpack.c.l.s4 1983009808
        %v1602 = vunpack.c.0.s8 %v1601
        %v1603 = vperm.slane %v1599, %v1602
        %v1604 = vsel %vm983, %v1205, %v1194
        %v1606 = vunpack.c.l.s4 1983009808
        %v1607 = vunpack.c.0.s8 %v1606
        %v1608 = vperm.slane %v1604, %v1607
        %v1609 = vrot.slane %v1206, 4
        %v1610 = vsel %vm983, %v1609, %v1204
        %v1612 = vunpack.c.l.s4 1983009808
        %v1613 = vunpack.c.0.s8 %v1612
        %v1614 = vperm.slane %v1610, %v1613
        %v1615 = vrot.slane %v1603, 4
        %v1616 = vsel %vm983, %v1615, %v1597
        %v1617 = vrot.slane %v1597, 4
        %v1618 = vsel %vm983, %v1603, %v1617
        %v1620 = vunpack.c.l.s4 1934713408
        %v1621 = vunpack.c.0.s8 %v1620
        %v1622 = vperm.slane %v1616, %v1621
        %v1624 = vunpack.c.l.s4 1934713408
        %v1625 = vunpack.c.0.s8 %v1624
        %v1626 = vperm.slane %v1618, %v1625
        %v1627 = vrot.slane %v1614, 4
        %v1628 = vsel %vm983, %v1627, %v1608
        %v1629 = vrot.slane %v1608, 4
        %v1630 = vsel %vm983, %v1614, %v1629
        %v1632 = vunpack.c.l.s4 1934713408
        %v1633 = vunpack.c.0.s8 %v1632
        %v1634 = vperm.slane %v1628, %v1633
        %v1636 = vunpack.c.l.s4 1934713408
        %v1637 = vunpack.c.0.s8 %v1636
        %v1638 = vperm.slane %v1630, %v1637
        %v1639 = vrot.slane %v1634, 4
        %v1640 = vsel %vm983, %v1639, %v1622
        %v1641 = vrot.slane %v1622, 4
        %v1642 = vsel %vm983, %v1634, %v1641
        %v1643 = vrot.slane %v1638, 4
        %v1644 = vsel %vm983, %v1643, %v1626
        %v1645 = vrot.slane %v1626, 4
        %v1646 = vsel %vm983, %v1638, %v1645
        %v1647 = vsel %vm983, %v1257, %v1238
        %v1649 = vunpack.c.l.s4 1983009808
        %v1650 = vunpack.c.0.s8 %v1649
        %v1651 = vperm.slane %v1647, %v1650
        %v1652 = vrot.slane %v1258, 4
        %v1653 = vsel %vm983, %v1652, %v1256
        %v1655 = vunpack.c.l.s4 1983009808
        %v1656 = vunpack.c.0.s8 %v1655
        %v1657 = vperm.slane %v1653, %v1656
        %v1658 = vsel %vm983, %v1261, %v1250
        %v1660 = vunpack.c.l.s4 1983009808
        %v1661 = vunpack.c.0.s8 %v1660
        %v1662 = vperm.slane %v1658, %v1661
        %v1663 = vrot.slane %v1262, 4
        %v1664 = vsel %vm983, %v1663, %v1260
        %v1666 = vunpack.c.l.s4 1983009808
        %v1667 = vunpack.c.0.s8 %v1666
        %v1668 = vperm.slane %v1664, %v1667
        %v1669 = vrot.slane %v1657, 4
        %v1670 = vsel %vm983, %v1669, %v1651
        %v1671 = vrot.slane %v1651, 4
        %v1672 = vsel %vm983, %v1657, %v1671
        %v1674 = vunpack.c.l.s4 1934713408
        %v1675 = vunpack.c.0.s8 %v1674
        %v1676 = vperm.slane %v1670, %v1675
        %v1678 = vunpack.c.l.s4 1934713408
        %v1679 = vunpack.c.0.s8 %v1678
        %v1680 = vperm.slane %v1672, %v1679
        %v1681 = vrot.slane %v1668, 4
        %v1682 = vsel %vm983, %v1681, %v1662
        %v1683 = vrot.slane %v1662, 4
        %v1684 = vsel %vm983, %v1668, %v1683
        %v1686 = vunpack.c.l.s4 1934713408
        %v1687 = vunpack.c.0.s8 %v1686
        %v1688 = vperm.slane %v1682, %v1687
        %v1690 = vunpack.c.l.s4 1934713408
        %v1691 = vunpack.c.0.s8 %v1690
        %v1692 = vperm.slane %v1684, %v1691
        %v1693 = vrot.slane %v1688, 4
        %v1694 = vsel %vm983, %v1693, %v1676
        %v1695 = vrot.slane %v1676, 4
        %v1696 = vsel %vm983, %v1688, %v1695
        %v1697 = vrot.slane %v1692, 4
        %v1698 = vsel %vm983, %v1697, %v1680
        %v1699 = vrot.slane %v1680, 4
        %v1700 = vsel %vm983, %v1692, %v1699
        %v1701 = vsel %vm983, %v1313, %v1294
        %v1703 = vunpack.c.l.s4 1983009808
        %v1704 = vunpack.c.0.s8 %v1703
        %v1705 = vperm.slane %v1701, %v1704
        %v1706 = vrot.slane %v1314, 4
        %v1707 = vsel %vm983, %v1706, %v1312
        %v1709 = vunpack.c.l.s4 1983009808
        %v1710 = vunpack.c.0.s8 %v1709
        %v1711 = vperm.slane %v1707, %v1710
        %v1712 = vsel %vm983, %v1317, %v1306
        %v1714 = vunpack.c.l.s4 1983009808
        %v1715 = vunpack.c.0.s8 %v1714
        %v1716 = vperm.slane %v1712, %v1715
        %v1717 = vrot.slane %v1318, 4
        %v1718 = vsel %vm983, %v1717, %v1316
        %v1720 = vunpack.c.l.s4 1983009808
        %v1721 = vunpack.c.0.s8 %v1720
        %v1722 = vperm.slane %v1718, %v1721
        %v1723 = vrot.slane %v1711, 4
        %v1724 = vsel %vm983, %v1723, %v1705
        %v1725 = vrot.slane %v1705, 4
        %v1726 = vsel %vm983, %v1711, %v1725
        %v1728 = vunpack.c.l.s4 1934713408
        %v1729 = vunpack.c.0.s8 %v1728
        %v1730 = vperm.slane %v1724, %v1729
        %v1732 = vunpack.c.l.s4 1934713408
        %v1733 = vunpack.c.0.s8 %v1732
        %v1734 = vperm.slane %v1726, %v1733
        %v1735 = vrot.slane %v1722, 4
        %v1736 = vsel %vm983, %v1735, %v1716
        %v1737 = vrot.slane %v1716, 4
        %v1738 = vsel %vm983, %v1722, %v1737
        %v1740 = vunpack.c.l.s4 1934713408
        %v1741 = vunpack.c.0.s8 %v1740
        %v1742 = vperm.slane %v1736, %v1741
        %v1744 = vunpack.c.l.s4 1934713408
        %v1745 = vunpack.c.0.s8 %v1744
        %v1746 = vperm.slane %v1738, %v1745
        %v1747 = vrot.slane %v1742, 4
        %v1748 = vsel %vm983, %v1747, %v1730
        %v1749 = vrot.slane %v1730, 4
        %v1750 = vsel %vm983, %v1742, %v1749
        %v1751 = vrot.slane %v1746, 4
        %v1752 = vsel %vm983, %v1751, %v1734
        %v1753 = vrot.slane %v1734, 4
        %v1754 = vsel %vm983, %v1746, %v1753
        %v1755 = vsel %vm983, %v1369, %v1350
        %v1757 = vunpack.c.l.s4 1983009808
        %v1758 = vunpack.c.0.s8 %v1757
        %v1759 = vperm.slane %v1755, %v1758
        %v1760 = vrot.slane %v1370, 4
        %v1761 = vsel %vm983, %v1760, %v1368
        %v1763 = vunpack.c.l.s4 1983009808
        %v1764 = vunpack.c.0.s8 %v1763
        %v1765 = vperm.slane %v1761, %v1764
        %v1766 = vsel %vm983, %v1373, %v1362
        %v1768 = vunpack.c.l.s4 1983009808
        %v1769 = vunpack.c.0.s8 %v1768
        %v1770 = vperm.slane %v1766, %v1769
        %v1771 = vrot.slane %v1374, 4
        %v1772 = vsel %vm983, %v1771, %v1372
        %v1774 = vunpack.c.l.s4 1983009808
        %v1775 = vunpack.c.0.s8 %v1774
        %v1776 = vperm.slane %v1772, %v1775
        %v1777 = vrot.slane %v1765, 4
        %v1778 = vsel %vm983, %v1777, %v1759
        %v1779 = vrot.slane %v1759, 4
        %v1780 = vsel %vm983, %v1765, %v1779
        %v1782 = vunpack.c.l.s4 1934713408
        %v1783 = vunpack.c.0.s8 %v1782
        %v1784 = vperm.slane %v1778, %v1783
        %v1786 = vunpack.c.l.s4 1934713408
        %v1787 = vunpack.c.0.s8 %v1786
        %v1788 = vperm.slane %v1780, %v1787
        %v1789 = vrot.slane %v1776, 4
        %v1790 = vsel %vm983, %v1789, %v1770
        %v1791 = vrot.slane %v1770, 4
        %v1792 = vsel %vm983, %v1776, %v1791
        %v1794 = vunpack.c.l.s4 1934713408
        %v1795 = vunpack.c.0.s8 %v1794
        %v1796 = vperm.slane %v1790, %v1795
        %v1798 = vunpack.c.l.s4 1934713408
        %v1799 = vunpack.c.0.s8 %v1798
        %v1800 = vperm.slane %v1792, %v1799
        %v1801 = vrot.slane %v1796, 4
        %v1802 = vsel %vm983, %v1801, %v1784
        %v1803 = vrot.slane %v1784, 4
        %v1804 = vsel %vm983, %v1796, %v1803
        %v1805 = vrot.slane %v1800, 4
        %v1806 = vsel %vm983, %v1805, %v1788
        %v1807 = vrot.slane %v1788, 4
        %v1808 = vsel %vm983, %v1800, %v1807
        %v1809 = vsel %vm983, %v1425, %v1406
        %v1811 = vunpack.c.l.s4 1983009808
        %v1812 = vunpack.c.0.s8 %v1811
        %v1813 = vperm.slane %v1809, %v1812
        %v1814 = vrot.slane %v1426, 4
        %v1815 = vsel %vm983, %v1814, %v1424
        %v1817 = vunpack.c.l.s4 1983009808
        %v1818 = vunpack.c.0.s8 %v1817
        %v1819 = vperm.slane %v1815, %v1818
        %v1820 = vsel %vm983, %v1429, %v1418
        %v1822 = vunpack.c.l.s4 1983009808
        %v1823 = vunpack.c.0.s8 %v1822
        %v1824 = vperm.slane %v1820, %v1823
        %v1825 = vrot.slane %v1430, 4
        %v1826 = vsel %vm983, %v1825, %v1428
        %v1828 = vunpack.c.l.s4 1983009808
        %v1829 = vunpack.c.0.s8 %v1828
        %v1830 = vperm.slane %v1826, %v1829
        %v1831 = vrot.slane %v1819, 4
        %v1832 = vsel %vm983, %v1831, %v1813
        %v1833 = vrot.slane %v1813, 4
        %v1834 = vsel %vm983, %v1819, %v1833
        %v1836 = vunpack.c.l.s4 1934713408
        %v1837 = vunpack.c.0.s8 %v1836
        %v1838 = vperm.slane %v1832, %v1837
        %v1840 = vunpack.c.l.s4 1934713408
        %v1841 = vunpack.c.0.s8 %v1840
        %v1842 = vperm.slane %v1834, %v1841
        %v1843 = vrot.slane %v1830, 4
        %v1844 = vsel %vm983, %v1843, %v1824
        %v1845 = vrot.slane %v1824, 4
        %v1846 = vsel %vm983, %v1830, %v1845
        %v1848 = vunpack.c.l.s4 1934713408
        %v1849 = vunpack.c.0.s8 %v1848
        %v1850 = vperm.slane %v1844, %v1849
        %v1852 = vunpack.c.l.s4 1934713408
        %v1853 = vunpack.c.0.s8 %v1852
        %v1854 = vperm.slane %v1846, %v1853
        %v1855 = vrot.slane %v1850, 4
        %v1856 = vsel %vm983, %v1855, %v1838
        %v1857 = vrot.slane %v1838, 4
        %v1858 = vsel %vm983, %v1850, %v1857
        %v1859 = vrot.slane %v1854, 4
        %v1860 = vsel %vm983, %v1859, %v1842
        %v1861 = vrot.slane %v1842, 4
        %v1862 = vsel %vm983, %v1854, %v1861
        %1871 = vrot.lane.b32.xlu0 %v838, 96
        %v1872 = vpop.permute.xlu0 %1871
        %1873 = vrot.lane.b32.xlu0 %v841, 96
        %v1874 = vpop.permute.xlu0 %1873
        %1875 = vrot.lane.b32.xlu0 %v844, 96
        %v1876 = vpop.permute.xlu0 %1875
        %1877 = vrot.lane.b32.xlu0 %v847, 96
        %v1878 = vpop.permute.xlu0 %1877
        %1879 = vrot.lane.b32.xlu0 %v850, 96
        %v1880 = vpop.permute.xlu0 %1879
        %1881 = vrot.lane.b32.xlu0 %v853, 96
        %v1882 = vpop.permute.xlu0 %1881
        %1883 = vrot.lane.b32.xlu0 %v856, 96
        %v1884 = vpop.permute.xlu0 %1883
        %1885 = vrot.lane.b32.xlu0 %v859, 96
        %v1886 = vpop.permute.xlu0 %1885
        %1895 = vrot.lane.b32.xlu0 %v838, 64
        %v1896 = vpop.permute.xlu0 %1895
        %1897 = vrot.lane.b32.xlu0 %v841, 64
        %v1898 = vpop.permute.xlu0 %1897
        %1899 = vrot.lane.b32.xlu0 %v844, 64
        %v1900 = vpop.permute.xlu0 %1899
        %1901 = vrot.lane.b32.xlu0 %v847, 64
        %v1902 = vpop.permute.xlu0 %1901
        %1903 = vrot.lane.b32.xlu0 %v850, 64
        %v1904 = vpop.permute.xlu0 %1903
        %1905 = vrot.lane.b32.xlu0 %v853, 64
        %v1906 = vpop.permute.xlu0 %1905
        %1907 = vrot.lane.b32.xlu0 %v856, 64
        %v1908 = vpop.permute.xlu0 %1907
        %1909 = vrot.lane.b32.xlu0 %v859, 64
        %v1910 = vpop.permute.xlu0 %1909
        %1919 = vrot.lane.b32.xlu0 %v838, 32
        %v1920 = vpop.permute.xlu0 %1919
        %1921 = vrot.lane.b32.xlu0 %v841, 32
        %v1922 = vpop.permute.xlu0 %1921
        %1923 = vrot.lane.b32.xlu0 %v844, 32
        %v1924 = vpop.permute.xlu0 %1923
        %1925 = vrot.lane.b32.xlu0 %v847, 32
        %v1926 = vpop.permute.xlu0 %1925
        %1927 = vrot.lane.b32.xlu0 %v850, 32
        %v1928 = vpop.permute.xlu0 %1927
        %1929 = vrot.lane.b32.xlu0 %v853, 32
        %v1930 = vpop.permute.xlu0 %1929
        %1931 = vrot.lane.b32.xlu0 %v856, 32
        %v1932 = vpop.permute.xlu0 %1931
        %1933 = vrot.lane.b32.xlu0 %v859, 32
        %v1934 = vpop.permute.xlu0 %1933
        %v1943 = vrot.slane %v1896, 4
        %v1944 = vsel %vm983, %v1943, %v838
        %v1945 = vrot.slane %v838, 4
        %v1946 = vsel %vm983, %v1896, %v1945
        %v1948 = vunpack.c.l.s4 1983009808
        %v1949 = vunpack.c.0.s8 %v1948
        %v1950 = vperm.slane %v1944, %v1949
        %v1952 = vunpack.c.l.s4 1983009808
        %v1953 = vunpack.c.0.s8 %v1952
        %v1954 = vperm.slane %v1946, %v1953
        %v1955 = vrot.slane %v1920, 4
        %v1956 = vsel %vm983, %v1955, %v1872
        %v1957 = vrot.slane %v1872, 4
        %v1958 = vsel %vm983, %v1920, %v1957
        %v1960 = vunpack.c.l.s4 1983009808
        %v1961 = vunpack.c.0.s8 %v1960
        %v1962 = vperm.slane %v1956, %v1961
        %v1964 = vunpack.c.l.s4 1983009808
        %v1965 = vunpack.c.0.s8 %v1964
        %v1966 = vperm.slane %v1958, %v1965
        %v1967 = vrot.slane %v1962, 4
        %v1968 = vsel %vm983, %v1967, %v1950
        %v1969 = vrot.slane %v1950, 4
        %v1970 = vsel %vm983, %v1962, %v1969
        %v1972 = vunpack.c.l.s4 1934713408
        %v1973 = vunpack.c.0.s8 %v1972
        %v1974 = vperm.slane %v1968, %v1973
        %v1976 = vunpack.c.l.s4 1934713408
        %v1977 = vunpack.c.0.s8 %v1976
        %v1978 = vperm.slane %v1970, %v1977
        %v1979 = vrot.slane %v1966, 4
        %v1980 = vsel %vm983, %v1979, %v1954
        %v1981 = vrot.slane %v1954, 4
        %v1982 = vsel %vm983, %v1966, %v1981
        %v1984 = vunpack.c.l.s4 1934713408
        %v1985 = vunpack.c.0.s8 %v1984
        %v1986 = vperm.slane %v1980, %v1985
        %v1988 = vunpack.c.l.s4 1934713408
        %v1989 = vunpack.c.0.s8 %v1988
        %v1990 = vperm.slane %v1982, %v1989
        %v1991 = vrot.slane %v1974, 4
        %v1992 = vsel %vm983, 0.0, %v1991
        %v1993 = vrot.slane %v1978, 4
        %v1994 = vsel %vm983, 0.0, %v1993
        %v1995 = vrot.slane %v1986, 4
        %v1996 = vsel %vm983, 0.0, %v1995
        %v1997 = vrot.slane %v1990, 4
        %v1998 = vsel %vm983, 0.0, %v1997
        %v1999 = vrot.slane %v1898, 4
        %v2000 = vsel %vm983, %v1999, %v841
        %v2001 = vrot.slane %v841, 4
        %v2002 = vsel %vm983, %v1898, %v2001
        %v2004 = vunpack.c.l.s4 1983009808
        %v2005 = vunpack.c.0.s8 %v2004
        %v2006 = vperm.slane %v2000, %v2005
        %v2008 = vunpack.c.l.s4 1983009808
        %v2009 = vunpack.c.0.s8 %v2008
        %v2010 = vperm.slane %v2002, %v2009
        %v2011 = vrot.slane %v1922, 4
        %v2012 = vsel %vm983, %v2011, %v1874
        %v2013 = vrot.slane %v1874, 4
        %v2014 = vsel %vm983, %v1922, %v2013
        %v2016 = vunpack.c.l.s4 1983009808
        %v2017 = vunpack.c.0.s8 %v2016
        %v2018 = vperm.slane %v2012, %v2017
        %v2020 = vunpack.c.l.s4 1983009808
        %v2021 = vunpack.c.0.s8 %v2020
        %v2022 = vperm.slane %v2014, %v2021
        %v2023 = vrot.slane %v2018, 4
        %v2024 = vsel %vm983, %v2023, %v2006
        %v2025 = vrot.slane %v2006, 4
        %v2026 = vsel %vm983, %v2018, %v2025
        %v2028 = vunpack.c.l.s4 1934713408
        %v2029 = vunpack.c.0.s8 %v2028
        %v2030 = vperm.slane %v2024, %v2029
        %v2032 = vunpack.c.l.s4 1934713408
        %v2033 = vunpack.c.0.s8 %v2032
        %v2034 = vperm.slane %v2026, %v2033
        %v2035 = vrot.slane %v2022, 4
        %v2036 = vsel %vm983, %v2035, %v2010
        %v2037 = vrot.slane %v2010, 4
        %v2038 = vsel %vm983, %v2022, %v2037
        %v2040 = vunpack.c.l.s4 1934713408
        %v2041 = vunpack.c.0.s8 %v2040
        %v2042 = vperm.slane %v2036, %v2041
        %v2044 = vunpack.c.l.s4 1934713408
        %v2045 = vunpack.c.0.s8 %v2044
        %v2046 = vperm.slane %v2038, %v2045
        %v2047 = vrot.slane %v2030, 4
        %v2048 = vsel %vm983, 0.0, %v2047
        %v2049 = vrot.slane %v2034, 4
        %v2050 = vsel %vm983, 0.0, %v2049
        %v2051 = vrot.slane %v2042, 4
        %v2052 = vsel %vm983, 0.0, %v2051
        %v2053 = vrot.slane %v2046, 4
        %v2054 = vsel %vm983, 0.0, %v2053
        %v2055 = vrot.slane %v1900, 4
        %v2056 = vsel %vm983, %v2055, %v844
        %v2057 = vrot.slane %v844, 4
        %v2058 = vsel %vm983, %v1900, %v2057
        %v2060 = vunpack.c.l.s4 1983009808
        %v2061 = vunpack.c.0.s8 %v2060
        %v2062 = vperm.slane %v2056, %v2061
        %v2064 = vunpack.c.l.s4 1983009808
        %v2065 = vunpack.c.0.s8 %v2064
        %v2066 = vperm.slane %v2058, %v2065
        %v2067 = vrot.slane %v1924, 4
        %v2068 = vsel %vm983, %v2067, %v1876
        %v2069 = vrot.slane %v1876, 4
        %v2070 = vsel %vm983, %v1924, %v2069
        %v2072 = vunpack.c.l.s4 1983009808
        %v2073 = vunpack.c.0.s8 %v2072
        %v2074 = vperm.slane %v2068, %v2073
        %v2076 = vunpack.c.l.s4 1983009808
        %v2077 = vunpack.c.0.s8 %v2076
        %v2078 = vperm.slane %v2070, %v2077
        %v2079 = vrot.slane %v2074, 4
        %v2080 = vsel %vm983, %v2079, %v2062
        %v2081 = vrot.slane %v2062, 4
        %v2082 = vsel %vm983, %v2074, %v2081
        %v2084 = vunpack.c.l.s4 1934713408
        %v2085 = vunpack.c.0.s8 %v2084
        %v2086 = vperm.slane %v2080, %v2085
        %v2088 = vunpack.c.l.s4 1934713408
        %v2089 = vunpack.c.0.s8 %v2088
        %v2090 = vperm.slane %v2082, %v2089
        %v2091 = vrot.slane %v2078, 4
        %v2092 = vsel %vm983, %v2091, %v2066
        %v2093 = vrot.slane %v2066, 4
        %v2094 = vsel %vm983, %v2078, %v2093
        %v2096 = vunpack.c.l.s4 1934713408
        %v2097 = vunpack.c.0.s8 %v2096
        %v2098 = vperm.slane %v2092, %v2097
        %v2100 = vunpack.c.l.s4 1934713408
        %v2101 = vunpack.c.0.s8 %v2100
        %v2102 = vperm.slane %v2094, %v2101
        %v2103 = vrot.slane %v2086, 4
        %v2104 = vsel %vm983, 0.0, %v2103
        %v2105 = vrot.slane %v2090, 4
        %v2106 = vsel %vm983, 0.0, %v2105
        %v2107 = vrot.slane %v2098, 4
        %v2108 = vsel %vm983, 0.0, %v2107
        %v2109 = vrot.slane %v2102, 4
        %v2110 = vsel %vm983, 0.0, %v2109
        %v2111 = vrot.slane %v1902, 4
        %v2112 = vsel %vm983, %v2111, %v847
        %v2113 = vrot.slane %v847, 4
        %v2114 = vsel %vm983, %v1902, %v2113
        %v2116 = vunpack.c.l.s4 1983009808
        %v2117 = vunpack.c.0.s8 %v2116
        %v2118 = vperm.slane %v2112, %v2117
        %v2120 = vunpack.c.l.s4 1983009808
        %v2121 = vunpack.c.0.s8 %v2120
        %v2122 = vperm.slane %v2114, %v2121
        %v2123 = vrot.slane %v1926, 4
        %v2124 = vsel %vm983, %v2123, %v1878
        %v2125 = vrot.slane %v1878, 4
        %v2126 = vsel %vm983, %v1926, %v2125
        %v2128 = vunpack.c.l.s4 1983009808
        %v2129 = vunpack.c.0.s8 %v2128
        %v2130 = vperm.slane %v2124, %v2129
        %v2132 = vunpack.c.l.s4 1983009808
        %v2133 = vunpack.c.0.s8 %v2132
        %v2134 = vperm.slane %v2126, %v2133
        %v2135 = vrot.slane %v2130, 4
        %v2136 = vsel %vm983, %v2135, %v2118
        %v2137 = vrot.slane %v2118, 4
        %v2138 = vsel %vm983, %v2130, %v2137
        %v2140 = vunpack.c.l.s4 1934713408
        %v2141 = vunpack.c.0.s8 %v2140
        %v2142 = vperm.slane %v2136, %v2141
        %v2144 = vunpack.c.l.s4 1934713408
        %v2145 = vunpack.c.0.s8 %v2144
        %v2146 = vperm.slane %v2138, %v2145
        %v2147 = vrot.slane %v2134, 4
        %v2148 = vsel %vm983, %v2147, %v2122
        %v2149 = vrot.slane %v2122, 4
        %v2150 = vsel %vm983, %v2134, %v2149
        %v2152 = vunpack.c.l.s4 1934713408
        %v2153 = vunpack.c.0.s8 %v2152
        %v2154 = vperm.slane %v2148, %v2153
        %v2156 = vunpack.c.l.s4 1934713408
        %v2157 = vunpack.c.0.s8 %v2156
        %v2158 = vperm.slane %v2150, %v2157
        %v2159 = vrot.slane %v2142, 4
        %v2160 = vsel %vm983, 0.0, %v2159
        %v2161 = vrot.slane %v2146, 4
        %v2162 = vsel %vm983, 0.0, %v2161
        %v2163 = vrot.slane %v2154, 4
        %v2164 = vsel %vm983, 0.0, %v2163
        %v2165 = vrot.slane %v2158, 4
        %v2166 = vsel %vm983, 0.0, %v2165
        %v2167 = vrot.slane %v1904, 4
        %v2168 = vsel %vm983, %v2167, %v850
        %v2169 = vrot.slane %v850, 4
        %v2170 = vsel %vm983, %v1904, %v2169
        %v2172 = vunpack.c.l.s4 1983009808
        %v2173 = vunpack.c.0.s8 %v2172
        %v2174 = vperm.slane %v2168, %v2173
        %v2176 = vunpack.c.l.s4 1983009808
        %v2177 = vunpack.c.0.s8 %v2176
        %v2178 = vperm.slane %v2170, %v2177
        %v2179 = vrot.slane %v1928, 4
        %v2180 = vsel %vm983, %v2179, %v1880
        %v2181 = vrot.slane %v1880, 4
        %v2182 = vsel %vm983, %v1928, %v2181
        %v2184 = vunpack.c.l.s4 1983009808
        %v2185 = vunpack.c.0.s8 %v2184
        %v2186 = vperm.slane %v2180, %v2185
        %v2188 = vunpack.c.l.s4 1983009808
        %v2189 = vunpack.c.0.s8 %v2188
        %v2190 = vperm.slane %v2182, %v2189
        %v2191 = vrot.slane %v2186, 4
        %v2192 = vsel %vm983, %v2191, %v2174
        %v2193 = vrot.slane %v2174, 4
        %v2194 = vsel %vm983, %v2186, %v2193
        %v2196 = vunpack.c.l.s4 1934713408
        %v2197 = vunpack.c.0.s8 %v2196
        %v2198 = vperm.slane %v2192, %v2197
        %v2200 = vunpack.c.l.s4 1934713408
        %v2201 = vunpack.c.0.s8 %v2200
        %v2202 = vperm.slane %v2194, %v2201
        %v2203 = vrot.slane %v2190, 4
        %v2204 = vsel %vm983, %v2203, %v2178
        %v2205 = vrot.slane %v2178, 4
        %v2206 = vsel %vm983, %v2190, %v2205
        %v2208 = vunpack.c.l.s4 1934713408
        %v2209 = vunpack.c.0.s8 %v2208
        %v2210 = vperm.slane %v2204, %v2209
        %v2212 = vunpack.c.l.s4 1934713408
        %v2213 = vunpack.c.0.s8 %v2212
        %v2214 = vperm.slane %v2206, %v2213
        %v2215 = vrot.slane %v2198, 4
        %v2216 = vsel %vm983, 0.0, %v2215
        %v2217 = vrot.slane %v2202, 4
        %v2218 = vsel %vm983, 0.0, %v2217
        %v2219 = vrot.slane %v2210, 4
        %v2220 = vsel %vm983, 0.0, %v2219
        %v2221 = vrot.slane %v2214, 4
        %v2222 = vsel %vm983, 0.0, %v2221
        %v2223 = vrot.slane %v1906, 4
        %v2224 = vsel %vm983, %v2223, %v853
        %v2225 = vrot.slane %v853, 4
        %v2226 = vsel %vm983, %v1906, %v2225
        %v2228 = vunpack.c.l.s4 1983009808
        %v2229 = vunpack.c.0.s8 %v2228
        %v2230 = vperm.slane %v2224, %v2229
        %v2232 = vunpack.c.l.s4 1983009808
        %v2233 = vunpack.c.0.s8 %v2232
        %v2234 = vperm.slane %v2226, %v2233
        %v2235 = vrot.slane %v1930, 4
        %v2236 = vsel %vm983, %v2235, %v1882
        %v2237 = vrot.slane %v1882, 4
        %v2238 = vsel %vm983, %v1930, %v2237
        %v2240 = vunpack.c.l.s4 1983009808
        %v2241 = vunpack.c.0.s8 %v2240
        %v2242 = vperm.slane %v2236, %v2241
        %v2244 = vunpack.c.l.s4 1983009808
        %v2245 = vunpack.c.0.s8 %v2244
        %v2246 = vperm.slane %v2238, %v2245
        %v2247 = vrot.slane %v2242, 4
        %v2248 = vsel %vm983, %v2247, %v2230
        %v2249 = vrot.slane %v2230, 4
        %v2250 = vsel %vm983, %v2242, %v2249
        %v2252 = vunpack.c.l.s4 1934713408
        %v2253 = vunpack.c.0.s8 %v2252
        %v2254 = vperm.slane %v2248, %v2253
        %v2256 = vunpack.c.l.s4 1934713408
        %v2257 = vunpack.c.0.s8 %v2256
        %v2258 = vperm.slane %v2250, %v2257
        %v2259 = vrot.slane %v2246, 4
        %v2260 = vsel %vm983, %v2259, %v2234
        %v2261 = vrot.slane %v2234, 4
        %v2262 = vsel %vm983, %v2246, %v2261
        %v2264 = vunpack.c.l.s4 1934713408
        %v2265 = vunpack.c.0.s8 %v2264
        %v2266 = vperm.slane %v2260, %v2265
        %v2268 = vunpack.c.l.s4 1934713408
        %v2269 = vunpack.c.0.s8 %v2268
        %v2270 = vperm.slane %v2262, %v2269
        %v2271 = vrot.slane %v2254, 4
        %v2272 = vsel %vm983, 0.0, %v2271
        %v2273 = vrot.slane %v2258, 4
        %v2274 = vsel %vm983, 0.0, %v2273
        %v2275 = vrot.slane %v2266, 4
        %v2276 = vsel %vm983, 0.0, %v2275
        %v2277 = vrot.slane %v2270, 4
        %v2278 = vsel %vm983, 0.0, %v2277
        %v2279 = vrot.slane %v1908, 4
        %v2280 = vsel %vm983, %v2279, %v856
        %v2281 = vrot.slane %v856, 4
        %v2282 = vsel %vm983, %v1908, %v2281
        %v2284 = vunpack.c.l.s4 1983009808
        %v2285 = vunpack.c.0.s8 %v2284
        %v2286 = vperm.slane %v2280, %v2285
        %v2288 = vunpack.c.l.s4 1983009808
        %v2289 = vunpack.c.0.s8 %v2288
        %v2290 = vperm.slane %v2282, %v2289
        %v2291 = vrot.slane %v1932, 4
        %v2292 = vsel %vm983, %v2291, %v1884
        %v2293 = vrot.slane %v1884, 4
        %v2294 = vsel %vm983, %v1932, %v2293
        %v2296 = vunpack.c.l.s4 1983009808
        %v2297 = vunpack.c.0.s8 %v2296
        %v2298 = vperm.slane %v2292, %v2297
        %v2300 = vunpack.c.l.s4 1983009808
        %v2301 = vunpack.c.0.s8 %v2300
        %v2302 = vperm.slane %v2294, %v2301
        %v2303 = vrot.slane %v2298, 4
        %v2304 = vsel %vm983, %v2303, %v2286
        %v2305 = vrot.slane %v2286, 4
        %v2306 = vsel %vm983, %v2298, %v2305
        %v2308 = vunpack.c.l.s4 1934713408
        %v2309 = vunpack.c.0.s8 %v2308
        %v2310 = vperm.slane %v2304, %v2309
        %v2312 = vunpack.c.l.s4 1934713408
        %v2313 = vunpack.c.0.s8 %v2312
        %v2314 = vperm.slane %v2306, %v2313
        %v2315 = vrot.slane %v2302, 4
        %v2316 = vsel %vm983, %v2315, %v2290
        %v2317 = vrot.slane %v2290, 4
        %v2318 = vsel %vm983, %v2302, %v2317
        %v2320 = vunpack.c.l.s4 1934713408
        %v2321 = vunpack.c.0.s8 %v2320
        %v2322 = vperm.slane %v2316, %v2321
        %v2324 = vunpack.c.l.s4 1934713408
        %v2325 = vunpack.c.0.s8 %v2324
        %v2326 = vperm.slane %v2318, %v2325
        %v2327 = vrot.slane %v2310, 4
        %v2328 = vsel %vm983, 0.0, %v2327
        %v2329 = vrot.slane %v2314, 4
        %v2330 = vsel %vm983, 0.0, %v2329
        %v2331 = vrot.slane %v2322, 4
        %v2332 = vsel %vm983, 0.0, %v2331
        %v2333 = vrot.slane %v2326, 4
        %v2334 = vsel %vm983, 0.0, %v2333
        %v2335 = vrot.slane %v1910, 4
        %v2336 = vsel %vm983, %v2335, %v859
        %v2337 = vrot.slane %v859, 4
        %v2338 = vsel %vm983, %v1910, %v2337
        %v2340 = vunpack.c.l.s4 1983009808
        %v2341 = vunpack.c.0.s8 %v2340
        %v2342 = vperm.slane %v2336, %v2341
        %v2344 = vunpack.c.l.s4 1983009808
        %v2345 = vunpack.c.0.s8 %v2344
        %v2346 = vperm.slane %v2338, %v2345
        %v2347 = vrot.slane %v1934, 4
        %v2348 = vsel %vm983, %v2347, %v1886
        %v2349 = vrot.slane %v1886, 4
        %v2350 = vsel %vm983, %v1934, %v2349
        %v2352 = vunpack.c.l.s4 1983009808
        %v2353 = vunpack.c.0.s8 %v2352
        %v2354 = vperm.slane %v2348, %v2353
        %v2356 = vunpack.c.l.s4 1983009808
        %v2357 = vunpack.c.0.s8 %v2356
        %v2358 = vperm.slane %v2350, %v2357
        %v2359 = vrot.slane %v2354, 4
        %v2360 = vsel %vm983, %v2359, %v2342
        %v2361 = vrot.slane %v2342, 4
        %v2362 = vsel %vm983, %v2354, %v2361
        %v2364 = vunpack.c.l.s4 1934713408
        %v2365 = vunpack.c.0.s8 %v2364
        %v2366 = vperm.slane %v2360, %v2365
        %v2368 = vunpack.c.l.s4 1934713408
        %v2369 = vunpack.c.0.s8 %v2368
        %v2370 = vperm.slane %v2362, %v2369
        %v2371 = vrot.slane %v2358, 4
        %v2372 = vsel %vm983, %v2371, %v2346
        %v2373 = vrot.slane %v2346, 4
        %v2374 = vsel %vm983, %v2358, %v2373
        %v2376 = vunpack.c.l.s4 1934713408
        %v2377 = vunpack.c.0.s8 %v2376
        %v2378 = vperm.slane %v2372, %v2377
        %v2380 = vunpack.c.l.s4 1934713408
        %v2381 = vunpack.c.0.s8 %v2380
        %v2382 = vperm.slane %v2374, %v2381
        %v2383 = vrot.slane %v2366, 4
        %v2384 = vsel %vm983, 0.0, %v2383
        %v2385 = vrot.slane %v2370, 4
        %v2386 = vsel %vm983, 0.0, %v2385
        %v2387 = vrot.slane %v2378, 4
        %v2388 = vsel %vm983, 0.0, %v2387
        %v2389 = vrot.slane %v2382, 4
        %v2390 = vsel %vm983, 0.0, %v2389
        %v2391 = vsel %vm983, %v1993, %v1974
        %v2393 = vunpack.c.l.s4 1983009808
        %v2394 = vunpack.c.0.s8 %v2393
        %v2395 = vperm.slane %v2391, %v2394
        %v2396 = vrot.slane %v1994, 4
        %v2397 = vsel %vm983, %v2396, %v1992
        %v2399 = vunpack.c.l.s4 1983009808
        %v2400 = vunpack.c.0.s8 %v2399
        %v2401 = vperm.slane %v2397, %v2400
        %v2402 = vsel %vm983, %v1997, %v1986
        %v2404 = vunpack.c.l.s4 1983009808
        %v2405 = vunpack.c.0.s8 %v2404
        %v2406 = vperm.slane %v2402, %v2405
        %v2407 = vrot.slane %v1998, 4
        %v2408 = vsel %vm983, %v2407, %v1996
        %v2410 = vunpack.c.l.s4 1983009808
        %v2411 = vunpack.c.0.s8 %v2410
        %v2412 = vperm.slane %v2408, %v2411
        %v2413 = vrot.slane %v2401, 4
        %v2414 = vsel %vm983, %v2413, %v2395
        %v2415 = vrot.slane %v2395, 4
        %v2416 = vsel %vm983, %v2401, %v2415
        %v2418 = vunpack.c.l.s4 1934713408
        %v2419 = vunpack.c.0.s8 %v2418
        %v2420 = vperm.slane %v2414, %v2419
        %v2422 = vunpack.c.l.s4 1934713408
        %v2423 = vunpack.c.0.s8 %v2422
        %v2424 = vperm.slane %v2416, %v2423
        %v2425 = vrot.slane %v2412, 4
        %v2426 = vsel %vm983, %v2425, %v2406
        %v2427 = vrot.slane %v2406, 4
        %v2428 = vsel %vm983, %v2412, %v2427
        %v2430 = vunpack.c.l.s4 1934713408
        %v2431 = vunpack.c.0.s8 %v2430
        %v2432 = vperm.slane %v2426, %v2431
        %v2434 = vunpack.c.l.s4 1934713408
        %v2435 = vunpack.c.0.s8 %v2434
        %v2436 = vperm.slane %v2428, %v2435
        %v2437 = vrot.slane %v2432, 4
        %v2438 = vsel %vm983, %v2437, %v2420
        %v2439 = vrot.slane %v2420, 4
        %v2440 = vsel %vm983, %v2432, %v2439
        %v2441 = vrot.slane %v2436, 4
        %v2442 = vsel %vm983, %v2441, %v2424
        %v2443 = vrot.slane %v2424, 4
        %v2444 = vsel %vm983, %v2436, %v2443
        %v2445 = vsel %vm983, %v2049, %v2030
        %v2447 = vunpack.c.l.s4 1983009808
        %v2448 = vunpack.c.0.s8 %v2447
        %v2449 = vperm.slane %v2445, %v2448
        %v2450 = vrot.slane %v2050, 4
        %v2451 = vsel %vm983, %v2450, %v2048
        %v2453 = vunpack.c.l.s4 1983009808
        %v2454 = vunpack.c.0.s8 %v2453
        %v2455 = vperm.slane %v2451, %v2454
        %v2456 = vsel %vm983, %v2053, %v2042
        %v2458 = vunpack.c.l.s4 1983009808
        %v2459 = vunpack.c.0.s8 %v2458
        %v2460 = vperm.slane %v2456, %v2459
        %v2461 = vrot.slane %v2054, 4
        %v2462 = vsel %vm983, %v2461, %v2052
        %v2464 = vunpack.c.l.s4 1983009808
        %v2465 = vunpack.c.0.s8 %v2464
        %v2466 = vperm.slane %v2462, %v2465
        %v2467 = vrot.slane %v2455, 4
        %v2468 = vsel %vm983, %v2467, %v2449
        %v2469 = vrot.slane %v2449, 4
        %v2470 = vsel %vm983, %v2455, %v2469
        %v2472 = vunpack.c.l.s4 1934713408
        %v2473 = vunpack.c.0.s8 %v2472
        %v2474 = vperm.slane %v2468, %v2473
        %v2476 = vunpack.c.l.s4 1934713408
        %v2477 = vunpack.c.0.s8 %v2476
        %v2478 = vperm.slane %v2470, %v2477
        %v2479 = vrot.slane %v2466, 4
        %v2480 = vsel %vm983, %v2479, %v2460
        %v2481 = vrot.slane %v2460, 4
        %v2482 = vsel %vm983, %v2466, %v2481
        %v2484 = vunpack.c.l.s4 1934713408
        %v2485 = vunpack.c.0.s8 %v2484
        %v2486 = vperm.slane %v2480, %v2485
        %v2488 = vunpack.c.l.s4 1934713408
        %v2489 = vunpack.c.0.s8 %v2488
        %v2490 = vperm.slane %v2482, %v2489
        %v2491 = vrot.slane %v2486, 4
        %v2492 = vsel %vm983, %v2491, %v2474
        %v2493 = vrot.slane %v2474, 4
        %v2494 = vsel %vm983, %v2486, %v2493
        %v2495 = vrot.slane %v2490, 4
        %v2496 = vsel %vm983, %v2495, %v2478
        %v2497 = vrot.slane %v2478, 4
        %v2498 = vsel %vm983, %v2490, %v2497
        %v2499 = vsel %vm983, %v2105, %v2086
        %v2501 = vunpack.c.l.s4 1983009808
        %v2502 = vunpack.c.0.s8 %v2501
        %v2503 = vperm.slane %v2499, %v2502
        %v2504 = vrot.slane %v2106, 4
        %v2505 = vsel %vm983, %v2504, %v2104
        %v2507 = vunpack.c.l.s4 1983009808
        %v2508 = vunpack.c.0.s8 %v2507
        %v2509 = vperm.slane %v2505, %v2508
        %v2510 = vsel %vm983, %v2109, %v2098
        %v2512 = vunpack.c.l.s4 1983009808
        %v2513 = vunpack.c.0.s8 %v2512
        %v2514 = vperm.slane %v2510, %v2513
        %v2515 = vrot.slane %v2110, 4
        %v2516 = vsel %vm983, %v2515, %v2108
        %v2518 = vunpack.c.l.s4 1983009808
        %v2519 = vunpack.c.0.s8 %v2518
        %v2520 = vperm.slane %v2516, %v2519
        %v2521 = vrot.slane %v2509, 4
        %v2522 = vsel %vm983, %v2521, %v2503
        %v2523 = vrot.slane %v2503, 4
        %v2524 = vsel %vm983, %v2509, %v2523
        %v2526 = vunpack.c.l.s4 1934713408
        %v2527 = vunpack.c.0.s8 %v2526
        %v2528 = vperm.slane %v2522, %v2527
        %v2530 = vunpack.c.l.s4 1934713408
        %v2531 = vunpack.c.0.s8 %v2530
        %v2532 = vperm.slane %v2524, %v2531
        %v2533 = vrot.slane %v2520, 4
        %v2534 = vsel %vm983, %v2533, %v2514
        %v2535 = vrot.slane %v2514, 4
        %v2536 = vsel %vm983, %v2520, %v2535
        %v2538 = vunpack.c.l.s4 1934713408
        %v2539 = vunpack.c.0.s8 %v2538
        %v2540 = vperm.slane %v2534, %v2539
        %v2542 = vunpack.c.l.s4 1934713408
        %v2543 = vunpack.c.0.s8 %v2542
        %v2544 = vperm.slane %v2536, %v2543
        %v2545 = vrot.slane %v2540, 4
        %v2546 = vsel %vm983, %v2545, %v2528
        %v2547 = vrot.slane %v2528, 4
        %v2548 = vsel %vm983, %v2540, %v2547
        %v2549 = vrot.slane %v2544, 4
        %v2550 = vsel %vm983, %v2549, %v2532
        %v2551 = vrot.slane %v2532, 4
        %v2552 = vsel %vm983, %v2544, %v2551
        %v2553 = vsel %vm983, %v2161, %v2142
        %v2555 = vunpack.c.l.s4 1983009808
        %v2556 = vunpack.c.0.s8 %v2555
        %v2557 = vperm.slane %v2553, %v2556
        %v2558 = vrot.slane %v2162, 4
        %v2559 = vsel %vm983, %v2558, %v2160
        %v2561 = vunpack.c.l.s4 1983009808
        %v2562 = vunpack.c.0.s8 %v2561
        %v2563 = vperm.slane %v2559, %v2562
        %v2564 = vsel %vm983, %v2165, %v2154
        %v2566 = vunpack.c.l.s4 1983009808
        %v2567 = vunpack.c.0.s8 %v2566
        %v2568 = vperm.slane %v2564, %v2567
        %v2569 = vrot.slane %v2166, 4
        %v2570 = vsel %vm983, %v2569, %v2164
        %v2572 = vunpack.c.l.s4 1983009808
        %v2573 = vunpack.c.0.s8 %v2572
        %v2574 = vperm.slane %v2570, %v2573
        %v2575 = vrot.slane %v2563, 4
        %v2576 = vsel %vm983, %v2575, %v2557
        %v2577 = vrot.slane %v2557, 4
        %v2578 = vsel %vm983, %v2563, %v2577
        %v2580 = vunpack.c.l.s4 1934713408
        %v2581 = vunpack.c.0.s8 %v2580
        %v2582 = vperm.slane %v2576, %v2581
        %v2584 = vunpack.c.l.s4 1934713408
        %v2585 = vunpack.c.0.s8 %v2584
        %v2586 = vperm.slane %v2578, %v2585
        %v2587 = vrot.slane %v2574, 4
        %v2588 = vsel %vm983, %v2587, %v2568
        %v2589 = vrot.slane %v2568, 4
        %v2590 = vsel %vm983, %v2574, %v2589
        %v2592 = vunpack.c.l.s4 1934713408
        %v2593 = vunpack.c.0.s8 %v2592
        %v2594 = vperm.slane %v2588, %v2593
        %v2596 = vunpack.c.l.s4 1934713408
        %v2597 = vunpack.c.0.s8 %v2596
        %v2598 = vperm.slane %v2590, %v2597
        %v2599 = vrot.slane %v2594, 4
        %v2600 = vsel %vm983, %v2599, %v2582
        %v2601 = vrot.slane %v2582, 4
        %v2602 = vsel %vm983, %v2594, %v2601
        %v2603 = vrot.slane %v2598, 4
        %v2604 = vsel %vm983, %v2603, %v2586
        %v2605 = vrot.slane %v2586, 4
        %v2606 = vsel %vm983, %v2598, %v2605
        %v2607 = vsel %vm983, %v2217, %v2198
        %v2609 = vunpack.c.l.s4 1983009808
        %v2610 = vunpack.c.0.s8 %v2609
        %v2611 = vperm.slane %v2607, %v2610
        %v2612 = vrot.slane %v2218, 4
        %v2613 = vsel %vm983, %v2612, %v2216
        %v2615 = vunpack.c.l.s4 1983009808
        %v2616 = vunpack.c.0.s8 %v2615
        %v2617 = vperm.slane %v2613, %v2616
        %v2618 = vsel %vm983, %v2221, %v2210
        %v2620 = vunpack.c.l.s4 1983009808
        %v2621 = vunpack.c.0.s8 %v2620
        %v2622 = vperm.slane %v2618, %v2621
        %v2623 = vrot.slane %v2222, 4
        %v2624 = vsel %vm983, %v2623, %v2220
        %v2626 = vunpack.c.l.s4 1983009808
        %v2627 = vunpack.c.0.s8 %v2626
        %v2628 = vperm.slane %v2624, %v2627
        %v2629 = vrot.slane %v2617, 4
        %v2630 = vsel %vm983, %v2629, %v2611
        %v2631 = vrot.slane %v2611, 4
        %v2632 = vsel %vm983, %v2617, %v2631
        %v2634 = vunpack.c.l.s4 1934713408
        %v2635 = vunpack.c.0.s8 %v2634
        %v2636 = vperm.slane %v2630, %v2635
        %v2638 = vunpack.c.l.s4 1934713408
        %v2639 = vunpack.c.0.s8 %v2638
        %v2640 = vperm.slane %v2632, %v2639
        %v2641 = vrot.slane %v2628, 4
        %v2642 = vsel %vm983, %v2641, %v2622
        %v2643 = vrot.slane %v2622, 4
        %v2644 = vsel %vm983, %v2628, %v2643
        %v2646 = vunpack.c.l.s4 1934713408
        %v2647 = vunpack.c.0.s8 %v2646
        %v2648 = vperm.slane %v2642, %v2647
        %v2650 = vunpack.c.l.s4 1934713408
        %v2651 = vunpack.c.0.s8 %v2650
        %v2652 = vperm.slane %v2644, %v2651
        %v2653 = vrot.slane %v2648, 4
        %v2654 = vsel %vm983, %v2653, %v2636
        %v2655 = vrot.slane %v2636, 4
        %v2656 = vsel %vm983, %v2648, %v2655
        %v2657 = vrot.slane %v2652, 4
        %v2658 = vsel %vm983, %v2657, %v2640
        %v2659 = vrot.slane %v2640, 4
        %v2660 = vsel %vm983, %v2652, %v2659
        %v2661 = vsel %vm983, %v2273, %v2254
        %v2663 = vunpack.c.l.s4 1983009808
        %v2664 = vunpack.c.0.s8 %v2663
        %v2665 = vperm.slane %v2661, %v2664
        %v2666 = vrot.slane %v2274, 4
        %v2667 = vsel %vm983, %v2666, %v2272
        %v2669 = vunpack.c.l.s4 1983009808
        %v2670 = vunpack.c.0.s8 %v2669
        %v2671 = vperm.slane %v2667, %v2670
        %v2672 = vsel %vm983, %v2277, %v2266
        %v2674 = vunpack.c.l.s4 1983009808
        %v2675 = vunpack.c.0.s8 %v2674
        %v2676 = vperm.slane %v2672, %v2675
        %v2677 = vrot.slane %v2278, 4
        %v2678 = vsel %vm983, %v2677, %v2276
        %v2680 = vunpack.c.l.s4 1983009808
        %v2681 = vunpack.c.0.s8 %v2680
        %v2682 = vperm.slane %v2678, %v2681
        %v2683 = vrot.slane %v2671, 4
        %v2684 = vsel %vm983, %v2683, %v2665
        %v2685 = vrot.slane %v2665, 4
        %v2686 = vsel %vm983, %v2671, %v2685
        %v2688 = vunpack.c.l.s4 1934713408
        %v2689 = vunpack.c.0.s8 %v2688
        %v2690 = vperm.slane %v2684, %v2689
        %v2692 = vunpack.c.l.s4 1934713408
        %v2693 = vunpack.c.0.s8 %v2692
        %v2694 = vperm.slane %v2686, %v2693
        %v2695 = vrot.slane %v2682, 4
        %v2696 = vsel %vm983, %v2695, %v2676
        %v2697 = vrot.slane %v2676, 4
        %v2698 = vsel %vm983, %v2682, %v2697
        %v2700 = vunpack.c.l.s4 1934713408
        %v2701 = vunpack.c.0.s8 %v2700
        %v2702 = vperm.slane %v2696, %v2701
        %v2704 = vunpack.c.l.s4 1934713408
        %v2705 = vunpack.c.0.s8 %v2704
        %v2706 = vperm.slane %v2698, %v2705
        %v2707 = vrot.slane %v2702, 4
        %v2708 = vsel %vm983, %v2707, %v2690
        %v2709 = vrot.slane %v2690, 4
        %v2710 = vsel %vm983, %v2702, %v2709
        %v2711 = vrot.slane %v2706, 4
        %v2712 = vsel %vm983, %v2711, %v2694
        %v2713 = vrot.slane %v2694, 4
        %v2714 = vsel %vm983, %v2706, %v2713
        %v2715 = vsel %vm983, %v2329, %v2310
        %v2717 = vunpack.c.l.s4 1983009808
        %v2718 = vunpack.c.0.s8 %v2717
        %v2719 = vperm.slane %v2715, %v2718
        %v2720 = vrot.slane %v2330, 4
        %v2721 = vsel %vm983, %v2720, %v2328
        %v2723 = vunpack.c.l.s4 1983009808
        %v2724 = vunpack.c.0.s8 %v2723
        %v2725 = vperm.slane %v2721, %v2724
        %v2726 = vsel %vm983, %v2333, %v2322
        %v2728 = vunpack.c.l.s4 1983009808
        %v2729 = vunpack.c.0.s8 %v2728
        %v2730 = vperm.slane %v2726, %v2729
        %v2731 = vrot.slane %v2334, 4
        %v2732 = vsel %vm983, %v2731, %v2332
        %v2734 = vunpack.c.l.s4 1983009808
        %v2735 = vunpack.c.0.s8 %v2734
        %v2736 = vperm.slane %v2732, %v2735
        %v2737 = vrot.slane %v2725, 4
        %v2738 = vsel %vm983, %v2737, %v2719
        %v2739 = vrot.slane %v2719, 4
        %v2740 = vsel %vm983, %v2725, %v2739
        %v2742 = vunpack.c.l.s4 1934713408
        %v2743 = vunpack.c.0.s8 %v2742
        %v2744 = vperm.slane %v2738, %v2743
        %v2746 = vunpack.c.l.s4 1934713408
        %v2747 = vunpack.c.0.s8 %v2746
        %v2748 = vperm.slane %v2740, %v2747
        %v2749 = vrot.slane %v2736, 4
        %v2750 = vsel %vm983, %v2749, %v2730
        %v2751 = vrot.slane %v2730, 4
        %v2752 = vsel %vm983, %v2736, %v2751
        %v2754 = vunpack.c.l.s4 1934713408
        %v2755 = vunpack.c.0.s8 %v2754
        %v2756 = vperm.slane %v2750, %v2755
        %v2758 = vunpack.c.l.s4 1934713408
        %v2759 = vunpack.c.0.s8 %v2758
        %v2760 = vperm.slane %v2752, %v2759
        %v2761 = vrot.slane %v2756, 4
        %v2762 = vsel %vm983, %v2761, %v2744
        %v2763 = vrot.slane %v2744, 4
        %v2764 = vsel %vm983, %v2756, %v2763
        %v2765 = vrot.slane %v2760, 4
        %v2766 = vsel %vm983, %v2765, %v2748
        %v2767 = vrot.slane %v2748, 4
        %v2768 = vsel %vm983, %v2760, %v2767
        %v2769 = vsel %vm983, %v2385, %v2366
        %v2771 = vunpack.c.l.s4 1983009808
        %v2772 = vunpack.c.0.s8 %v2771
        %v2773 = vperm.slane %v2769, %v2772
        %v2774 = vrot.slane %v2386, 4
        %v2775 = vsel %vm983, %v2774, %v2384
        %v2777 = vunpack.c.l.s4 1983009808
        %v2778 = vunpack.c.0.s8 %v2777
        %v2779 = vperm.slane %v2775, %v2778
        %v2780 = vsel %vm983, %v2389, %v2378
        %v2782 = vunpack.c.l.s4 1983009808
        %v2783 = vunpack.c.0.s8 %v2782
        %v2784 = vperm.slane %v2780, %v2783
        %v2785 = vrot.slane %v2390, 4
        %v2786 = vsel %vm983, %v2785, %v2388
        %v2788 = vunpack.c.l.s4 1983009808
        %v2789 = vunpack.c.0.s8 %v2788
        %v2790 = vperm.slane %v2786, %v2789
        %v2791 = vrot.slane %v2779, 4
        %v2792 = vsel %vm983, %v2791, %v2773
        %v2793 = vrot.slane %v2773, 4
        %v2794 = vsel %vm983, %v2779, %v2793
        %v2796 = vunpack.c.l.s4 1934713408
        %v2797 = vunpack.c.0.s8 %v2796
        %v2798 = vperm.slane %v2792, %v2797
        %v2800 = vunpack.c.l.s4 1934713408
        %v2801 = vunpack.c.0.s8 %v2800
        %v2802 = vperm.slane %v2794, %v2801
        %v2803 = vrot.slane %v2790, 4
        %v2804 = vsel %vm983, %v2803, %v2784
        %v2805 = vrot.slane %v2784, 4
        %v2806 = vsel %vm983, %v2790, %v2805
        %v2808 = vunpack.c.l.s4 1934713408
        %v2809 = vunpack.c.0.s8 %v2808
        %v2810 = vperm.slane %v2804, %v2809
        %v2812 = vunpack.c.l.s4 1934713408
        %v2813 = vunpack.c.0.s8 %v2812
        %v2814 = vperm.slane %v2806, %v2813
        %v2815 = vrot.slane %v2810, 4
        %v2816 = vsel %vm983, %v2815, %v2798
        %v2817 = vrot.slane %v2798, 4
        %v2818 = vsel %vm983, %v2810, %v2817
        %v2819 = vrot.slane %v2814, 4
        %v2820 = vsel %vm983, %v2819, %v2802
        %v2821 = vrot.slane %v2802, 4
        %v2822 = vsel %vm983, %v2814, %v2821
        %2831 = vrot.lane.b32.xlu0 %v879, 96
        %v2832 = vpop.permute.xlu0 %2831
        %2833 = vrot.lane.b32.xlu0 %v882, 96
        %v2834 = vpop.permute.xlu0 %2833
        %2835 = vrot.lane.b32.xlu0 %v885, 96
        %v2836 = vpop.permute.xlu0 %2835
        %2837 = vrot.lane.b32.xlu0 %v888, 96
        %v2838 = vpop.permute.xlu0 %2837
        %2839 = vrot.lane.b32.xlu0 %v891, 96
        %v2840 = vpop.permute.xlu0 %2839
        %2841 = vrot.lane.b32.xlu0 %v894, 96
        %v2842 = vpop.permute.xlu0 %2841
        %2843 = vrot.lane.b32.xlu0 %v897, 96
        %v2844 = vpop.permute.xlu0 %2843
        %2845 = vrot.lane.b32.xlu0 %v900, 96
        %v2846 = vpop.permute.xlu0 %2845
        %2855 = vrot.lane.b32.xlu0 %v879, 64
        %v2856 = vpop.permute.xlu0 %2855
        %2857 = vrot.lane.b32.xlu0 %v882, 64
        %v2858 = vpop.permute.xlu0 %2857
        %2859 = vrot.lane.b32.xlu0 %v885, 64
        %v2860 = vpop.permute.xlu0 %2859
        %2861 = vrot.lane.b32.xlu0 %v888, 64
        %v2862 = vpop.permute.xlu0 %2861
        %2863 = vrot.lane.b32.xlu0 %v891, 64
        %v2864 = vpop.permute.xlu0 %2863
        %2865 = vrot.lane.b32.xlu0 %v894, 64
        %v2866 = vpop.permute.xlu0 %2865
        %2867 = vrot.lane.b32.xlu0 %v897, 64
        %v2868 = vpop.permute.xlu0 %2867
        %2869 = vrot.lane.b32.xlu0 %v900, 64
        %v2870 = vpop.permute.xlu0 %2869
        %2879 = vrot.lane.b32.xlu0 %v879, 32
        %v2880 = vpop.permute.xlu0 %2879
        %2881 = vrot.lane.b32.xlu0 %v882, 32
        %v2882 = vpop.permute.xlu0 %2881
        %2883 = vrot.lane.b32.xlu0 %v885, 32
        %v2884 = vpop.permute.xlu0 %2883
        %2885 = vrot.lane.b32.xlu0 %v888, 32
        %v2886 = vpop.permute.xlu0 %2885
        %2887 = vrot.lane.b32.xlu0 %v891, 32
        %v2888 = vpop.permute.xlu0 %2887
        %2889 = vrot.lane.b32.xlu0 %v894, 32
        %v2890 = vpop.permute.xlu0 %2889
        %2891 = vrot.lane.b32.xlu0 %v897, 32
        %v2892 = vpop.permute.xlu0 %2891
        %2893 = vrot.lane.b32.xlu0 %v900, 32
        %v2894 = vpop.permute.xlu0 %2893
        %v2903 = vrot.slane %v2856, 4
        %v2904 = vsel %vm983, %v2903, %v879
        %v2905 = vrot.slane %v879, 4
        %v2906 = vsel %vm983, %v2856, %v2905
        %v2908 = vunpack.c.l.s4 1983009808
        %v2909 = vunpack.c.0.s8 %v2908
        %v2910 = vperm.slane %v2904, %v2909
        %v2912 = vunpack.c.l.s4 1983009808
        %v2913 = vunpack.c.0.s8 %v2912
        %v2914 = vperm.slane %v2906, %v2913
        %v2915 = vrot.slane %v2880, 4
        %v2916 = vsel %vm983, %v2915, %v2832
        %v2917 = vrot.slane %v2832, 4
        %v2918 = vsel %vm983, %v2880, %v2917
        %v2920 = vunpack.c.l.s4 1983009808
        %v2921 = vunpack.c.0.s8 %v2920
        %v2922 = vperm.slane %v2916, %v2921
        %v2924 = vunpack.c.l.s4 1983009808
        %v2925 = vunpack.c.0.s8 %v2924
        %v2926 = vperm.slane %v2918, %v2925
        %v2927 = vrot.slane %v2922, 4
        %v2928 = vsel %vm983, %v2927, %v2910
        %v2929 = vrot.slane %v2910, 4
        %v2930 = vsel %vm983, %v2922, %v2929
        %v2932 = vunpack.c.l.s4 1934713408
        %v2933 = vunpack.c.0.s8 %v2932
        %v2934 = vperm.slane %v2928, %v2933
        %v2936 = vunpack.c.l.s4 1934713408
        %v2937 = vunpack.c.0.s8 %v2936
        %v2938 = vperm.slane %v2930, %v2937
        %v2939 = vrot.slane %v2926, 4
        %v2940 = vsel %vm983, %v2939, %v2914
        %v2941 = vrot.slane %v2914, 4
        %v2942 = vsel %vm983, %v2926, %v2941
        %v2944 = vunpack.c.l.s4 1934713408
        %v2945 = vunpack.c.0.s8 %v2944
        %v2946 = vperm.slane %v2940, %v2945
        %v2948 = vunpack.c.l.s4 1934713408
        %v2949 = vunpack.c.0.s8 %v2948
        %v2950 = vperm.slane %v2942, %v2949
        %v2951 = vrot.slane %v2934, 4
        %v2952 = vsel %vm983, 0.0, %v2951
        %v2953 = vrot.slane %v2938, 4
        %v2954 = vsel %vm983, 0.0, %v2953
        %v2955 = vrot.slane %v2946, 4
        %v2956 = vsel %vm983, 0.0, %v2955
        %v2957 = vrot.slane %v2950, 4
        %v2958 = vsel %vm983, 0.0, %v2957
        %v2959 = vrot.slane %v2858, 4
        %v2960 = vsel %vm983, %v2959, %v882
        %v2961 = vrot.slane %v882, 4
        %v2962 = vsel %vm983, %v2858, %v2961
        %v2964 = vunpack.c.l.s4 1983009808
        %v2965 = vunpack.c.0.s8 %v2964
        %v2966 = vperm.slane %v2960, %v2965
        %v2968 = vunpack.c.l.s4 1983009808
        %v2969 = vunpack.c.0.s8 %v2968
        %v2970 = vperm.slane %v2962, %v2969
        %v2971 = vrot.slane %v2882, 4
        %v2972 = vsel %vm983, %v2971, %v2834
        %v2973 = vrot.slane %v2834, 4
        %v2974 = vsel %vm983, %v2882, %v2973
        %v2976 = vunpack.c.l.s4 1983009808
        %v2977 = vunpack.c.0.s8 %v2976
        %v2978 = vperm.slane %v2972, %v2977
        %v2980 = vunpack.c.l.s4 1983009808
        %v2981 = vunpack.c.0.s8 %v2980
        %v2982 = vperm.slane %v2974, %v2981
        %v2983 = vrot.slane %v2978, 4
        %v2984 = vsel %vm983, %v2983, %v2966
        %v2985 = vrot.slane %v2966, 4
        %v2986 = vsel %vm983, %v2978, %v2985
        %v2988 = vunpack.c.l.s4 1934713408
        %v2989 = vunpack.c.0.s8 %v2988
        %v2990 = vperm.slane %v2984, %v2989
        %v2992 = vunpack.c.l.s4 1934713408
        %v2993 = vunpack.c.0.s8 %v2992
        %v2994 = vperm.slane %v2986, %v2993
        %v2995 = vrot.slane %v2982, 4
        %v2996 = vsel %vm983, %v2995, %v2970
        %v2997 = vrot.slane %v2970, 4
        %v2998 = vsel %vm983, %v2982, %v2997
        %v3000 = vunpack.c.l.s4 1934713408
        %v3001 = vunpack.c.0.s8 %v3000
        %v3002 = vperm.slane %v2996, %v3001
        %v3004 = vunpack.c.l.s4 1934713408
        %v3005 = vunpack.c.0.s8 %v3004
        %v3006 = vperm.slane %v2998, %v3005
        %v3007 = vrot.slane %v2990, 4
        %v3008 = vsel %vm983, 0.0, %v3007
        %v3009 = vrot.slane %v2994, 4
        %v3010 = vsel %vm983, 0.0, %v3009
        %v3011 = vrot.slane %v3002, 4
        %v3012 = vsel %vm983, 0.0, %v3011
        %v3013 = vrot.slane %v3006, 4
        %v3014 = vsel %vm983, 0.0, %v3013
        %v3015 = vrot.slane %v2860, 4
        %v3016 = vsel %vm983, %v3015, %v885
        %v3017 = vrot.slane %v885, 4
        %v3018 = vsel %vm983, %v2860, %v3017
        %v3020 = vunpack.c.l.s4 1983009808
        %v3021 = vunpack.c.0.s8 %v3020
        %v3022 = vperm.slane %v3016, %v3021
        %v3024 = vunpack.c.l.s4 1983009808
        %v3025 = vunpack.c.0.s8 %v3024
        %v3026 = vperm.slane %v3018, %v3025
        %v3027 = vrot.slane %v2884, 4
        %v3028 = vsel %vm983, %v3027, %v2836
        %v3029 = vrot.slane %v2836, 4
        %v3030 = vsel %vm983, %v2884, %v3029
        %v3032 = vunpack.c.l.s4 1983009808
        %v3033 = vunpack.c.0.s8 %v3032
        %v3034 = vperm.slane %v3028, %v3033
        %v3036 = vunpack.c.l.s4 1983009808
        %v3037 = vunpack.c.0.s8 %v3036
        %v3038 = vperm.slane %v3030, %v3037
        %v3039 = vrot.slane %v3034, 4
        %v3040 = vsel %vm983, %v3039, %v3022
        %v3041 = vrot.slane %v3022, 4
        %v3042 = vsel %vm983, %v3034, %v3041
        %v3044 = vunpack.c.l.s4 1934713408
        %v3045 = vunpack.c.0.s8 %v3044
        %v3046 = vperm.slane %v3040, %v3045
        %v3048 = vunpack.c.l.s4 1934713408
        %v3049 = vunpack.c.0.s8 %v3048
        %v3050 = vperm.slane %v3042, %v3049
        %v3051 = vrot.slane %v3038, 4
        %v3052 = vsel %vm983, %v3051, %v3026
        %v3053 = vrot.slane %v3026, 4
        %v3054 = vsel %vm983, %v3038, %v3053
        %v3056 = vunpack.c.l.s4 1934713408
        %v3057 = vunpack.c.0.s8 %v3056
        %v3058 = vperm.slane %v3052, %v3057
        %v3060 = vunpack.c.l.s4 1934713408
        %v3061 = vunpack.c.0.s8 %v3060
        %v3062 = vperm.slane %v3054, %v3061
        %v3063 = vrot.slane %v3046, 4
        %v3064 = vsel %vm983, 0.0, %v3063
        %v3065 = vrot.slane %v3050, 4
        %v3066 = vsel %vm983, 0.0, %v3065
        %v3067 = vrot.slane %v3058, 4
        %v3068 = vsel %vm983, 0.0, %v3067
        %v3069 = vrot.slane %v3062, 4
        %v3070 = vsel %vm983, 0.0, %v3069
        %v3071 = vrot.slane %v2862, 4
        %v3072 = vsel %vm983, %v3071, %v888
        %v3073 = vrot.slane %v888, 4
        %v3074 = vsel %vm983, %v2862, %v3073
        %v3076 = vunpack.c.l.s4 1983009808
        %v3077 = vunpack.c.0.s8 %v3076
        %v3078 = vperm.slane %v3072, %v3077
        %v3080 = vunpack.c.l.s4 1983009808
        %v3081 = vunpack.c.0.s8 %v3080
        %v3082 = vperm.slane %v3074, %v3081
        %v3083 = vrot.slane %v2886, 4
        %v3084 = vsel %vm983, %v3083, %v2838
        %v3085 = vrot.slane %v2838, 4
        %v3086 = vsel %vm983, %v2886, %v3085
        %v3088 = vunpack.c.l.s4 1983009808
        %v3089 = vunpack.c.0.s8 %v3088
        %v3090 = vperm.slane %v3084, %v3089
        %v3092 = vunpack.c.l.s4 1983009808
        %v3093 = vunpack.c.0.s8 %v3092
        %v3094 = vperm.slane %v3086, %v3093
        %v3095 = vrot.slane %v3090, 4
        %v3096 = vsel %vm983, %v3095, %v3078
        %v3097 = vrot.slane %v3078, 4
        %v3098 = vsel %vm983, %v3090, %v3097
        %v3100 = vunpack.c.l.s4 1934713408
        %v3101 = vunpack.c.0.s8 %v3100
        %v3102 = vperm.slane %v3096, %v3101
        %v3104 = vunpack.c.l.s4 1934713408
        %v3105 = vunpack.c.0.s8 %v3104
        %v3106 = vperm.slane %v3098, %v3105
        %v3107 = vrot.slane %v3094, 4
        %v3108 = vsel %vm983, %v3107, %v3082
        %v3109 = vrot.slane %v3082, 4
        %v3110 = vsel %vm983, %v3094, %v3109
        %v3112 = vunpack.c.l.s4 1934713408
        %v3113 = vunpack.c.0.s8 %v3112
        %v3114 = vperm.slane %v3108, %v3113
        %v3116 = vunpack.c.l.s4 1934713408
        %v3117 = vunpack.c.0.s8 %v3116
        %v3118 = vperm.slane %v3110, %v3117
        %v3119 = vrot.slane %v3102, 4
        %v3120 = vsel %vm983, 0.0, %v3119
        %v3121 = vrot.slane %v3106, 4
        %v3122 = vsel %vm983, 0.0, %v3121
        %v3123 = vrot.slane %v3114, 4
        %v3124 = vsel %vm983, 0.0, %v3123
        %v3125 = vrot.slane %v3118, 4
        %v3126 = vsel %vm983, 0.0, %v3125
        %v3127 = vrot.slane %v2864, 4
        %v3128 = vsel %vm983, %v3127, %v891
        %v3129 = vrot.slane %v891, 4
        %v3130 = vsel %vm983, %v2864, %v3129
        %v3132 = vunpack.c.l.s4 1983009808
        %v3133 = vunpack.c.0.s8 %v3132
        %v3134 = vperm.slane %v3128, %v3133
        %v3136 = vunpack.c.l.s4 1983009808
        %v3137 = vunpack.c.0.s8 %v3136
        %v3138 = vperm.slane %v3130, %v3137
        %v3139 = vrot.slane %v2888, 4
        %v3140 = vsel %vm983, %v3139, %v2840
        %v3141 = vrot.slane %v2840, 4
        %v3142 = vsel %vm983, %v2888, %v3141
        %v3144 = vunpack.c.l.s4 1983009808
        %v3145 = vunpack.c.0.s8 %v3144
        %v3146 = vperm.slane %v3140, %v3145
        %v3148 = vunpack.c.l.s4 1983009808
        %v3149 = vunpack.c.0.s8 %v3148
        %v3150 = vperm.slane %v3142, %v3149
        %v3151 = vrot.slane %v3146, 4
        %v3152 = vsel %vm983, %v3151, %v3134
        %v3153 = vrot.slane %v3134, 4
        %v3154 = vsel %vm983, %v3146, %v3153
        %v3156 = vunpack.c.l.s4 1934713408
        %v3157 = vunpack.c.0.s8 %v3156
        %v3158 = vperm.slane %v3152, %v3157
        %v3160 = vunpack.c.l.s4 1934713408
        %v3161 = vunpack.c.0.s8 %v3160
        %v3162 = vperm.slane %v3154, %v3161
        %v3163 = vrot.slane %v3150, 4
        %v3164 = vsel %vm983, %v3163, %v3138
        %v3165 = vrot.slane %v3138, 4
        %v3166 = vsel %vm983, %v3150, %v3165
        %v3168 = vunpack.c.l.s4 1934713408
        %v3169 = vunpack.c.0.s8 %v3168
        %v3170 = vperm.slane %v3164, %v3169
        %v3172 = vunpack.c.l.s4 1934713408
        %v3173 = vunpack.c.0.s8 %v3172
        %v3174 = vperm.slane %v3166, %v3173
        %v3175 = vrot.slane %v3158, 4
        %v3176 = vsel %vm983, 0.0, %v3175
        %v3177 = vrot.slane %v3162, 4
        %v3178 = vsel %vm983, 0.0, %v3177
        %v3179 = vrot.slane %v3170, 4
        %v3180 = vsel %vm983, 0.0, %v3179
        %v3181 = vrot.slane %v3174, 4
        %v3182 = vsel %vm983, 0.0, %v3181
        %v3183 = vrot.slane %v2866, 4
        %v3184 = vsel %vm983, %v3183, %v894
        %v3185 = vrot.slane %v894, 4
        %v3186 = vsel %vm983, %v2866, %v3185
        %v3188 = vunpack.c.l.s4 1983009808
        %v3189 = vunpack.c.0.s8 %v3188
        %v3190 = vperm.slane %v3184, %v3189
        %v3192 = vunpack.c.l.s4 1983009808
        %v3193 = vunpack.c.0.s8 %v3192
        %v3194 = vperm.slane %v3186, %v3193
        %v3195 = vrot.slane %v2890, 4
        %v3196 = vsel %vm983, %v3195, %v2842
        %v3197 = vrot.slane %v2842, 4
        %v3198 = vsel %vm983, %v2890, %v3197
        %v3200 = vunpack.c.l.s4 1983009808
        %v3201 = vunpack.c.0.s8 %v3200
        %v3202 = vperm.slane %v3196, %v3201
        %v3204 = vunpack.c.l.s4 1983009808
        %v3205 = vunpack.c.0.s8 %v3204
        %v3206 = vperm.slane %v3198, %v3205
        %v3207 = vrot.slane %v3202, 4
        %v3208 = vsel %vm983, %v3207, %v3190
        %v3209 = vrot.slane %v3190, 4
        %v3210 = vsel %vm983, %v3202, %v3209
        %v3212 = vunpack.c.l.s4 1934713408
        %v3213 = vunpack.c.0.s8 %v3212
        %v3214 = vperm.slane %v3208, %v3213
        %v3216 = vunpack.c.l.s4 1934713408
        %v3217 = vunpack.c.0.s8 %v3216
        %v3218 = vperm.slane %v3210, %v3217
        %v3219 = vrot.slane %v3206, 4
        %v3220 = vsel %vm983, %v3219, %v3194
        %v3221 = vrot.slane %v3194, 4
        %v3222 = vsel %vm983, %v3206, %v3221
        %v3224 = vunpack.c.l.s4 1934713408
        %v3225 = vunpack.c.0.s8 %v3224
        %v3226 = vperm.slane %v3220, %v3225
        %v3228 = vunpack.c.l.s4 1934713408
        %v3229 = vunpack.c.0.s8 %v3228
        %v3230 = vperm.slane %v3222, %v3229
        %v3231 = vrot.slane %v3214, 4
        %v3232 = vsel %vm983, 0.0, %v3231
        %v3233 = vrot.slane %v3218, 4
        %v3234 = vsel %vm983, 0.0, %v3233
        %v3235 = vrot.slane %v3226, 4
        %v3236 = vsel %vm983, 0.0, %v3235
        %v3237 = vrot.slane %v3230, 4
        %v3238 = vsel %vm983, 0.0, %v3237
        %v3239 = vrot.slane %v2868, 4
        %v3240 = vsel %vm983, %v3239, %v897
        %v3241 = vrot.slane %v897, 4
        %v3242 = vsel %vm983, %v2868, %v3241
        %v3244 = vunpack.c.l.s4 1983009808
        %v3245 = vunpack.c.0.s8 %v3244
        %v3246 = vperm.slane %v3240, %v3245
        %v3248 = vunpack.c.l.s4 1983009808
        %v3249 = vunpack.c.0.s8 %v3248
        %v3250 = vperm.slane %v3242, %v3249
        %v3251 = vrot.slane %v2892, 4
        %v3252 = vsel %vm983, %v3251, %v2844
        %v3253 = vrot.slane %v2844, 4
        %v3254 = vsel %vm983, %v2892, %v3253
        %v3256 = vunpack.c.l.s4 1983009808
        %v3257 = vunpack.c.0.s8 %v3256
        %v3258 = vperm.slane %v3252, %v3257
        %v3260 = vunpack.c.l.s4 1983009808
        %v3261 = vunpack.c.0.s8 %v3260
        %v3262 = vperm.slane %v3254, %v3261
        %v3263 = vrot.slane %v3258, 4
        %v3264 = vsel %vm983, %v3263, %v3246
        %v3265 = vrot.slane %v3246, 4
        %v3266 = vsel %vm983, %v3258, %v3265
        %v3268 = vunpack.c.l.s4 1934713408
        %v3269 = vunpack.c.0.s8 %v3268
        %v3270 = vperm.slane %v3264, %v3269
        %v3272 = vunpack.c.l.s4 1934713408
        %v3273 = vunpack.c.0.s8 %v3272
        %v3274 = vperm.slane %v3266, %v3273
        %v3275 = vrot.slane %v3262, 4
        %v3276 = vsel %vm983, %v3275, %v3250
        %v3277 = vrot.slane %v3250, 4
        %v3278 = vsel %vm983, %v3262, %v3277
        %v3280 = vunpack.c.l.s4 1934713408
        %v3281 = vunpack.c.0.s8 %v3280
        %v3282 = vperm.slane %v3276, %v3281
        %v3284 = vunpack.c.l.s4 1934713408
        %v3285 = vunpack.c.0.s8 %v3284
        %v3286 = vperm.slane %v3278, %v3285
        %v3287 = vrot.slane %v3270, 4
        %v3288 = vsel %vm983, 0.0, %v3287
        %v3289 = vrot.slane %v3274, 4
        %v3290 = vsel %vm983, 0.0, %v3289
        %v3291 = vrot.slane %v3282, 4
        %v3292 = vsel %vm983, 0.0, %v3291
        %v3293 = vrot.slane %v3286, 4
        %v3294 = vsel %vm983, 0.0, %v3293
        %v3295 = vrot.slane %v2870, 4
        %v3296 = vsel %vm983, %v3295, %v900
        %v3297 = vrot.slane %v900, 4
        %v3298 = vsel %vm983, %v2870, %v3297
        %v3300 = vunpack.c.l.s4 1983009808
        %v3301 = vunpack.c.0.s8 %v3300
        %v3302 = vperm.slane %v3296, %v3301
        %v3304 = vunpack.c.l.s4 1983009808
        %v3305 = vunpack.c.0.s8 %v3304
        %v3306 = vperm.slane %v3298, %v3305
        %v3307 = vrot.slane %v2894, 4
        %v3308 = vsel %vm983, %v3307, %v2846
        %v3309 = vrot.slane %v2846, 4
        %v3310 = vsel %vm983, %v2894, %v3309
        %v3312 = vunpack.c.l.s4 1983009808
        %v3313 = vunpack.c.0.s8 %v3312
        %v3314 = vperm.slane %v3308, %v3313
        %v3316 = vunpack.c.l.s4 1983009808
        %v3317 = vunpack.c.0.s8 %v3316
        %v3318 = vperm.slane %v3310, %v3317
        %v3319 = vrot.slane %v3314, 4
        %v3320 = vsel %vm983, %v3319, %v3302
        %v3321 = vrot.slane %v3302, 4
        %v3322 = vsel %vm983, %v3314, %v3321
        %v3324 = vunpack.c.l.s4 1934713408
        %v3325 = vunpack.c.0.s8 %v3324
        %v3326 = vperm.slane %v3320, %v3325
        %v3328 = vunpack.c.l.s4 1934713408
        %v3329 = vunpack.c.0.s8 %v3328
        %v3330 = vperm.slane %v3322, %v3329
        %v3331 = vrot.slane %v3318, 4
        %v3332 = vsel %vm983, %v3331, %v3306
        %v3333 = vrot.slane %v3306, 4
        %v3334 = vsel %vm983, %v3318, %v3333
        %v3336 = vunpack.c.l.s4 1934713408
        %v3337 = vunpack.c.0.s8 %v3336
        %v3338 = vperm.slane %v3332, %v3337
        %v3340 = vunpack.c.l.s4 1934713408
        %v3341 = vunpack.c.0.s8 %v3340
        %v3342 = vperm.slane %v3334, %v3341
        %v3343 = vrot.slane %v3326, 4
        %v3344 = vsel %vm983, 0.0, %v3343
        %v3345 = vrot.slane %v3330, 4
        %v3346 = vsel %vm983, 0.0, %v3345
        %v3347 = vrot.slane %v3338, 4
        %v3348 = vsel %vm983, 0.0, %v3347
        %v3349 = vrot.slane %v3342, 4
        %v3350 = vsel %vm983, 0.0, %v3349
        %v3351 = vsel %vm983, %v2953, %v2934
        %v3353 = vunpack.c.l.s4 1983009808
        %v3354 = vunpack.c.0.s8 %v3353
        %v3355 = vperm.slane %v3351, %v3354
        %v3356 = vrot.slane %v2954, 4
        %v3357 = vsel %vm983, %v3356, %v2952
        %v3359 = vunpack.c.l.s4 1983009808
        %v3360 = vunpack.c.0.s8 %v3359
        %v3361 = vperm.slane %v3357, %v3360
        %v3362 = vsel %vm983, %v2957, %v2946
        %v3364 = vunpack.c.l.s4 1983009808
        %v3365 = vunpack.c.0.s8 %v3364
        %v3366 = vperm.slane %v3362, %v3365
        %v3367 = vrot.slane %v2958, 4
        %v3368 = vsel %vm983, %v3367, %v2956
        %v3370 = vunpack.c.l.s4 1983009808
        %v3371 = vunpack.c.0.s8 %v3370
        %v3372 = vperm.slane %v3368, %v3371
        %v3373 = vrot.slane %v3361, 4
        %v3374 = vsel %vm983, %v3373, %v3355
        %v3375 = vrot.slane %v3355, 4
        %v3376 = vsel %vm983, %v3361, %v3375
        %v3378 = vunpack.c.l.s4 1934713408
        %v3379 = vunpack.c.0.s8 %v3378
        %v3380 = vperm.slane %v3374, %v3379
        %v3382 = vunpack.c.l.s4 1934713408
        %v3383 = vunpack.c.0.s8 %v3382
        %v3384 = vperm.slane %v3376, %v3383
        %v3385 = vrot.slane %v3372, 4
        %v3386 = vsel %vm983, %v3385, %v3366
        %v3387 = vrot.slane %v3366, 4
        %v3388 = vsel %vm983, %v3372, %v3387
        %v3390 = vunpack.c.l.s4 1934713408
        %v3391 = vunpack.c.0.s8 %v3390
        %v3392 = vperm.slane %v3386, %v3391
        %v3394 = vunpack.c.l.s4 1934713408
        %v3395 = vunpack.c.0.s8 %v3394
        %v3396 = vperm.slane %v3388, %v3395
        %v3397 = vrot.slane %v3392, 4
        %v3398 = vsel %vm983, %v3397, %v3380
        %v3399 = vrot.slane %v3380, 4
        %v3400 = vsel %vm983, %v3392, %v3399
        %v3401 = vrot.slane %v3396, 4
        %v3402 = vsel %vm983, %v3401, %v3384
        %v3403 = vrot.slane %v3384, 4
        %v3404 = vsel %vm983, %v3396, %v3403
        %v3405 = vsel %vm983, %v3009, %v2990
        %v3407 = vunpack.c.l.s4 1983009808
        %v3408 = vunpack.c.0.s8 %v3407
        %v3409 = vperm.slane %v3405, %v3408
        %v3410 = vrot.slane %v3010, 4
        %v3411 = vsel %vm983, %v3410, %v3008
        %v3413 = vunpack.c.l.s4 1983009808
        %v3414 = vunpack.c.0.s8 %v3413
        %v3415 = vperm.slane %v3411, %v3414
        %v3416 = vsel %vm983, %v3013, %v3002
        %v3418 = vunpack.c.l.s4 1983009808
        %v3419 = vunpack.c.0.s8 %v3418
        %v3420 = vperm.slane %v3416, %v3419
        %v3421 = vrot.slane %v3014, 4
        %v3422 = vsel %vm983, %v3421, %v3012
        %v3424 = vunpack.c.l.s4 1983009808
        %v3425 = vunpack.c.0.s8 %v3424
        %v3426 = vperm.slane %v3422, %v3425
        %v3427 = vrot.slane %v3415, 4
        %v3428 = vsel %vm983, %v3427, %v3409
        %v3429 = vrot.slane %v3409, 4
        %v3430 = vsel %vm983, %v3415, %v3429
        %v3432 = vunpack.c.l.s4 1934713408
        %v3433 = vunpack.c.0.s8 %v3432
        %v3434 = vperm.slane %v3428, %v3433
        %v3436 = vunpack.c.l.s4 1934713408
        %v3437 = vunpack.c.0.s8 %v3436
        %v3438 = vperm.slane %v3430, %v3437
        %v3439 = vrot.slane %v3426, 4
        %v3440 = vsel %vm983, %v3439, %v3420
        %v3441 = vrot.slane %v3420, 4
        %v3442 = vsel %vm983, %v3426, %v3441
        %v3444 = vunpack.c.l.s4 1934713408
        %v3445 = vunpack.c.0.s8 %v3444
        %v3446 = vperm.slane %v3440, %v3445
        %v3448 = vunpack.c.l.s4 1934713408
        %v3449 = vunpack.c.0.s8 %v3448
        %v3450 = vperm.slane %v3442, %v3449
        %v3451 = vrot.slane %v3446, 4
        %v3452 = vsel %vm983, %v3451, %v3434
        %v3453 = vrot.slane %v3434, 4
        %v3454 = vsel %vm983, %v3446, %v3453
        %v3455 = vrot.slane %v3450, 4
        %v3456 = vsel %vm983, %v3455, %v3438
        %v3457 = vrot.slane %v3438, 4
        %v3458 = vsel %vm983, %v3450, %v3457
        %v3459 = vsel %vm983, %v3065, %v3046
        %v3461 = vunpack.c.l.s4 1983009808
        %v3462 = vunpack.c.0.s8 %v3461
        %v3463 = vperm.slane %v3459, %v3462
        %v3464 = vrot.slane %v3066, 4
        %v3465 = vsel %vm983, %v3464, %v3064
        %v3467 = vunpack.c.l.s4 1983009808
        %v3468 = vunpack.c.0.s8 %v3467
        %v3469 = vperm.slane %v3465, %v3468
        %v3470 = vsel %vm983, %v3069, %v3058
        %v3472 = vunpack.c.l.s4 1983009808
        %v3473 = vunpack.c.0.s8 %v3472
        %v3474 = vperm.slane %v3470, %v3473
        %v3475 = vrot.slane %v3070, 4
        %v3476 = vsel %vm983, %v3475, %v3068
        %v3478 = vunpack.c.l.s4 1983009808
        %v3479 = vunpack.c.0.s8 %v3478
        %v3480 = vperm.slane %v3476, %v3479
        %v3481 = vrot.slane %v3469, 4
        %v3482 = vsel %vm983, %v3481, %v3463
        %v3483 = vrot.slane %v3463, 4
        %v3484 = vsel %vm983, %v3469, %v3483
        %v3486 = vunpack.c.l.s4 1934713408
        %v3487 = vunpack.c.0.s8 %v3486
        %v3488 = vperm.slane %v3482, %v3487
        %v3490 = vunpack.c.l.s4 1934713408
        %v3491 = vunpack.c.0.s8 %v3490
        %v3492 = vperm.slane %v3484, %v3491
        %v3493 = vrot.slane %v3480, 4
        %v3494 = vsel %vm983, %v3493, %v3474
        %v3495 = vrot.slane %v3474, 4
        %v3496 = vsel %vm983, %v3480, %v3495
        %v3498 = vunpack.c.l.s4 1934713408
        %v3499 = vunpack.c.0.s8 %v3498
        %v3500 = vperm.slane %v3494, %v3499
        %v3502 = vunpack.c.l.s4 1934713408
        %v3503 = vunpack.c.0.s8 %v3502
        %v3504 = vperm.slane %v3496, %v3503
        %v3505 = vrot.slane %v3500, 4
        %v3506 = vsel %vm983, %v3505, %v3488
        %v3507 = vrot.slane %v3488, 4
        %v3508 = vsel %vm983, %v3500, %v3507
        %v3509 = vrot.slane %v3504, 4
        %v3510 = vsel %vm983, %v3509, %v3492
        %v3511 = vrot.slane %v3492, 4
        %v3512 = vsel %vm983, %v3504, %v3511
        %v3513 = vsel %vm983, %v3121, %v3102
        %v3515 = vunpack.c.l.s4 1983009808
        %v3516 = vunpack.c.0.s8 %v3515
        %v3517 = vperm.slane %v3513, %v3516
        %v3518 = vrot.slane %v3122, 4
        %v3519 = vsel %vm983, %v3518, %v3120
        %v3521 = vunpack.c.l.s4 1983009808
        %v3522 = vunpack.c.0.s8 %v3521
        %v3523 = vperm.slane %v3519, %v3522
        %v3524 = vsel %vm983, %v3125, %v3114
        %v3526 = vunpack.c.l.s4 1983009808
        %v3527 = vunpack.c.0.s8 %v3526
        %v3528 = vperm.slane %v3524, %v3527
        %v3529 = vrot.slane %v3126, 4
        %v3530 = vsel %vm983, %v3529, %v3124
        %v3532 = vunpack.c.l.s4 1983009808
        %v3533 = vunpack.c.0.s8 %v3532
        %v3534 = vperm.slane %v3530, %v3533
        %v3535 = vrot.slane %v3523, 4
        %v3536 = vsel %vm983, %v3535, %v3517
        %v3537 = vrot.slane %v3517, 4
        %v3538 = vsel %vm983, %v3523, %v3537
        %v3540 = vunpack.c.l.s4 1934713408
        %v3541 = vunpack.c.0.s8 %v3540
        %v3542 = vperm.slane %v3536, %v3541
        %v3544 = vunpack.c.l.s4 1934713408
        %v3545 = vunpack.c.0.s8 %v3544
        %v3546 = vperm.slane %v3538, %v3545
        %v3547 = vrot.slane %v3534, 4
        %v3548 = vsel %vm983, %v3547, %v3528
        %v3549 = vrot.slane %v3528, 4
        %v3550 = vsel %vm983, %v3534, %v3549
        %v3552 = vunpack.c.l.s4 1934713408
        %v3553 = vunpack.c.0.s8 %v3552
        %v3554 = vperm.slane %v3548, %v3553
        %v3556 = vunpack.c.l.s4 1934713408
        %v3557 = vunpack.c.0.s8 %v3556
        %v3558 = vperm.slane %v3550, %v3557
        %v3559 = vrot.slane %v3554, 4
        %v3560 = vsel %vm983, %v3559, %v3542
        %v3561 = vrot.slane %v3542, 4
        %v3562 = vsel %vm983, %v3554, %v3561
        %v3563 = vrot.slane %v3558, 4
        %v3564 = vsel %vm983, %v3563, %v3546
        %v3565 = vrot.slane %v3546, 4
        %v3566 = vsel %vm983, %v3558, %v3565
        %v3567 = vsel %vm983, %v3177, %v3158
        %v3569 = vunpack.c.l.s4 1983009808
        %v3570 = vunpack.c.0.s8 %v3569
        %v3571 = vperm.slane %v3567, %v3570
        %v3572 = vrot.slane %v3178, 4
        %v3573 = vsel %vm983, %v3572, %v3176
        %v3575 = vunpack.c.l.s4 1983009808
        %v3576 = vunpack.c.0.s8 %v3575
        %v3577 = vperm.slane %v3573, %v3576
        %v3578 = vsel %vm983, %v3181, %v3170
        %v3580 = vunpack.c.l.s4 1983009808
        %v3581 = vunpack.c.0.s8 %v3580
        %v3582 = vperm.slane %v3578, %v3581
        %v3583 = vrot.slane %v3182, 4
        %v3584 = vsel %vm983, %v3583, %v3180
        %v3586 = vunpack.c.l.s4 1983009808
        %v3587 = vunpack.c.0.s8 %v3586
        %v3588 = vperm.slane %v3584, %v3587
        %v3589 = vrot.slane %v3577, 4
        %v3590 = vsel %vm983, %v3589, %v3571
        %v3591 = vrot.slane %v3571, 4
        %v3592 = vsel %vm983, %v3577, %v3591
        %v3594 = vunpack.c.l.s4 1934713408
        %v3595 = vunpack.c.0.s8 %v3594
        %v3596 = vperm.slane %v3590, %v3595
        %v3598 = vunpack.c.l.s4 1934713408
        %v3599 = vunpack.c.0.s8 %v3598
        %v3600 = vperm.slane %v3592, %v3599
        %v3601 = vrot.slane %v3588, 4
        %v3602 = vsel %vm983, %v3601, %v3582
        %v3603 = vrot.slane %v3582, 4
        %v3604 = vsel %vm983, %v3588, %v3603
        %v3606 = vunpack.c.l.s4 1934713408
        %v3607 = vunpack.c.0.s8 %v3606
        %v3608 = vperm.slane %v3602, %v3607
        %v3610 = vunpack.c.l.s4 1934713408
        %v3611 = vunpack.c.0.s8 %v3610
        %v3612 = vperm.slane %v3604, %v3611
        %v3613 = vrot.slane %v3608, 4
        %v3614 = vsel %vm983, %v3613, %v3596
        %v3615 = vrot.slane %v3596, 4
        %v3616 = vsel %vm983, %v3608, %v3615
        %v3617 = vrot.slane %v3612, 4
        %v3618 = vsel %vm983, %v3617, %v3600
        %v3619 = vrot.slane %v3600, 4
        %v3620 = vsel %vm983, %v3612, %v3619
        %v3621 = vsel %vm983, %v3233, %v3214
        %v3623 = vunpack.c.l.s4 1983009808
        %v3624 = vunpack.c.0.s8 %v3623
        %v3625 = vperm.slane %v3621, %v3624
        %v3626 = vrot.slane %v3234, 4
        %v3627 = vsel %vm983, %v3626, %v3232
        %v3629 = vunpack.c.l.s4 1983009808
        %v3630 = vunpack.c.0.s8 %v3629
        %v3631 = vperm.slane %v3627, %v3630
        %v3632 = vsel %vm983, %v3237, %v3226
        %v3634 = vunpack.c.l.s4 1983009808
        %v3635 = vunpack.c.0.s8 %v3634
        %v3636 = vperm.slane %v3632, %v3635
        %v3637 = vrot.slane %v3238, 4
        %v3638 = vsel %vm983, %v3637, %v3236
        %v3640 = vunpack.c.l.s4 1983009808
        %v3641 = vunpack.c.0.s8 %v3640
        %v3642 = vperm.slane %v3638, %v3641
        %v3643 = vrot.slane %v3631, 4
        %v3644 = vsel %vm983, %v3643, %v3625
        %v3645 = vrot.slane %v3625, 4
        %v3646 = vsel %vm983, %v3631, %v3645
        %v3648 = vunpack.c.l.s4 1934713408
        %v3649 = vunpack.c.0.s8 %v3648
        %v3650 = vperm.slane %v3644, %v3649
        %v3652 = vunpack.c.l.s4 1934713408
        %v3653 = vunpack.c.0.s8 %v3652
        %v3654 = vperm.slane %v3646, %v3653
        %v3655 = vrot.slane %v3642, 4
        %v3656 = vsel %vm983, %v3655, %v3636
        %v3657 = vrot.slane %v3636, 4
        %v3658 = vsel %vm983, %v3642, %v3657
        %v3660 = vunpack.c.l.s4 1934713408
        %v3661 = vunpack.c.0.s8 %v3660
        %v3662 = vperm.slane %v3656, %v3661
        %v3664 = vunpack.c.l.s4 1934713408
        %v3665 = vunpack.c.0.s8 %v3664
        %v3666 = vperm.slane %v3658, %v3665
        %v3667 = vrot.slane %v3662, 4
        %v3668 = vsel %vm983, %v3667, %v3650
        %v3669 = vrot.slane %v3650, 4
        %v3670 = vsel %vm983, %v3662, %v3669
        %v3671 = vrot.slane %v3666, 4
        %v3672 = vsel %vm983, %v3671, %v3654
        %v3673 = vrot.slane %v3654, 4
        %v3674 = vsel %vm983, %v3666, %v3673
        %v3675 = vsel %vm983, %v3289, %v3270
        %v3677 = vunpack.c.l.s4 1983009808
        %v3678 = vunpack.c.0.s8 %v3677
        %v3679 = vperm.slane %v3675, %v3678
        %v3680 = vrot.slane %v3290, 4
        %v3681 = vsel %vm983, %v3680, %v3288
        %v3683 = vunpack.c.l.s4 1983009808
        %v3684 = vunpack.c.0.s8 %v3683
        %v3685 = vperm.slane %v3681, %v3684
        %v3686 = vsel %vm983, %v3293, %v3282
        %v3688 = vunpack.c.l.s4 1983009808
        %v3689 = vunpack.c.0.s8 %v3688
        %v3690 = vperm.slane %v3686, %v3689
        %v3691 = vrot.slane %v3294, 4
        %v3692 = vsel %vm983, %v3691, %v3292
        %v3694 = vunpack.c.l.s4 1983009808
        %v3695 = vunpack.c.0.s8 %v3694
        %v3696 = vperm.slane %v3692, %v3695
        %v3697 = vrot.slane %v3685, 4
        %v3698 = vsel %vm983, %v3697, %v3679
        %v3699 = vrot.slane %v3679, 4
        %v3700 = vsel %vm983, %v3685, %v3699
        %v3702 = vunpack.c.l.s4 1934713408
        %v3703 = vunpack.c.0.s8 %v3702
        %v3704 = vperm.slane %v3698, %v3703
        %v3706 = vunpack.c.l.s4 1934713408
        %v3707 = vunpack.c.0.s8 %v3706
        %v3708 = vperm.slane %v3700, %v3707
        %v3709 = vrot.slane %v3696, 4
        %v3710 = vsel %vm983, %v3709, %v3690
        %v3711 = vrot.slane %v3690, 4
        %v3712 = vsel %vm983, %v3696, %v3711
        %v3714 = vunpack.c.l.s4 1934713408
        %v3715 = vunpack.c.0.s8 %v3714
        %v3716 = vperm.slane %v3710, %v3715
        %v3718 = vunpack.c.l.s4 1934713408
        %v3719 = vunpack.c.0.s8 %v3718
        %v3720 = vperm.slane %v3712, %v3719
        %v3721 = vrot.slane %v3716, 4
        %v3722 = vsel %vm983, %v3721, %v3704
        %v3723 = vrot.slane %v3704, 4
        %v3724 = vsel %vm983, %v3716, %v3723
        %v3725 = vrot.slane %v3720, 4
        %v3726 = vsel %vm983, %v3725, %v3708
        %v3727 = vrot.slane %v3708, 4
        %v3728 = vsel %vm983, %v3720, %v3727
        %v3729 = vsel %vm983, %v3345, %v3326
        %v3731 = vunpack.c.l.s4 1983009808
        %v3732 = vunpack.c.0.s8 %v3731
        %v3733 = vperm.slane %v3729, %v3732
        %v3734 = vrot.slane %v3346, 4
        %v3735 = vsel %vm983, %v3734, %v3344
        %v3737 = vunpack.c.l.s4 1983009808
        %v3738 = vunpack.c.0.s8 %v3737
        %v3739 = vperm.slane %v3735, %v3738
        %v3740 = vsel %vm983, %v3349, %v3338
        %v3742 = vunpack.c.l.s4 1983009808
        %v3743 = vunpack.c.0.s8 %v3742
        %v3744 = vperm.slane %v3740, %v3743
        %v3745 = vrot.slane %v3350, 4
        %v3746 = vsel %vm983, %v3745, %v3348
        %v3748 = vunpack.c.l.s4 1983009808
        %v3749 = vunpack.c.0.s8 %v3748
        %v3750 = vperm.slane %v3746, %v3749
        %v3751 = vrot.slane %v3739, 4
        %v3752 = vsel %vm983, %v3751, %v3733
        %v3753 = vrot.slane %v3733, 4
        %v3754 = vsel %vm983, %v3739, %v3753
        %v3756 = vunpack.c.l.s4 1934713408
        %v3757 = vunpack.c.0.s8 %v3756
        %v3758 = vperm.slane %v3752, %v3757
        %v3760 = vunpack.c.l.s4 1934713408
        %v3761 = vunpack.c.0.s8 %v3760
        %v3762 = vperm.slane %v3754, %v3761
        %v3763 = vrot.slane %v3750, 4
        %v3764 = vsel %vm983, %v3763, %v3744
        %v3765 = vrot.slane %v3744, 4
        %v3766 = vsel %vm983, %v3750, %v3765
        %v3768 = vunpack.c.l.s4 1934713408
        %v3769 = vunpack.c.0.s8 %v3768
        %v3770 = vperm.slane %v3764, %v3769
        %v3772 = vunpack.c.l.s4 1934713408
        %v3773 = vunpack.c.0.s8 %v3772
        %v3774 = vperm.slane %v3766, %v3773
        %v3775 = vrot.slane %v3770, 4
        %v3776 = vsel %vm983, %v3775, %v3758
        %v3777 = vrot.slane %v3758, 4
        %v3778 = vsel %vm983, %v3770, %v3777
        %v3779 = vrot.slane %v3774, 4
        %v3780 = vsel %vm983, %v3779, %v3762
        %v3781 = vrot.slane %v3762, 4
        %v3782 = vsel %vm983, %v3774, %v3781
        %vm3783 = vcmask 261120
        %v3785 = vsel %vm3783, %v1478, 0
        %v3788 = vsel %vm3783, %v1532, 0
        %v3791 = vsel %vm3783, %v1586, 0
        %v3794 = vsel %vm3783, %v1640, 0
        %v3797 = vsel %vm3783, %v2438, 0
        %v3800 = vsel %vm3783, %v2492, 0
        %v3803 = vsel %vm3783, %v2546, 0
        %v3806 = vsel %vm3783, %v2600, 0
        %3808 = vmatpush.xpose.msra.mxu0 0.0
        %3809 = vmatpush.xpose.msra.mxu0 0.0
        %3810 = vmatpush.xpose.msra.mxu0 0.0
        %3811 = vmatpush.xpose.msra.mxu0 0.0
        %3812 = vmatpush.xpose.msra.mxu0 0.0
        %3813 = vmatpush.xpose.msra.mxu0 0.0
        %3814 = vmatpush.xpose.msra.mxu0 0.0
        %3815 = vmatpush.xpose.msra.mxu0 0.0
        %3816 = vmatpush.xpose.msra.mxu0 0.0
        %3817 = vmatpush.xpose.msra.mxu0 0.0
        %3818 = vmatpush.xpose.msra.mxu0 0.0
        %3819 = vmatpush.xpose.msra.mxu0 0.0
        %3820 = vmatpush.xpose.msra.mxu0 %v3806
        %3821 = vmatpush.xpose.msra.mxu0 %v3803
        %3822 = vmatpush.xpose.msra.mxu0 %v3800
        %3823 = vmatpush.xpose.msra.mxu0 %v3797
        %3824 = vmatmul.f32.gmra.mxu0 %v3785
        %v3825 = vpop.f32.mrf.mxu0
        %v3826 = vadd.f32 0.0, %v3825
        %3827 = vmatmul.f32.gmra.mxu0 %v3788
        %v3828 = vpop.f32.mrf.mxu0
        %v3829 = vadd.f32 0.0, %v3828
        %3830 = vmatmul.f32.gmra.mxu0 %v3791
        %v3831 = vpop.f32.mrf.mxu0
        %v3832 = vadd.f32 0.0, %v3831
        %3833 = vmatmul.f32.gmra.mxu0 %v3794
        %v3834 = vpop.f32.mrf.mxu0
        %v3835 = vadd.f32 0.0, %v3834
        %3836 = vdwg.mxu0
        %v3838 = vsel %vm3783, %v1480, 0
        %v3841 = vsel %vm3783, %v1534, 0
        %v3844 = vsel %vm3783, %v1588, 0
        %v3847 = vsel %vm3783, %v1642, 0
        %v3850 = vsel %vm3783, %v2440, 0
        %v3853 = vsel %vm3783, %v2494, 0
        %v3856 = vsel %vm3783, %v2548, 0
        %v3859 = vsel %vm3783, %v2602, 0
        %3861 = vmatpush.xpose.msra.mxu0 0.0
        %3862 = vmatpush.xpose.msra.mxu0 0.0
        %3863 = vmatpush.xpose.msra.mxu0 0.0
        %3864 = vmatpush.xpose.msra.mxu0 0.0
        %3865 = vmatpush.xpose.msra.mxu0 0.0
        %3866 = vmatpush.xpose.msra.mxu0 0.0
        %3867 = vmatpush.xpose.msra.mxu0 0.0
        %3868 = vmatpush.xpose.msra.mxu0 0.0
        %3869 = vmatpush.xpose.msra.mxu0 0.0
        %3870 = vmatpush.xpose.msra.mxu0 0.0
        %3871 = vmatpush.xpose.msra.mxu0 0.0
        %3872 = vmatpush.xpose.msra.mxu0 0.0
        %3873 = vmatpush.xpose.msra.mxu0 %v3859
        %3874 = vmatpush.xpose.msra.mxu0 %v3856
        %3875 = vmatpush.xpose.msra.mxu0 %v3853
        %3876 = vmatpush.xpose.msra.mxu0 %v3850
        %3877 = vmatmul.f32.gmra.mxu0 %v3838
        %v3878 = vpop.f32.mrf.mxu0
        %v3879 = vadd.f32 0.0, %v3878
        %3880 = vmatmul.f32.gmra.mxu0 %v3841
        %v3881 = vpop.f32.mrf.mxu0
        %v3882 = vadd.f32 0.0, %v3881
        %3883 = vmatmul.f32.gmra.mxu0 %v3844
        %v3884 = vpop.f32.mrf.mxu0
        %v3885 = vadd.f32 0.0, %v3884
        %3886 = vmatmul.f32.gmra.mxu0 %v3847
        %v3887 = vpop.f32.mrf.mxu0
        %v3888 = vadd.f32 0.0, %v3887
        %3889 = vdwg.mxu0
        %v3891 = vsel %vm3783, %v1482, 0
        %v3894 = vsel %vm3783, %v1536, 0
        %v3897 = vsel %vm3783, %v1590, 0
        %v3900 = vsel %vm3783, %v1644, 0
        %v3903 = vsel %vm3783, %v2442, 0
        %v3906 = vsel %vm3783, %v2496, 0
        %v3909 = vsel %vm3783, %v2550, 0
        %v3912 = vsel %vm3783, %v2604, 0
        %3914 = vmatpush.xpose.msra.mxu0 0.0
        %3915 = vmatpush.xpose.msra.mxu0 0.0
        %3916 = vmatpush.xpose.msra.mxu0 0.0
        %3917 = vmatpush.xpose.msra.mxu0 0.0
        %3918 = vmatpush.xpose.msra.mxu0 0.0
        %3919 = vmatpush.xpose.msra.mxu0 0.0
        %3920 = vmatpush.xpose.msra.mxu0 0.0
        %3921 = vmatpush.xpose.msra.mxu0 0.0
        %3922 = vmatpush.xpose.msra.mxu0 0.0
        %3923 = vmatpush.xpose.msra.mxu0 0.0
        %3924 = vmatpush.xpose.msra.mxu0 0.0
        %3925 = vmatpush.xpose.msra.mxu0 0.0
        %3926 = vmatpush.xpose.msra.mxu0 %v3912
        %3927 = vmatpush.xpose.msra.mxu0 %v3909
        %3928 = vmatpush.xpose.msra.mxu0 %v3906
        %3929 = vmatpush.xpose.msra.mxu0 %v3903
        %3930 = vmatmul.f32.gmra.mxu0 %v3891
        %v3931 = vpop.f32.mrf.mxu0
        %v3932 = vadd.f32 0.0, %v3931
        %3933 = vmatmul.f32.gmra.mxu0 %v3894
        %v3934 = vpop.f32.mrf.mxu0
        %v3935 = vadd.f32 0.0, %v3934
        %3936 = vmatmul.f32.gmra.mxu0 %v3897
        %v3937 = vpop.f32.mrf.mxu0
        %v3938 = vadd.f32 0.0, %v3937
        %3939 = vmatmul.f32.gmra.mxu0 %v3900
        %v3940 = vpop.f32.mrf.mxu0
        %v3941 = vadd.f32 0.0, %v3940
        %3942 = vdwg.mxu0
        %v3944 = vsel %vm3783, %v1484, 0
        %v3947 = vsel %vm3783, %v1538, 0
        %v3950 = vsel %vm3783, %v1592, 0
        %v3953 = vsel %vm3783, %v1646, 0
        %v3956 = vsel %vm3783, %v2444, 0
        %v3959 = vsel %vm3783, %v2498, 0
        %v3962 = vsel %vm3783, %v2552, 0
        %v3965 = vsel %vm3783, %v2606, 0
        %3967 = vmatpush.xpose.msra.mxu0 0.0
        %3968 = vmatpush.xpose.msra.mxu0 0.0
        %3969 = vmatpush.xpose.msra.mxu0 0.0
        %3970 = vmatpush.xpose.msra.mxu0 0.0
        %3971 = vmatpush.xpose.msra.mxu0 0.0
        %3972 = vmatpush.xpose.msra.mxu0 0.0
        %3973 = vmatpush.xpose.msra.mxu0 0.0
        %3974 = vmatpush.xpose.msra.mxu0 0.0
        %3975 = vmatpush.xpose.msra.mxu0 0.0
        %3976 = vmatpush.xpose.msra.mxu0 0.0
        %3977 = vmatpush.xpose.msra.mxu0 0.0
        %3978 = vmatpush.xpose.msra.mxu0 0.0
        %3979 = vmatpush.xpose.msra.mxu0 %v3965
        %3980 = vmatpush.xpose.msra.mxu0 %v3962
        %3981 = vmatpush.xpose.msra.mxu0 %v3959
        %3982 = vmatpush.xpose.msra.mxu0 %v3956
        %3983 = vmatmul.f32.gmra.mxu0 %v3944
        %v3984 = vpop.f32.mrf.mxu0
        %v3985 = vadd.f32 0.0, %v3984
        %3986 = vmatmul.f32.gmra.mxu0 %v3947
        %v3987 = vpop.f32.mrf.mxu0
        %v3988 = vadd.f32 0.0, %v3987
        %3989 = vmatmul.f32.gmra.mxu0 %v3950
        %v3990 = vpop.f32.mrf.mxu0
        %v3991 = vadd.f32 0.0, %v3990
        %3992 = vmatmul.f32.gmra.mxu0 %v3953
        %v3993 = vpop.f32.mrf.mxu0
        %v3994 = vadd.f32 0.0, %v3993
        %3995 = vdwg.mxu0
        %v3997 = vsel %vm3783, %v1694, 0
        %v4000 = vsel %vm3783, %v1748, 0
        %v4003 = vsel %vm3783, %v1802, 0
        %v4006 = vsel %vm3783, %v1856, 0
        %v4009 = vsel %vm3783, %v2654, 0
        %v4012 = vsel %vm3783, %v2708, 0
        %v4015 = vsel %vm3783, %v2762, 0
        %v4018 = vsel %vm3783, %v2816, 0
        %4020 = vmatpush.xpose.msra.mxu0 0.0
        %4021 = vmatpush.xpose.msra.mxu0 0.0
        %4022 = vmatpush.xpose.msra.mxu0 0.0
        %4023 = vmatpush.xpose.msra.mxu0 0.0
        %4024 = vmatpush.xpose.msra.mxu0 0.0
        %4025 = vmatpush.xpose.msra.mxu0 0.0
        %4026 = vmatpush.xpose.msra.mxu0 0.0
        %4027 = vmatpush.xpose.msra.mxu0 0.0
        %4028 = vmatpush.xpose.msra.mxu0 0.0
        %4029 = vmatpush.xpose.msra.mxu0 0.0
        %4030 = vmatpush.xpose.msra.mxu0 0.0
        %4031 = vmatpush.xpose.msra.mxu0 0.0
        %4032 = vmatpush.xpose.msra.mxu0 %v4018
        %4033 = vmatpush.xpose.msra.mxu0 %v4015
        %4034 = vmatpush.xpose.msra.mxu0 %v4012
        %4035 = vmatpush.xpose.msra.mxu0 %v4009
        %4036 = vmatmul.f32.gmra.mxu0 %v3997
        %v4037 = vpop.f32.mrf.mxu0
        %v4038 = vadd.f32 0.0, %v4037
        %4039 = vmatmul.f32.gmra.mxu0 %v4000
        %v4040 = vpop.f32.mrf.mxu0
        %v4041 = vadd.f32 0.0, %v4040
        %4042 = vmatmul.f32.gmra.mxu0 %v4003
        %v4043 = vpop.f32.mrf.mxu0
        %v4044 = vadd.f32 0.0, %v4043
        %4045 = vmatmul.f32.gmra.mxu0 %v4006
        %v4046 = vpop.f32.mrf.mxu0
        %v4047 = vadd.f32 0.0, %v4046
        %4048 = vdwg.mxu0
        %v4050 = vsel %vm3783, %v1696, 0
        %v4053 = vsel %vm3783, %v1750, 0
        %v4056 = vsel %vm3783, %v1804, 0
        %v4059 = vsel %vm3783, %v1858, 0
        %v4062 = vsel %vm3783, %v2656, 0
        %v4065 = vsel %vm3783, %v2710, 0
        %v4068 = vsel %vm3783, %v2764, 0
        %v4071 = vsel %vm3783, %v2818, 0
        %4073 = vmatpush.xpose.msra.mxu0 0.0
        %4074 = vmatpush.xpose.msra.mxu0 0.0
        %4075 = vmatpush.xpose.msra.mxu0 0.0
        %4076 = vmatpush.xpose.msra.mxu0 0.0
        %4077 = vmatpush.xpose.msra.mxu0 0.0
        %4078 = vmatpush.xpose.msra.mxu0 0.0
        %4079 = vmatpush.xpose.msra.mxu0 0.0
        %4080 = vmatpush.xpose.msra.mxu0 0.0
        %4081 = vmatpush.xpose.msra.mxu0 0.0
        %4082 = vmatpush.xpose.msra.mxu0 0.0
        %4083 = vmatpush.xpose.msra.mxu0 0.0
        %4084 = vmatpush.xpose.msra.mxu0 0.0
        %4085 = vmatpush.xpose.msra.mxu0 %v4071
        %4086 = vmatpush.xpose.msra.mxu0 %v4068
        %4087 = vmatpush.xpose.msra.mxu0 %v4065
        %4088 = vmatpush.xpose.msra.mxu0 %v4062
        %4089 = vmatmul.f32.gmra.mxu0 %v4050
        %v4090 = vpop.f32.mrf.mxu0
        %v4091 = vadd.f32 0.0, %v4090
        %4092 = vmatmul.f32.gmra.mxu0 %v4053
        %v4093 = vpop.f32.mrf.mxu0
        %v4094 = vadd.f32 0.0, %v4093
        %4095 = vmatmul.f32.gmra.mxu0 %v4056
        %v4096 = vpop.f32.mrf.mxu0
        %v4097 = vadd.f32 0.0, %v4096
        %4098 = vmatmul.f32.gmra.mxu0 %v4059
        %v4099 = vpop.f32.mrf.mxu0
        %v4100 = vadd.f32 0.0, %v4099
        %4101 = vdwg.mxu0
        %v4103 = vsel %vm3783, %v1698, 0
        %v4106 = vsel %vm3783, %v1752, 0
        %v4109 = vsel %vm3783, %v1806, 0
        %v4112 = vsel %vm3783, %v1860, 0
        %v4115 = vsel %vm3783, %v2658, 0
        %v4118 = vsel %vm3783, %v2712, 0
        %v4121 = vsel %vm3783, %v2766, 0
        %v4124 = vsel %vm3783, %v2820, 0
        %4126 = vmatpush.xpose.msra.mxu0 0.0
        %4127 = vmatpush.xpose.msra.mxu0 0.0
        %4128 = vmatpush.xpose.msra.mxu0 0.0
        %4129 = vmatpush.xpose.msra.mxu0 0.0
        %4130 = vmatpush.xpose.msra.mxu0 0.0
        %4131 = vmatpush.xpose.msra.mxu0 0.0
        %4132 = vmatpush.xpose.msra.mxu0 0.0
        %4133 = vmatpush.xpose.msra.mxu0 0.0
        %4134 = vmatpush.xpose.msra.mxu0 0.0
        %4135 = vmatpush.xpose.msra.mxu0 0.0
        %4136 = vmatpush.xpose.msra.mxu0 0.0
        %4137 = vmatpush.xpose.msra.mxu0 0.0
        %4138 = vmatpush.xpose.msra.mxu0 %v4124
        %4139 = vmatpush.xpose.msra.mxu0 %v4121
        %4140 = vmatpush.xpose.msra.mxu0 %v4118
        %4141 = vmatpush.xpose.msra.mxu0 %v4115
        %4142 = vmatmul.f32.gmra.mxu0 %v4103
        %v4143 = vpop.f32.mrf.mxu0
        %v4144 = vadd.f32 0.0, %v4143
        %4145 = vmatmul.f32.gmra.mxu0 %v4106
        %v4146 = vpop.f32.mrf.mxu0
        %v4147 = vadd.f32 0.0, %v4146
        %4148 = vmatmul.f32.gmra.mxu0 %v4109
        %v4149 = vpop.f32.mrf.mxu0
        %v4150 = vadd.f32 0.0, %v4149
        %4151 = vmatmul.f32.gmra.mxu0 %v4112
        %v4152 = vpop.f32.mrf.mxu0
        %v4153 = vadd.f32 0.0, %v4152
        %4154 = vdwg.mxu0
        %v4156 = vsel %vm3783, %v1700, 0
        %v4159 = vsel %vm3783, %v1754, 0
        %v4162 = vsel %vm3783, %v1808, 0
        %v4165 = vsel %vm3783, %v1862, 0
        %v4168 = vsel %vm3783, %v2660, 0
        %v4171 = vsel %vm3783, %v2714, 0
        %v4174 = vsel %vm3783, %v2768, 0
        %v4177 = vsel %vm3783, %v2822, 0
        %4179 = vmatpush.xpose.msra.mxu0 0.0
        %4180 = vmatpush.xpose.msra.mxu0 0.0
        %4181 = vmatpush.xpose.msra.mxu0 0.0
        %4182 = vmatpush.xpose.msra.mxu0 0.0
        %4183 = vmatpush.xpose.msra.mxu0 0.0
        %4184 = vmatpush.xpose.msra.mxu0 0.0
        %4185 = vmatpush.xpose.msra.mxu0 0.0
        %4186 = vmatpush.xpose.msra.mxu0 0.0
        %4187 = vmatpush.xpose.msra.mxu0 0.0
        %4188 = vmatpush.xpose.msra.mxu0 0.0
        %4189 = vmatpush.xpose.msra.mxu0 0.0
        %4190 = vmatpush.xpose.msra.mxu0 0.0
        %4191 = vmatpush.xpose.msra.mxu0 %v4177
        %4192 = vmatpush.xpose.msra.mxu0 %v4174
        %4193 = vmatpush.xpose.msra.mxu0 %v4171
        %4194 = vmatpush.xpose.msra.mxu0 %v4168
        %4195 = vmatmul.f32.gmra.mxu0 %v4156
        %v4196 = vpop.f32.mrf.mxu0
        %v4197 = vadd.f32 0.0, %v4196
        %4198 = vmatmul.f32.gmra.mxu0 %v4159
        %v4199 = vpop.f32.mrf.mxu0
        %v4200 = vadd.f32 0.0, %v4199
        %4201 = vmatmul.f32.gmra.mxu0 %v4162
        %v4202 = vpop.f32.mrf.mxu0
        %v4203 = vadd.f32 0.0, %v4202
        %4204 = vmatmul.f32.gmra.mxu0 %v4165
        %v4205 = vpop.f32.mrf.mxu0
        %v4206 = vadd.f32 0.0, %v4205
        %4207 = vdwg.mxu0
        %v4208 = vlaneseq
        %v4209 = vshrl.u32 %v4208, 7
        %v4210 = vadd.s32 %v4209, 8
        %v4211 = vadd.s32 %v4209, 16
        %v4212 = vadd.s32 %v4209, 24
        %v4213 = vlaneseq
        %v4214 = vand.u32 %v4213, 127
        %vm4215 = vcmp.le.s32.totalorder %v4214, %v4209
        %vm4216 = vcmp.le.s32.totalorder %v4214, %v4210
        %vm4217 = vcmp.le.s32.totalorder %v4214, %v4211
        %vm4218 = vcmp.le.s32.totalorder %v4214, %v4212
        %v4219 = vsel %vm4215, 1, 0
        %v4220 = vsel %vm4216, 1, 0
        %v4221 = vsel %vm4217, 1, 0
        %v4222 = vsel %vm4218, 1, 0
        %vm4223 = vcmp.eq.s32.totalorder %v4219, 1
        %vm4224 = vcmp.eq.s32.totalorder %v4220, 1
        %vm4225 = vcmp.eq.s32.totalorder %v4221, 1
        %vm4226 = vcmp.eq.s32.totalorder %v4222, 1
        %v4227 = vsel %vm4223, %v3826, -1e+30
        %v4228 = vsel %vm4224, %v3829, -1e+30
        %v4229 = vsel %vm4225, %v3832, -1e+30
        %v4230 = vsel %vm4226, %v3835, -1e+30
        %v4231 = vsel %vm4223, %v3879, -1e+30
        %v4232 = vsel %vm4224, %v3882, -1e+30
        %v4233 = vsel %vm4225, %v3885, -1e+30
        %v4234 = vsel %vm4226, %v3888, -1e+30
        %v4235 = vsel %vm4223, %v3932, -1e+30
        %v4236 = vsel %vm4224, %v3935, -1e+30
        %v4237 = vsel %vm4225, %v3938, -1e+30
        %v4238 = vsel %vm4226, %v3941, -1e+30
        %v4239 = vsel %vm4223, %v3985, -1e+30
        %v4240 = vsel %vm4224, %v3988, -1e+30
        %v4241 = vsel %vm4225, %v3991, -1e+30
        %v4242 = vsel %vm4226, %v3994, -1e+30
        %v4243 = vsel %vm4223, %v4038, -1e+30
        %v4244 = vsel %vm4224, %v4041, -1e+30
        %v4245 = vsel %vm4225, %v4044, -1e+30
        %v4246 = vsel %vm4226, %v4047, -1e+30
        %v4247 = vsel %vm4223, %v4091, -1e+30
        %v4248 = vsel %vm4224, %v4094, -1e+30
        %v4249 = vsel %vm4225, %v4097, -1e+30
        %v4250 = vsel %vm4226, %v4100, -1e+30
        %v4251 = vsel %vm4223, %v4144, -1e+30
        %v4252 = vsel %vm4224, %v4147, -1e+30
        %v4253 = vsel %vm4225, %v4150, -1e+30
        %v4254 = vsel %vm4226, %v4153, -1e+30
        %v4255 = vsel %vm4223, %v4197, -1e+30
        %v4256 = vsel %vm4224, %v4200, -1e+30
        %v4257 = vsel %vm4225, %v4203, -1e+30
        %v4258 = vsel %vm4226, %v4206, -1e+30
        %v4259 = vsel %vm3783, %v4227, -inf
        %4260 = vmax.xlane.f32.xlu0 %v4259
        %v4261 = vpop.xlane.xlu0 %4260
        %v4262 = vsel %vm3783, %v4228, -inf
        %4263 = vmax.xlane.f32.xlu0 %v4262
        %v4264 = vpop.xlane.xlu0 %4263
        %v4265 = vsel %vm3783, %v4229, -inf
        %4266 = vmax.xlane.f32.xlu0 %v4265
        %v4267 = vpop.xlane.xlu0 %4266
        %v4268 = vsel %vm3783, %v4230, -inf
        %4269 = vmax.xlane.f32.xlu0 %v4268
        %v4270 = vpop.xlane.xlu0 %4269
        %v4271 = vsel %vm3783, %v4231, -inf
        %4272 = vmax.xlane.f32.xlu0 %v4271
        %v4273 = vpop.xlane.xlu0 %4272
        %v4274 = vsel %vm3783, %v4232, -inf
        %4275 = vmax.xlane.f32.xlu0 %v4274
        %v4276 = vpop.xlane.xlu0 %4275
        %v4277 = vsel %vm3783, %v4233, -inf
        %4278 = vmax.xlane.f32.xlu0 %v4277
        %v4279 = vpop.xlane.xlu0 %4278
        %v4280 = vsel %vm3783, %v4234, -inf
        %4281 = vmax.xlane.f32.xlu0 %v4280
        %v4282 = vpop.xlane.xlu0 %4281
        %v4283 = vsel %vm3783, %v4235, -inf
        %4284 = vmax.xlane.f32.xlu0 %v4283
        %v4285 = vpop.xlane.xlu0 %4284
        %v4286 = vsel %vm3783, %v4236, -inf
        %4287 = vmax.xlane.f32.xlu0 %v4286
        %v4288 = vpop.xlane.xlu0 %4287
        %v4289 = vsel %vm3783, %v4237, -inf
        %4290 = vmax.xlane.f32.xlu0 %v4289
        %v4291 = vpop.xlane.xlu0 %4290
        %v4292 = vsel %vm3783, %v4238, -inf
        %4293 = vmax.xlane.f32.xlu0 %v4292
        %v4294 = vpop.xlane.xlu0 %4293
        %v4295 = vsel %vm3783, %v4239, -inf
        %4296 = vmax.xlane.f32.xlu0 %v4295
        %v4297 = vpop.xlane.xlu0 %4296
        %v4298 = vsel %vm3783, %v4240, -inf
        %4299 = vmax.xlane.f32.xlu0 %v4298
        %v4300 = vpop.xlane.xlu0 %4299
        %v4301 = vsel %vm3783, %v4241, -inf
        %4302 = vmax.xlane.f32.xlu0 %v4301
        %v4303 = vpop.xlane.xlu0 %4302
        %v4304 = vsel %vm3783, %v4242, -inf
        %4305 = vmax.xlane.f32.xlu0 %v4304
        %v4306 = vpop.xlane.xlu0 %4305
        %v4307 = vsel %vm3783, %v4243, -inf
        %4308 = vmax.xlane.f32.xlu0 %v4307
        %v4309 = vpop.xlane.xlu0 %4308
        %v4310 = vsel %vm3783, %v4244, -inf
        %4311 = vmax.xlane.f32.xlu0 %v4310
        %v4312 = vpop.xlane.xlu0 %4311
        %v4313 = vsel %vm3783, %v4245, -inf
        %4314 = vmax.xlane.f32.xlu0 %v4313
        %v4315 = vpop.xlane.xlu0 %4314
        %v4316 = vsel %vm3783, %v4246, -inf
        %4317 = vmax.xlane.f32.xlu0 %v4316
        %v4318 = vpop.xlane.xlu0 %4317
        %v4319 = vsel %vm3783, %v4247, -inf
        %4320 = vmax.xlane.f32.xlu0 %v4319
        %v4321 = vpop.xlane.xlu0 %4320
        %v4322 = vsel %vm3783, %v4248, -inf
        %4323 = vmax.xlane.f32.xlu0 %v4322
        %v4324 = vpop.xlane.xlu0 %4323
        %v4325 = vsel %vm3783, %v4249, -inf
        %4326 = vmax.xlane.f32.xlu0 %v4325
        %v4327 = vpop.xlane.xlu0 %4326
        %v4328 = vsel %vm3783, %v4250, -inf
        %4329 = vmax.xlane.f32.xlu0 %v4328
        %v4330 = vpop.xlane.xlu0 %4329
        %v4331 = vsel %vm3783, %v4251, -inf
        %4332 = vmax.xlane.f32.xlu0 %v4331
        %v4333 = vpop.xlane.xlu0 %4332
        %v4334 = vsel %vm3783, %v4252, -inf
        %4335 = vmax.xlane.f32.xlu0 %v4334
        %v4336 = vpop.xlane.xlu0 %4335
        %v4337 = vsel %vm3783, %v4253, -inf
        %4338 = vmax.xlane.f32.xlu0 %v4337
        %v4339 = vpop.xlane.xlu0 %4338
        %v4340 = vsel %vm3783, %v4254, -inf
        %4341 = vmax.xlane.f32.xlu0 %v4340
        %v4342 = vpop.xlane.xlu0 %4341
        %v4343 = vsel %vm3783, %v4255, -inf
        %4344 = vmax.xlane.f32.xlu0 %v4343
        %v4345 = vpop.xlane.xlu0 %4344
        %v4346 = vsel %vm3783, %v4256, -inf
        %4347 = vmax.xlane.f32.xlu0 %v4346
        %v4348 = vpop.xlane.xlu0 %4347
        %v4349 = vsel %vm3783, %v4257, -inf
        %4350 = vmax.xlane.f32.xlu0 %v4349
        %v4351 = vpop.xlane.xlu0 %4350
        %v4352 = vsel %vm3783, %v4258, -inf
        %4353 = vmax.xlane.f32.xlu0 %v4352
        %v4354 = vpop.xlane.xlu0 %4353
        %v4355 = vsub.f32 %v4227, %v4261
        %v4356 = vsub.f32 %v4228, %v4264
        %v4357 = vsub.f32 %v4229, %v4267
        %v4358 = vsub.f32 %v4230, %v4270
        %v4359 = vsub.f32 %v4231, %v4273
        %v4360 = vsub.f32 %v4232, %v4276
        %v4361 = vsub.f32 %v4233, %v4279
        %v4362 = vsub.f32 %v4234, %v4282
        %v4363 = vsub.f32 %v4235, %v4285
        %v4364 = vsub.f32 %v4236, %v4288
        %v4365 = vsub.f32 %v4237, %v4291
        %v4366 = vsub.f32 %v4238, %v4294
        %v4367 = vsub.f32 %v4239, %v4297
        %v4368 = vsub.f32 %v4240, %v4300
        %v4369 = vsub.f32 %v4241, %v4303
        %v4370 = vsub.f32 %v4242, %v4306
        %v4371 = vsub.f32 %v4243, %v4309
        %v4372 = vsub.f32 %v4244, %v4312
        %v4373 = vsub.f32 %v4245, %v4315
        %v4374 = vsub.f32 %v4246, %v4318
        %v4375 = vsub.f32 %v4247, %v4321
        %v4376 = vsub.f32 %v4248, %v4324
        %v4377 = vsub.f32 %v4249, %v4327
        %v4378 = vsub.f32 %v4250, %v4330
        %v4379 = vsub.f32 %v4251, %v4333
        %v4380 = vsub.f32 %v4252, %v4336
        %v4381 = vsub.f32 %v4253, %v4339
        %v4382 = vsub.f32 %v4254, %v4342
        %v4383 = vsub.f32 %v4255, %v4345
        %v4384 = vsub.f32 %v4256, %v4348
        %v4385 = vsub.f32 %v4257, %v4351
        %v4386 = vsub.f32 %v4258, %v4354
        %v4387 = vmul.f32 %v4355, 1.442695
        %v4388 = vpow.pop %v4387
        %v4389 = vmul.f32 %v4356, 1.442695
        %v4390 = vpow.pop %v4389
        %v4391 = vmul.f32 %v4357, 1.442695
        %v4392 = vpow.pop %v4391
        %v4393 = vmul.f32 %v4358, 1.442695
        %v4394 = vpow.pop %v4393
        %v4395 = vmul.f32 %v4359, 1.442695
        %v4396 = vpow.pop %v4395
        %v4397 = vmul.f32 %v4360, 1.442695
        %v4398 = vpow.pop %v4397
        %v4399 = vmul.f32 %v4361, 1.442695
        %v4400 = vpow.pop %v4399
        %v4401 = vmul.f32 %v4362, 1.442695
        %v4402 = vpow.pop %v4401
        %v4403 = vmul.f32 %v4363, 1.442695
        %v4404 = vpow.pop %v4403
        %v4405 = vmul.f32 %v4364, 1.442695
        %v4406 = vpow.pop %v4405
        %v4407 = vmul.f32 %v4365, 1.442695
        %v4408 = vpow.pop %v4407
        %v4409 = vmul.f32 %v4366, 1.442695
        %v4410 = vpow.pop %v4409
        %v4411 = vmul.f32 %v4367, 1.442695
        %v4412 = vpow.pop %v4411
        %v4413 = vmul.f32 %v4368, 1.442695
        %v4414 = vpow.pop %v4413
        %v4415 = vmul.f32 %v4369, 1.442695
        %v4416 = vpow.pop %v4415
        %v4417 = vmul.f32 %v4370, 1.442695
        %v4418 = vpow.pop %v4417
        %v4419 = vmul.f32 %v4371, 1.442695
        %v4420 = vpow.pop %v4419
        %v4421 = vmul.f32 %v4372, 1.442695
        %v4422 = vpow.pop %v4421
        %v4423 = vmul.f32 %v4373, 1.442695
        %v4424 = vpow.pop %v4423
        %v4425 = vmul.f32 %v4374, 1.442695
        %v4426 = vpow.pop %v4425
        %v4427 = vmul.f32 %v4375, 1.442695
        %v4428 = vpow.pop %v4427
        %v4429 = vmul.f32 %v4376, 1.442695
        %v4430 = vpow.pop %v4429
        %v4431 = vmul.f32 %v4377, 1.442695
        %v4432 = vpow.pop %v4431
        %v4433 = vmul.f32 %v4378, 1.442695
        %v4434 = vpow.pop %v4433
        %v4435 = vmul.f32 %v4379, 1.442695
        %v4436 = vpow.pop %v4435
        %v4437 = vmul.f32 %v4380, 1.442695
        %v4438 = vpow.pop %v4437
        %v4439 = vmul.f32 %v4381, 1.442695
        %v4440 = vpow.pop %v4439
        %v4441 = vmul.f32 %v4382, 1.442695
        %v4442 = vpow.pop %v4441
        %v4443 = vmul.f32 %v4383, 1.442695
        %v4444 = vpow.pop %v4443
        %v4445 = vmul.f32 %v4384, 1.442695
        %v4446 = vpow.pop %v4445
        %v4447 = vmul.f32 %v4385, 1.442695
        %v4448 = vpow.pop %v4447
        %v4449 = vmul.f32 %v4386, 1.442695
        %v4450 = vpow.pop %v4449
        %v4451 = vsel %vm3783, %v4388, 0.0
        %4452 = vadd.xlane.f32.xlu0 %v4451
        %v4453 = vpop.xlane.xlu0 %4452
        %v4454 = vsel %vm3783, %v4390, 0.0
        %4455 = vadd.xlane.f32.xlu0 %v4454
        %v4456 = vpop.xlane.xlu0 %4455
        %v4457 = vsel %vm3783, %v4392, 0.0
        %4458 = vadd.xlane.f32.xlu0 %v4457
        %v4459 = vpop.xlane.xlu0 %4458
        %v4460 = vsel %vm3783, %v4394, 0.0
        %4461 = vadd.xlane.f32.xlu0 %v4460
        %v4462 = vpop.xlane.xlu0 %4461
        %v4463 = vsel %vm3783, %v4396, 0.0
        %4464 = vadd.xlane.f32.xlu0 %v4463
        %v4465 = vpop.xlane.xlu0 %4464
        %v4466 = vsel %vm3783, %v4398, 0.0
        %4467 = vadd.xlane.f32.xlu0 %v4466
        %v4468 = vpop.xlane.xlu0 %4467
        %v4469 = vsel %vm3783, %v4400, 0.0
        %4470 = vadd.xlane.f32.xlu0 %v4469
        %v4471 = vpop.xlane.xlu0 %4470
        %v4472 = vsel %vm3783, %v4402, 0.0
        %4473 = vadd.xlane.f32.xlu0 %v4472
        %v4474 = vpop.xlane.xlu0 %4473
        %v4475 = vsel %vm3783, %v4404, 0.0
        %4476 = vadd.xlane.f32.xlu0 %v4475
        %v4477 = vpop.xlane.xlu0 %4476
        %v4478 = vsel %vm3783, %v4406, 0.0
        %4479 = vadd.xlane.f32.xlu0 %v4478
        %v4480 = vpop.xlane.xlu0 %4479
        %v4481 = vsel %vm3783, %v4408, 0.0
        %4482 = vadd.xlane.f32.xlu0 %v4481
        %v4483 = vpop.xlane.xlu0 %4482
        %v4484 = vsel %vm3783, %v4410, 0.0
        %4485 = vadd.xlane.f32.xlu0 %v4484
        %v4486 = vpop.xlane.xlu0 %4485
        %v4487 = vsel %vm3783, %v4412, 0.0
        %4488 = vadd.xlane.f32.xlu0 %v4487
        %v4489 = vpop.xlane.xlu0 %4488
        %v4490 = vsel %vm3783, %v4414, 0.0
        %4491 = vadd.xlane.f32.xlu0 %v4490
        %v4492 = vpop.xlane.xlu0 %4491
        %v4493 = vsel %vm3783, %v4416, 0.0
        %4494 = vadd.xlane.f32.xlu0 %v4493
        %v4495 = vpop.xlane.xlu0 %4494
        %v4496 = vsel %vm3783, %v4418, 0.0
        %4497 = vadd.xlane.f32.xlu0 %v4496
        %v4498 = vpop.xlane.xlu0 %4497
        %v4499 = vsel %vm3783, %v4420, 0.0
        %4500 = vadd.xlane.f32.xlu0 %v4499
        %v4501 = vpop.xlane.xlu0 %4500
        %v4502 = vsel %vm3783, %v4422, 0.0
        %4503 = vadd.xlane.f32.xlu0 %v4502
        %v4504 = vpop.xlane.xlu0 %4503
        %v4505 = vsel %vm3783, %v4424, 0.0
        %4506 = vadd.xlane.f32.xlu0 %v4505
        %v4507 = vpop.xlane.xlu0 %4506
        %v4508 = vsel %vm3783, %v4426, 0.0
        %4509 = vadd.xlane.f32.xlu0 %v4508
        %v4510 = vpop.xlane.xlu0 %4509
        %v4511 = vsel %vm3783, %v4428, 0.0
        %4512 = vadd.xlane.f32.xlu0 %v4511
        %v4513 = vpop.xlane.xlu0 %4512
        %v4514 = vsel %vm3783, %v4430, 0.0
        %4515 = vadd.xlane.f32.xlu0 %v4514
        %v4516 = vpop.xlane.xlu0 %4515
        %v4517 = vsel %vm3783, %v4432, 0.0
        %4518 = vadd.xlane.f32.xlu0 %v4517
        %v4519 = vpop.xlane.xlu0 %4518
        %v4520 = vsel %vm3783, %v4434, 0.0
        %4521 = vadd.xlane.f32.xlu0 %v4520
        %v4522 = vpop.xlane.xlu0 %4521
        %v4523 = vsel %vm3783, %v4436, 0.0
        %4524 = vadd.xlane.f32.xlu0 %v4523
        %v4525 = vpop.xlane.xlu0 %4524
        %v4526 = vsel %vm3783, %v4438, 0.0
        %4527 = vadd.xlane.f32.xlu0 %v4526
        %v4528 = vpop.xlane.xlu0 %4527
        %v4529 = vsel %vm3783, %v4440, 0.0
        %4530 = vadd.xlane.f32.xlu0 %v4529
        %v4531 = vpop.xlane.xlu0 %4530
        %v4532 = vsel %vm3783, %v4442, 0.0
        %4533 = vadd.xlane.f32.xlu0 %v4532
        %v4534 = vpop.xlane.xlu0 %4533
        %v4535 = vsel %vm3783, %v4444, 0.0
        %4536 = vadd.xlane.f32.xlu0 %v4535
        %v4537 = vpop.xlane.xlu0 %4536
        %v4538 = vsel %vm3783, %v4446, 0.0
        %4539 = vadd.xlane.f32.xlu0 %v4538
        %v4540 = vpop.xlane.xlu0 %4539
        %v4541 = vsel %vm3783, %v4448, 0.0
        %4542 = vadd.xlane.f32.xlu0 %v4541
        %v4543 = vpop.xlane.xlu0 %4542
        %v4544 = vsel %vm3783, %v4450, 0.0
        %4545 = vadd.xlane.f32.xlu0 %v4544
        %v4546 = vpop.xlane.xlu0 %4545
        %v4547 = vrcp.pop %v4453
        %v4548 = vrcp.pop %v4456
        %v4549 = vrcp.pop %v4459
        %v4550 = vrcp.pop %v4462
        %v4551 = vrcp.pop %v4465
        %v4552 = vrcp.pop %v4468
        %v4553 = vrcp.pop %v4471
        %v4554 = vrcp.pop %v4474
        %v4555 = vrcp.pop %v4477
        %v4556 = vrcp.pop %v4480
        %v4557 = vrcp.pop %v4483
        %v4558 = vrcp.pop %v4486
        %v4559 = vrcp.pop %v4489
        %v4560 = vrcp.pop %v4492
        %v4561 = vrcp.pop %v4495
        %v4562 = vrcp.pop %v4498
        %v4563 = vrcp.pop %v4501
        %v4564 = vrcp.pop %v4504
        %v4565 = vrcp.pop %v4507
        %v4566 = vrcp.pop %v4510
        %v4567 = vrcp.pop %v4513
        %v4568 = vrcp.pop %v4516
        %v4569 = vrcp.pop %v4519
        %v4570 = vrcp.pop %v4522
        %v4571 = vrcp.pop %v4525
        %v4572 = vrcp.pop %v4528
        %v4573 = vrcp.pop %v4531
        %v4574 = vrcp.pop %v4534
        %v4575 = vrcp.pop %v4537
        %v4576 = vrcp.pop %v4540
        %v4577 = vrcp.pop %v4543
        %v4578 = vrcp.pop %v4546
        %v4579 = vmul.f32 %v4388, %v4547
        %v4580 = vmul.f32 %v4390, %v4548
        %v4581 = vmul.f32 %v4392, %v4549
        %v4582 = vmul.f32 %v4394, %v4550
        %v4583 = vmul.f32 %v4396, %v4551
        %v4584 = vmul.f32 %v4398, %v4552
        %v4585 = vmul.f32 %v4400, %v4553
        %v4586 = vmul.f32 %v4402, %v4554
        %v4587 = vmul.f32 %v4404, %v4555
        %v4588 = vmul.f32 %v4406, %v4556
        %v4589 = vmul.f32 %v4408, %v4557
        %v4590 = vmul.f32 %v4410, %v4558
        %v4591 = vmul.f32 %v4412, %v4559
        %v4592 = vmul.f32 %v4414, %v4560
        %v4593 = vmul.f32 %v4416, %v4561
        %v4594 = vmul.f32 %v4418, %v4562
        %v4595 = vmul.f32 %v4420, %v4563
        %v4596 = vmul.f32 %v4422, %v4564
        %v4597 = vmul.f32 %v4424, %v4565
        %v4598 = vmul.f32 %v4426, %v4566
        %v4599 = vmul.f32 %v4428, %v4567
        %v4600 = vmul.f32 %v4430, %v4568
        %v4601 = vmul.f32 %v4432, %v4569
        %v4602 = vmul.f32 %v4434, %v4570
        %v4603 = vmul.f32 %v4436, %v4571
        %v4604 = vmul.f32 %v4438, %v4572
        %v4605 = vmul.f32 %v4440, %v4573
        %v4606 = vmul.f32 %v4442, %v4574
        %v4607 = vmul.f32 %v4444, %v4575
        %v4608 = vmul.f32 %v4446, %v4576
        %v4609 = vmul.f32 %v4448, %v4577
        %v4610 = vmul.f32 %v4450, %v4578
        %v4612 = vsel %vm3783, %v4579, 0
        %v4615 = vsel %vm3783, %v4580, 0
        %v4618 = vsel %vm3783, %v4581, 0
        %v4621 = vsel %vm3783, %v4582, 0
        %4623 = vmatpush.msra.mxu0 0.0
        %4624 = vmatpush.msra.mxu0 0.0
        %4625 = vmatpush.msra.mxu0 0.0
        %4626 = vmatpush.msra.mxu0 0.0
        %4627 = vmatpush.msra.mxu0 0.0
        %4628 = vmatpush.msra.mxu0 0.0
        %4629 = vmatpush.msra.mxu0 0.0
        %4630 = vmatpush.msra.mxu0 0.0
        %4631 = vmatpush.msra.mxu0 0.0
        %4632 = vmatpush.msra.mxu0 0.0
        %4633 = vmatpush.msra.mxu0 0.0
        %4634 = vmatpush.msra.mxu0 0.0
        %4635 = vmatpush.msra.mxu0 %v3560
        %4636 = vmatpush.msra.mxu0 %v3506
        %4637 = vmatpush.msra.mxu0 %v3452
        %4638 = vmatpush.msra.mxu0 %v3398
        %4639 = vmatmul.f32.gmra.mxu0 %v4612
        %v4640 = vpop.f32.mrf.mxu0
        %v4641 = vadd.f32 0.0, %v4640
        %4642 = vmatmul.f32.gmra.mxu0 %v4615
        %v4643 = vpop.f32.mrf.mxu0
        %v4644 = vadd.f32 0.0, %v4643
        %4645 = vmatmul.f32.gmra.mxu0 %v4618
        %v4646 = vpop.f32.mrf.mxu0
        %v4647 = vadd.f32 0.0, %v4646
        %4648 = vmatmul.f32.gmra.mxu0 %v4621
        %v4649 = vpop.f32.mrf.mxu0
        %v4650 = vadd.f32 0.0, %v4649
        %4651 = vdwg.mxu0
        %v4653 = vsel %vm3783, %v4583, 0
        %v4656 = vsel %vm3783, %v4584, 0
        %v4659 = vsel %vm3783, %v4585, 0
        %v4662 = vsel %vm3783, %v4586, 0
        %4664 = vmatpush.msra.mxu0 0.0
        %4665 = vmatpush.msra.mxu0 0.0
        %4666 = vmatpush.msra.mxu0 0.0
        %4667 = vmatpush.msra.mxu0 0.0
        %4668 = vmatpush.msra.mxu0 0.0
        %4669 = vmatpush.msra.mxu0 0.0
        %4670 = vmatpush.msra.mxu0 0.0
        %4671 = vmatpush.msra.mxu0 0.0
        %4672 = vmatpush.msra.mxu0 0.0
        %4673 = vmatpush.msra.mxu0 0.0
        %4674 = vmatpush.msra.mxu0 0.0
        %4675 = vmatpush.msra.mxu0 0.0
        %4676 = vmatpush.msra.mxu0 %v3562
        %4677 = vmatpush.msra.mxu0 %v3508
        %4678 = vmatpush.msra.mxu0 %v3454
        %4679 = vmatpush.msra.mxu0 %v3400
        %4680 = vmatmul.f32.gmra.mxu0 %v4653
        %v4681 = vpop.f32.mrf.mxu0
        %v4682 = vadd.f32 0.0, %v4681
        %4683 = vmatmul.f32.gmra.mxu0 %v4656
        %v4684 = vpop.f32.mrf.mxu0
        %v4685 = vadd.f32 0.0, %v4684
        %4686 = vmatmul.f32.gmra.mxu0 %v4659
        %v4687 = vpop.f32.mrf.mxu0
        %v4688 = vadd.f32 0.0, %v4687
        %4689 = vmatmul.f32.gmra.mxu0 %v4662
        %v4690 = vpop.f32.mrf.mxu0
        %v4691 = vadd.f32 0.0, %v4690
        %4692 = vdwg.mxu0
        %v4694 = vsel %vm3783, %v4587, 0
        %v4697 = vsel %vm3783, %v4588, 0
        %v4700 = vsel %vm3783, %v4589, 0
        %v4703 = vsel %vm3783, %v4590, 0
        %4705 = vmatpush.msra.mxu0 0.0
        %4706 = vmatpush.msra.mxu0 0.0
        %4707 = vmatpush.msra.mxu0 0.0
        %4708 = vmatpush.msra.mxu0 0.0
        %4709 = vmatpush.msra.mxu0 0.0
        %4710 = vmatpush.msra.mxu0 0.0
        %4711 = vmatpush.msra.mxu0 0.0
        %4712 = vmatpush.msra.mxu0 0.0
        %4713 = vmatpush.msra.mxu0 0.0
        %4714 = vmatpush.msra.mxu0 0.0
        %4715 = vmatpush.msra.mxu0 0.0
        %4716 = vmatpush.msra.mxu0 0.0
        %4717 = vmatpush.msra.mxu0 %v3564
        %4718 = vmatpush.msra.mxu0 %v3510
        %4719 = vmatpush.msra.mxu0 %v3456
        %4720 = vmatpush.msra.mxu0 %v3402
        %4721 = vmatmul.f32.gmra.mxu0 %v4694
        %v4722 = vpop.f32.mrf.mxu0
        %v4723 = vadd.f32 0.0, %v4722
        %4724 = vmatmul.f32.gmra.mxu0 %v4697
        %v4725 = vpop.f32.mrf.mxu0
        %v4726 = vadd.f32 0.0, %v4725
        %4727 = vmatmul.f32.gmra.mxu0 %v4700
        %v4728 = vpop.f32.mrf.mxu0
        %v4729 = vadd.f32 0.0, %v4728
        %4730 = vmatmul.f32.gmra.mxu0 %v4703
        %v4731 = vpop.f32.mrf.mxu0
        %v4732 = vadd.f32 0.0, %v4731
        %4733 = vdwg.mxu0
        %v4735 = vsel %vm3783, %v4591, 0
        %v4738 = vsel %vm3783, %v4592, 0
        %v4741 = vsel %vm3783, %v4593, 0
        %v4744 = vsel %vm3783, %v4594, 0
        %4746 = vmatpush.msra.mxu0 0.0
        %4747 = vmatpush.msra.mxu0 0.0
        %4748 = vmatpush.msra.mxu0 0.0
        %4749 = vmatpush.msra.mxu0 0.0
        %4750 = vmatpush.msra.mxu0 0.0
        %4751 = vmatpush.msra.mxu0 0.0
        %4752 = vmatpush.msra.mxu0 0.0
        %4753 = vmatpush.msra.mxu0 0.0
        %4754 = vmatpush.msra.mxu0 0.0
        %4755 = vmatpush.msra.mxu0 0.0
        %4756 = vmatpush.msra.mxu0 0.0
        %4757 = vmatpush.msra.mxu0 0.0
        %4758 = vmatpush.msra.mxu0 %v3566
        %4759 = vmatpush.msra.mxu0 %v3512
        %4760 = vmatpush.msra.mxu0 %v3458
        %4761 = vmatpush.msra.mxu0 %v3404
        %4762 = vmatmul.f32.gmra.mxu0 %v4735
        %v4763 = vpop.f32.mrf.mxu0
        %v4764 = vadd.f32 0.0, %v4763
        %4765 = vmatmul.f32.gmra.mxu0 %v4738
        %v4766 = vpop.f32.mrf.mxu0
        %v4767 = vadd.f32 0.0, %v4766
        %4768 = vmatmul.f32.gmra.mxu0 %v4741
        %v4769 = vpop.f32.mrf.mxu0
        %v4770 = vadd.f32 0.0, %v4769
        %4771 = vmatmul.f32.gmra.mxu0 %v4744
        %v4772 = vpop.f32.mrf.mxu0
        %v4773 = vadd.f32 0.0, %v4772
        %4774 = vdwg.mxu0
        %v4776 = vsel %vm3783, %v4595, 0
        %v4779 = vsel %vm3783, %v4596, 0
        %v4782 = vsel %vm3783, %v4597, 0
        %v4785 = vsel %vm3783, %v4598, 0
        %4787 = vmatpush.msra.mxu0 0.0
        %4788 = vmatpush.msra.mxu0 0.0
        %4789 = vmatpush.msra.mxu0 0.0
        %4790 = vmatpush.msra.mxu0 0.0
        %4791 = vmatpush.msra.mxu0 0.0
        %4792 = vmatpush.msra.mxu0 0.0
        %4793 = vmatpush.msra.mxu0 0.0
        %4794 = vmatpush.msra.mxu0 0.0
        %4795 = vmatpush.msra.mxu0 0.0
        %4796 = vmatpush.msra.mxu0 0.0
        %4797 = vmatpush.msra.mxu0 0.0
        %4798 = vmatpush.msra.mxu0 0.0
        %4799 = vmatpush.msra.mxu0 %v3776
        %4800 = vmatpush.msra.mxu0 %v3722
        %4801 = vmatpush.msra.mxu0 %v3668
        %4802 = vmatpush.msra.mxu0 %v3614
        %4803 = vmatmul.f32.gmra.mxu0 %v4776
        %v4804 = vpop.f32.mrf.mxu0
        %v4805 = vadd.f32 0.0, %v4804
        %4806 = vmatmul.f32.gmra.mxu0 %v4779
        %v4807 = vpop.f32.mrf.mxu0
        %v4808 = vadd.f32 0.0, %v4807
        %4809 = vmatmul.f32.gmra.mxu0 %v4782
        %v4810 = vpop.f32.mrf.mxu0
        %v4811 = vadd.f32 0.0, %v4810
        %4812 = vmatmul.f32.gmra.mxu0 %v4785
        %v4813 = vpop.f32.mrf.mxu0
        %v4814 = vadd.f32 0.0, %v4813
        %4815 = vdwg.mxu0
        %v4817 = vsel %vm3783, %v4599, 0
        %v4820 = vsel %vm3783, %v4600, 0
        %v4823 = vsel %vm3783, %v4601, 0
        %v4826 = vsel %vm3783, %v4602, 0
        %4828 = vmatpush.msra.mxu0 0.0
        %4829 = vmatpush.msra.mxu0 0.0
        %4830 = vmatpush.msra.mxu0 0.0
        %4831 = vmatpush.msra.mxu0 0.0
        %4832 = vmatpush.msra.mxu0 0.0
        %4833 = vmatpush.msra.mxu0 0.0
        %4834 = vmatpush.msra.mxu0 0.0
        %4835 = vmatpush.msra.mxu0 0.0
        %4836 = vmatpush.msra.mxu0 0.0
        %4837 = vmatpush.msra.mxu0 0.0
        %4838 = vmatpush.msra.mxu0 0.0
        %4839 = vmatpush.msra.mxu0 0.0
        %4840 = vmatpush.msra.mxu0 %v3778
        %4841 = vmatpush.msra.mxu0 %v3724
        %4842 = vmatpush.msra.mxu0 %v3670
        %4843 = vmatpush.msra.mxu0 %v3616
        %4844 = vmatmul.f32.gmra.mxu0 %v4817
        %v4845 = vpop.f32.mrf.mxu0
        %v4846 = vadd.f32 0.0, %v4845
        %4847 = vmatmul.f32.gmra.mxu0 %v4820
        %v4848 = vpop.f32.mrf.mxu0
        %v4849 = vadd.f32 0.0, %v4848
        %4850 = vmatmul.f32.gmra.mxu0 %v4823
        %v4851 = vpop.f32.mrf.mxu0
        %v4852 = vadd.f32 0.0, %v4851
        %4853 = vmatmul.f32.gmra.mxu0 %v4826
        %v4854 = vpop.f32.mrf.mxu0
        %v4855 = vadd.f32 0.0, %v4854
        %4856 = vdwg.mxu0
        %v4858 = vsel %vm3783, %v4603, 0
        %v4861 = vsel %vm3783, %v4604, 0
        %v4864 = vsel %vm3783, %v4605, 0
        %v4867 = vsel %vm3783, %v4606, 0
        %4869 = vmatpush.msra.mxu0 0.0
        %4870 = vmatpush.msra.mxu0 0.0
        %4871 = vmatpush.msra.mxu0 0.0
        %4872 = vmatpush.msra.mxu0 0.0
        %4873 = vmatpush.msra.mxu0 0.0
        %4874 = vmatpush.msra.mxu0 0.0
        %4875 = vmatpush.msra.mxu0 0.0
        %4876 = vmatpush.msra.mxu0 0.0
        %4877 = vmatpush.msra.mxu0 0.0
        %4878 = vmatpush.msra.mxu0 0.0
        %4879 = vmatpush.msra.mxu0 0.0
        %4880 = vmatpush.msra.mxu0 0.0
        %4881 = vmatpush.msra.mxu0 %v3780
        %4882 = vmatpush.msra.mxu0 %v3726
        %4883 = vmatpush.msra.mxu0 %v3672
        %4884 = vmatpush.msra.mxu0 %v3618
        %4885 = vmatmul.f32.gmra.mxu0 %v4858
        %v4886 = vpop.f32.mrf.mxu0
        %v4887 = vadd.f32 0.0, %v4886
        %4888 = vmatmul.f32.gmra.mxu0 %v4861
        %v4889 = vpop.f32.mrf.mxu0
        %v4890 = vadd.f32 0.0, %v4889
        %4891 = vmatmul.f32.gmra.mxu0 %v4864
        %v4892 = vpop.f32.mrf.mxu0
        %v4893 = vadd.f32 0.0, %v4892
        %4894 = vmatmul.f32.gmra.mxu0 %v4867
        %v4895 = vpop.f32.mrf.mxu0
        %v4896 = vadd.f32 0.0, %v4895
        %4897 = vdwg.mxu0
        %v4899 = vsel %vm3783, %v4607, 0
        %v4902 = vsel %vm3783, %v4608, 0
        %v4905 = vsel %vm3783, %v4609, 0
        %v4908 = vsel %vm3783, %v4610, 0
        %4910 = vmatpush.msra.mxu0 0.0
        %4911 = vmatpush.msra.mxu0 0.0
        %4912 = vmatpush.msra.mxu0 0.0
        %4913 = vmatpush.msra.mxu0 0.0
        %4914 = vmatpush.msra.mxu0 0.0
        %4915 = vmatpush.msra.mxu0 0.0
        %4916 = vmatpush.msra.mxu0 0.0
        %4917 = vmatpush.msra.mxu0 0.0
        %4918 = vmatpush.msra.mxu0 0.0
        %4919 = vmatpush.msra.mxu0 0.0
        %4920 = vmatpush.msra.mxu0 0.0
        %4921 = vmatpush.msra.mxu0 0.0
        %4922 = vmatpush.msra.mxu0 %v3782
        %4923 = vmatpush.msra.mxu0 %v3728
        %4924 = vmatpush.msra.mxu0 %v3674
        %4925 = vmatpush.msra.mxu0 %v3620
        %4926 = vmatmul.f32.gmra.mxu0 %v4899
        %v4927 = vpop.f32.mrf.mxu0
        %v4928 = vadd.f32 0.0, %v4927
        %4929 = vmatmul.f32.gmra.mxu0 %v4902
        %v4930 = vpop.f32.mrf.mxu0
        %v4931 = vadd.f32 0.0, %v4930
        %4932 = vmatmul.f32.gmra.mxu0 %v4905
        %v4933 = vpop.f32.mrf.mxu0
        %v4934 = vadd.f32 0.0, %v4933
        %4935 = vmatmul.f32.gmra.mxu0 %v4908
        %v4936 = vpop.f32.mrf.mxu0
        %v4937 = vadd.f32 0.0, %v4936
        %4938 = vdwg.mxu0
        %v4939 = vrot.slane %v4723, 4
        %v4940 = vsel %vm983, %v4939, %v4641
        %v4941 = vrot.slane %v4641, 4
        %v4942 = vsel %vm983, %v4723, %v4941
        %v4944 = vunpack.c.l.s4 1983009808
        %v4945 = vunpack.c.0.s8 %v4944
        %v4946 = vperm.slane %v4940, %v4945
        %v4948 = vunpack.c.l.s4 1983009808
        %v4949 = vunpack.c.0.s8 %v4948
        %v4950 = vperm.slane %v4942, %v4949
        %v4951 = vrot.slane %v4764, 4
        %v4952 = vsel %vm983, %v4951, %v4682
        %v4953 = vrot.slane %v4682, 4
        %v4954 = vsel %vm983, %v4764, %v4953
        %v4956 = vunpack.c.l.s4 1983009808
        %v4957 = vunpack.c.0.s8 %v4956
        %v4958 = vperm.slane %v4952, %v4957
        %v4960 = vunpack.c.l.s4 1983009808
        %v4961 = vunpack.c.0.s8 %v4960
        %v4962 = vperm.slane %v4954, %v4961
        %v4963 = vrot.slane %v4958, 4
        %v4964 = vsel %vm983, %v4963, %v4946
        %v4965 = vrot.slane %v4946, 4
        %v4966 = vsel %vm983, %v4958, %v4965
        %v4968 = vunpack.c.l.s4 1934713408
        %v4969 = vunpack.c.0.s8 %v4968
        %v4970 = vperm.slane %v4964, %v4969
        %v4972 = vunpack.c.l.s4 1934713408
        %v4973 = vunpack.c.0.s8 %v4972
        %v4974 = vperm.slane %v4966, %v4973
        %v4975 = vrot.slane %v4962, 4
        %v4976 = vsel %vm983, %v4975, %v4950
        %v4977 = vrot.slane %v4950, 4
        %v4978 = vsel %vm983, %v4962, %v4977
        %v4980 = vunpack.c.l.s4 1934713408
        %v4981 = vunpack.c.0.s8 %v4980
        %v4982 = vperm.slane %v4976, %v4981
        %v4984 = vunpack.c.l.s4 1934713408
        %v4985 = vunpack.c.0.s8 %v4984
        %v4986 = vperm.slane %v4978, %v4985
        %v4987 = vrot.slane %v4970, 4
        %v4988 = vsel %vm983, 0.0, %v4987
        %v4989 = vrot.slane %v4974, 4
        %v4990 = vsel %vm983, 0.0, %v4989
        %v4991 = vrot.slane %v4982, 4
        %v4992 = vsel %vm983, 0.0, %v4991
        %v4993 = vrot.slane %v4986, 4
        %v4994 = vsel %vm983, 0.0, %v4993
        %v4995 = vrot.slane %v4726, 4
        %v4996 = vsel %vm983, %v4995, %v4644
        %v4997 = vrot.slane %v4644, 4
        %v4998 = vsel %vm983, %v4726, %v4997
        %v5000 = vunpack.c.l.s4 1983009808
        %v5001 = vunpack.c.0.s8 %v5000
        %v5002 = vperm.slane %v4996, %v5001
        %v5004 = vunpack.c.l.s4 1983009808
        %v5005 = vunpack.c.0.s8 %v5004
        %v5006 = vperm.slane %v4998, %v5005
        %v5007 = vrot.slane %v4767, 4
        %v5008 = vsel %vm983, %v5007, %v4685
        %v5009 = vrot.slane %v4685, 4
        %v5010 = vsel %vm983, %v4767, %v5009
        %v5012 = vunpack.c.l.s4 1983009808
        %v5013 = vunpack.c.0.s8 %v5012
        %v5014 = vperm.slane %v5008, %v5013
        %v5016 = vunpack.c.l.s4 1983009808
        %v5017 = vunpack.c.0.s8 %v5016
        %v5018 = vperm.slane %v5010, %v5017
        %v5019 = vrot.slane %v5014, 4
        %v5020 = vsel %vm983, %v5019, %v5002
        %v5021 = vrot.slane %v5002, 4
        %v5022 = vsel %vm983, %v5014, %v5021
        %v5024 = vunpack.c.l.s4 1934713408
        %v5025 = vunpack.c.0.s8 %v5024
        %v5026 = vperm.slane %v5020, %v5025
        %v5028 = vunpack.c.l.s4 1934713408
        %v5029 = vunpack.c.0.s8 %v5028
        %v5030 = vperm.slane %v5022, %v5029
        %v5031 = vrot.slane %v5018, 4
        %v5032 = vsel %vm983, %v5031, %v5006
        %v5033 = vrot.slane %v5006, 4
        %v5034 = vsel %vm983, %v5018, %v5033
        %v5036 = vunpack.c.l.s4 1934713408
        %v5037 = vunpack.c.0.s8 %v5036
        %v5038 = vperm.slane %v5032, %v5037
        %v5040 = vunpack.c.l.s4 1934713408
        %v5041 = vunpack.c.0.s8 %v5040
        %v5042 = vperm.slane %v5034, %v5041
        %v5043 = vrot.slane %v5026, 4
        %v5044 = vsel %vm983, 0.0, %v5043
        %v5045 = vrot.slane %v5030, 4
        %v5046 = vsel %vm983, 0.0, %v5045
        %v5047 = vrot.slane %v5038, 4
        %v5048 = vsel %vm983, 0.0, %v5047
        %v5049 = vrot.slane %v5042, 4
        %v5050 = vsel %vm983, 0.0, %v5049
        %v5051 = vrot.slane %v4729, 4
        %v5052 = vsel %vm983, %v5051, %v4647
        %v5053 = vrot.slane %v4647, 4
        %v5054 = vsel %vm983, %v4729, %v5053
        %v5056 = vunpack.c.l.s4 1983009808
        %v5057 = vunpack.c.0.s8 %v5056
        %v5058 = vperm.slane %v5052, %v5057
        %v5060 = vunpack.c.l.s4 1983009808
        %v5061 = vunpack.c.0.s8 %v5060
        %v5062 = vperm.slane %v5054, %v5061
        %v5063 = vrot.slane %v4770, 4
        %v5064 = vsel %vm983, %v5063, %v4688
        %v5065 = vrot.slane %v4688, 4
        %v5066 = vsel %vm983, %v4770, %v5065
        %v5068 = vunpack.c.l.s4 1983009808
        %v5069 = vunpack.c.0.s8 %v5068
        %v5070 = vperm.slane %v5064, %v5069
        %v5072 = vunpack.c.l.s4 1983009808
        %v5073 = vunpack.c.0.s8 %v5072
        %v5074 = vperm.slane %v5066, %v5073
        %v5075 = vrot.slane %v5070, 4
        %v5076 = vsel %vm983, %v5075, %v5058
        %v5077 = vrot.slane %v5058, 4
        %v5078 = vsel %vm983, %v5070, %v5077
        %v5080 = vunpack.c.l.s4 1934713408
        %v5081 = vunpack.c.0.s8 %v5080
        %v5082 = vperm.slane %v5076, %v5081
        %v5084 = vunpack.c.l.s4 1934713408
        %v5085 = vunpack.c.0.s8 %v5084
        %v5086 = vperm.slane %v5078, %v5085
        %v5087 = vrot.slane %v5074, 4
        %v5088 = vsel %vm983, %v5087, %v5062
        %v5089 = vrot.slane %v5062, 4
        %v5090 = vsel %vm983, %v5074, %v5089
        %v5092 = vunpack.c.l.s4 1934713408
        %v5093 = vunpack.c.0.s8 %v5092
        %v5094 = vperm.slane %v5088, %v5093
        %v5096 = vunpack.c.l.s4 1934713408
        %v5097 = vunpack.c.0.s8 %v5096
        %v5098 = vperm.slane %v5090, %v5097
        %v5099 = vrot.slane %v5082, 4
        %v5100 = vsel %vm983, 0.0, %v5099
        %v5101 = vrot.slane %v5086, 4
        %v5102 = vsel %vm983, 0.0, %v5101
        %v5103 = vrot.slane %v5094, 4
        %v5104 = vsel %vm983, 0.0, %v5103
        %v5105 = vrot.slane %v5098, 4
        %v5106 = vsel %vm983, 0.0, %v5105
        %v5107 = vrot.slane %v4732, 4
        %v5108 = vsel %vm983, %v5107, %v4650
        %v5109 = vrot.slane %v4650, 4
        %v5110 = vsel %vm983, %v4732, %v5109
        %v5112 = vunpack.c.l.s4 1983009808
        %v5113 = vunpack.c.0.s8 %v5112
        %v5114 = vperm.slane %v5108, %v5113
        %v5116 = vunpack.c.l.s4 1983009808
        %v5117 = vunpack.c.0.s8 %v5116
        %v5118 = vperm.slane %v5110, %v5117
        %v5119 = vrot.slane %v4773, 4
        %v5120 = vsel %vm983, %v5119, %v4691
        %v5121 = vrot.slane %v4691, 4
        %v5122 = vsel %vm983, %v4773, %v5121
        %v5124 = vunpack.c.l.s4 1983009808
        %v5125 = vunpack.c.0.s8 %v5124
        %v5126 = vperm.slane %v5120, %v5125
        %v5128 = vunpack.c.l.s4 1983009808
        %v5129 = vunpack.c.0.s8 %v5128
        %v5130 = vperm.slane %v5122, %v5129
        %v5131 = vrot.slane %v5126, 4
        %v5132 = vsel %vm983, %v5131, %v5114
        %v5133 = vrot.slane %v5114, 4
        %v5134 = vsel %vm983, %v5126, %v5133
        %v5136 = vunpack.c.l.s4 1934713408
        %v5137 = vunpack.c.0.s8 %v5136
        %v5138 = vperm.slane %v5132, %v5137
        %v5140 = vunpack.c.l.s4 1934713408
        %v5141 = vunpack.c.0.s8 %v5140
        %v5142 = vperm.slane %v5134, %v5141
        %v5143 = vrot.slane %v5130, 4
        %v5144 = vsel %vm983, %v5143, %v5118
        %v5145 = vrot.slane %v5118, 4
        %v5146 = vsel %vm983, %v5130, %v5145
        %v5148 = vunpack.c.l.s4 1934713408
        %v5149 = vunpack.c.0.s8 %v5148
        %v5150 = vperm.slane %v5144, %v5149
        %v5152 = vunpack.c.l.s4 1934713408
        %v5153 = vunpack.c.0.s8 %v5152
        %v5154 = vperm.slane %v5146, %v5153
        %v5155 = vrot.slane %v5138, 4
        %v5156 = vsel %vm983, 0.0, %v5155
        %v5157 = vrot.slane %v5142, 4
        %v5158 = vsel %vm983, 0.0, %v5157
        %v5159 = vrot.slane %v5150, 4
        %v5160 = vsel %vm983, 0.0, %v5159
        %v5161 = vrot.slane %v5154, 4
        %v5162 = vsel %vm983, 0.0, %v5161
        %v5163 = vrot.slane %v4887, 4
        %v5164 = vsel %vm983, %v5163, %v4805
        %v5165 = vrot.slane %v4805, 4
        %v5166 = vsel %vm983, %v4887, %v5165
        %v5168 = vunpack.c.l.s4 1983009808
        %v5169 = vunpack.c.0.s8 %v5168
        %v5170 = vperm.slane %v5164, %v5169
        %v5172 = vunpack.c.l.s4 1983009808
        %v5173 = vunpack.c.0.s8 %v5172
        %v5174 = vperm.slane %v5166, %v5173
        %v5175 = vrot.slane %v4928, 4
        %v5176 = vsel %vm983, %v5175, %v4846
        %v5177 = vrot.slane %v4846, 4
        %v5178 = vsel %vm983, %v4928, %v5177
        %v5180 = vunpack.c.l.s4 1983009808
        %v5181 = vunpack.c.0.s8 %v5180
        %v5182 = vperm.slane %v5176, %v5181
        %v5184 = vunpack.c.l.s4 1983009808
        %v5185 = vunpack.c.0.s8 %v5184
        %v5186 = vperm.slane %v5178, %v5185
        %v5187 = vrot.slane %v5182, 4
        %v5188 = vsel %vm983, %v5187, %v5170
        %v5189 = vrot.slane %v5170, 4
        %v5190 = vsel %vm983, %v5182, %v5189
        %v5192 = vunpack.c.l.s4 1934713408
        %v5193 = vunpack.c.0.s8 %v5192
        %v5194 = vperm.slane %v5188, %v5193
        %v5196 = vunpack.c.l.s4 1934713408
        %v5197 = vunpack.c.0.s8 %v5196
        %v5198 = vperm.slane %v5190, %v5197
        %v5199 = vrot.slane %v5186, 4
        %v5200 = vsel %vm983, %v5199, %v5174
        %v5201 = vrot.slane %v5174, 4
        %v5202 = vsel %vm983, %v5186, %v5201
        %v5204 = vunpack.c.l.s4 1934713408
        %v5205 = vunpack.c.0.s8 %v5204
        %v5206 = vperm.slane %v5200, %v5205
        %v5208 = vunpack.c.l.s4 1934713408
        %v5209 = vunpack.c.0.s8 %v5208
        %v5210 = vperm.slane %v5202, %v5209
        %v5211 = vrot.slane %v5194, 4
        %v5212 = vsel %vm983, 0.0, %v5211
        %v5213 = vrot.slane %v5198, 4
        %v5214 = vsel %vm983, 0.0, %v5213
        %v5215 = vrot.slane %v5206, 4
        %v5216 = vsel %vm983, 0.0, %v5215
        %v5217 = vrot.slane %v5210, 4
        %v5218 = vsel %vm983, 0.0, %v5217
        %v5219 = vrot.slane %v4890, 4
        %v5220 = vsel %vm983, %v5219, %v4808
        %v5221 = vrot.slane %v4808, 4
        %v5222 = vsel %vm983, %v4890, %v5221
        %v5224 = vunpack.c.l.s4 1983009808
        %v5225 = vunpack.c.0.s8 %v5224
        %v5226 = vperm.slane %v5220, %v5225
        %v5228 = vunpack.c.l.s4 1983009808
        %v5229 = vunpack.c.0.s8 %v5228
        %v5230 = vperm.slane %v5222, %v5229
        %v5231 = vrot.slane %v4931, 4
        %v5232 = vsel %vm983, %v5231, %v4849
        %v5233 = vrot.slane %v4849, 4
        %v5234 = vsel %vm983, %v4931, %v5233
        %v5236 = vunpack.c.l.s4 1983009808
        %v5237 = vunpack.c.0.s8 %v5236
        %v5238 = vperm.slane %v5232, %v5237
        %v5240 = vunpack.c.l.s4 1983009808
        %v5241 = vunpack.c.0.s8 %v5240
        %v5242 = vperm.slane %v5234, %v5241
        %v5243 = vrot.slane %v5238, 4
        %v5244 = vsel %vm983, %v5243, %v5226
        %v5245 = vrot.slane %v5226, 4
        %v5246 = vsel %vm983, %v5238, %v5245
        %v5248 = vunpack.c.l.s4 1934713408
        %v5249 = vunpack.c.0.s8 %v5248
        %v5250 = vperm.slane %v5244, %v5249
        %v5252 = vunpack.c.l.s4 1934713408
        %v5253 = vunpack.c.0.s8 %v5252
        %v5254 = vperm.slane %v5246, %v5253
        %v5255 = vrot.slane %v5242, 4
        %v5256 = vsel %vm983, %v5255, %v5230
        %v5257 = vrot.slane %v5230, 4
        %v5258 = vsel %vm983, %v5242, %v5257
        %v5260 = vunpack.c.l.s4 1934713408
        %v5261 = vunpack.c.0.s8 %v5260
        %v5262 = vperm.slane %v5256, %v5261
        %v5264 = vunpack.c.l.s4 1934713408
        %v5265 = vunpack.c.0.s8 %v5264
        %v5266 = vperm.slane %v5258, %v5265
        %v5267 = vrot.slane %v5250, 4
        %v5268 = vsel %vm983, 0.0, %v5267
        %v5269 = vrot.slane %v5254, 4
        %v5270 = vsel %vm983, 0.0, %v5269
        %v5271 = vrot.slane %v5262, 4
        %v5272 = vsel %vm983, 0.0, %v5271
        %v5273 = vrot.slane %v5266, 4
        %v5274 = vsel %vm983, 0.0, %v5273
        %v5275 = vrot.slane %v4893, 4
        %v5276 = vsel %vm983, %v5275, %v4811
        %v5277 = vrot.slane %v4811, 4
        %v5278 = vsel %vm983, %v4893, %v5277
        %v5280 = vunpack.c.l.s4 1983009808
        %v5281 = vunpack.c.0.s8 %v5280
        %v5282 = vperm.slane %v5276, %v5281
        %v5284 = vunpack.c.l.s4 1983009808
        %v5285 = vunpack.c.0.s8 %v5284
        %v5286 = vperm.slane %v5278, %v5285
        %v5287 = vrot.slane %v4934, 4
        %v5288 = vsel %vm983, %v5287, %v4852
        %v5289 = vrot.slane %v4852, 4
        %v5290 = vsel %vm983, %v4934, %v5289
        %v5292 = vunpack.c.l.s4 1983009808
        %v5293 = vunpack.c.0.s8 %v5292
        %v5294 = vperm.slane %v5288, %v5293
        %v5296 = vunpack.c.l.s4 1983009808
        %v5297 = vunpack.c.0.s8 %v5296
        %v5298 = vperm.slane %v5290, %v5297
        %v5299 = vrot.slane %v5294, 4
        %v5300 = vsel %vm983, %v5299, %v5282
        %v5301 = vrot.slane %v5282, 4
        %v5302 = vsel %vm983, %v5294, %v5301
        %v5304 = vunpack.c.l.s4 1934713408
        %v5305 = vunpack.c.0.s8 %v5304
        %v5306 = vperm.slane %v5300, %v5305
        %v5308 = vunpack.c.l.s4 1934713408
        %v5309 = vunpack.c.0.s8 %v5308
        %v5310 = vperm.slane %v5302, %v5309
        %v5311 = vrot.slane %v5298, 4
        %v5312 = vsel %vm983, %v5311, %v5286
        %v5313 = vrot.slane %v5286, 4
        %v5314 = vsel %vm983, %v5298, %v5313
        %v5316 = vunpack.c.l.s4 1934713408
        %v5317 = vunpack.c.0.s8 %v5316
        %v5318 = vperm.slane %v5312, %v5317
        %v5320 = vunpack.c.l.s4 1934713408
        %v5321 = vunpack.c.0.s8 %v5320
        %v5322 = vperm.slane %v5314, %v5321
        %v5323 = vrot.slane %v5306, 4
        %v5324 = vsel %vm983, 0.0, %v5323
        %v5325 = vrot.slane %v5310, 4
        %v5326 = vsel %vm983, 0.0, %v5325
        %v5327 = vrot.slane %v5318, 4
        %v5328 = vsel %vm983, 0.0, %v5327
        %v5329 = vrot.slane %v5322, 4
        %v5330 = vsel %vm983, 0.0, %v5329
        %v5331 = vrot.slane %v4896, 4
        %v5332 = vsel %vm983, %v5331, %v4814
        %v5333 = vrot.slane %v4814, 4
        %v5334 = vsel %vm983, %v4896, %v5333
        %v5336 = vunpack.c.l.s4 1983009808
        %v5337 = vunpack.c.0.s8 %v5336
        %v5338 = vperm.slane %v5332, %v5337
        %v5340 = vunpack.c.l.s4 1983009808
        %v5341 = vunpack.c.0.s8 %v5340
        %v5342 = vperm.slane %v5334, %v5341
        %v5343 = vrot.slane %v4937, 4
        %v5344 = vsel %vm983, %v5343, %v4855
        %v5345 = vrot.slane %v4855, 4
        %v5346 = vsel %vm983, %v4937, %v5345
        %v5348 = vunpack.c.l.s4 1983009808
        %v5349 = vunpack.c.0.s8 %v5348
        %v5350 = vperm.slane %v5344, %v5349
        %v5352 = vunpack.c.l.s4 1983009808
        %v5353 = vunpack.c.0.s8 %v5352
        %v5354 = vperm.slane %v5346, %v5353
        %v5355 = vrot.slane %v5350, 4
        %v5356 = vsel %vm983, %v5355, %v5338
        %v5357 = vrot.slane %v5338, 4
        %v5358 = vsel %vm983, %v5350, %v5357
        %v5360 = vunpack.c.l.s4 1934713408
        %v5361 = vunpack.c.0.s8 %v5360
        %v5362 = vperm.slane %v5356, %v5361
        %v5364 = vunpack.c.l.s4 1934713408
        %v5365 = vunpack.c.0.s8 %v5364
        %v5366 = vperm.slane %v5358, %v5365
        %v5367 = vrot.slane %v5354, 4
        %v5368 = vsel %vm983, %v5367, %v5342
        %v5369 = vrot.slane %v5342, 4
        %v5370 = vsel %vm983, %v5354, %v5369
        %v5372 = vunpack.c.l.s4 1934713408
        %v5373 = vunpack.c.0.s8 %v5372
        %v5374 = vperm.slane %v5368, %v5373
        %v5376 = vunpack.c.l.s4 1934713408
        %v5377 = vunpack.c.0.s8 %v5376
        %v5378 = vperm.slane %v5370, %v5377
        %v5379 = vrot.slane %v5362, 4
        %v5380 = vsel %vm983, 0.0, %v5379
        %v5381 = vrot.slane %v5366, 4
        %v5382 = vsel %vm983, 0.0, %v5381
        %v5383 = vrot.slane %v5374, 4
        %v5384 = vsel %vm983, 0.0, %v5383
        %v5385 = vrot.slane %v5378, 4
        %v5386 = vsel %vm983, 0.0, %v5385
        %v5387 = vsel %vm983, %v4989, %v4970
        %v5389 = vunpack.c.l.s4 1983009808
        %v5390 = vunpack.c.0.s8 %v5389
        %v5391 = vperm.slane %v5387, %v5390
        %v5392 = vrot.slane %v4990, 4
        %v5393 = vsel %vm983, %v5392, %v4988
        %v5395 = vunpack.c.l.s4 1983009808
        %v5396 = vunpack.c.0.s8 %v5395
        %v5397 = vperm.slane %v5393, %v5396
        %v5398 = vsel %vm983, %v4993, %v4982
        %v5400 = vunpack.c.l.s4 1983009808
        %v5401 = vunpack.c.0.s8 %v5400
        %v5402 = vperm.slane %v5398, %v5401
        %v5403 = vrot.slane %v4994, 4
        %v5404 = vsel %vm983, %v5403, %v4992
        %v5406 = vunpack.c.l.s4 1983009808
        %v5407 = vunpack.c.0.s8 %v5406
        %v5408 = vperm.slane %v5404, %v5407
        %v5409 = vrot.slane %v5397, 4
        %v5410 = vsel %vm983, %v5409, %v5391
        %v5411 = vrot.slane %v5391, 4
        %v5412 = vsel %vm983, %v5397, %v5411
        %v5414 = vunpack.c.l.s4 1934713408
        %v5415 = vunpack.c.0.s8 %v5414
        %v5416 = vperm.slane %v5410, %v5415
        %v5418 = vunpack.c.l.s4 1934713408
        %v5419 = vunpack.c.0.s8 %v5418
        %v5420 = vperm.slane %v5412, %v5419
        %v5421 = vrot.slane %v5408, 4
        %v5422 = vsel %vm983, %v5421, %v5402
        %v5423 = vrot.slane %v5402, 4
        %v5424 = vsel %vm983, %v5408, %v5423
        %v5426 = vunpack.c.l.s4 1934713408
        %v5427 = vunpack.c.0.s8 %v5426
        %v5428 = vperm.slane %v5422, %v5427
        %v5430 = vunpack.c.l.s4 1934713408
        %v5431 = vunpack.c.0.s8 %v5430
        %v5432 = vperm.slane %v5424, %v5431
        %v5433 = vrot.slane %v5428, 4
        %v5434 = vsel %vm983, %v5433, %v5416
        %v5435 = vrot.slane %v5416, 4
        %v5436 = vsel %vm983, %v5428, %v5435
        %v5437 = vrot.slane %v5432, 4
        %v5438 = vsel %vm983, %v5437, %v5420
        %v5439 = vrot.slane %v5420, 4
        %v5440 = vsel %vm983, %v5432, %v5439
        %v5441 = vsel %vm983, %v5045, %v5026
        %v5443 = vunpack.c.l.s4 1983009808
        %v5444 = vunpack.c.0.s8 %v5443
        %v5445 = vperm.slane %v5441, %v5444
        %v5446 = vrot.slane %v5046, 4
        %v5447 = vsel %vm983, %v5446, %v5044
        %v5449 = vunpack.c.l.s4 1983009808
        %v5450 = vunpack.c.0.s8 %v5449
        %v5451 = vperm.slane %v5447, %v5450
        %v5452 = vsel %vm983, %v5049, %v5038
        %v5454 = vunpack.c.l.s4 1983009808
        %v5455 = vunpack.c.0.s8 %v5454
        %v5456 = vperm.slane %v5452, %v5455
        %v5457 = vrot.slane %v5050, 4
        %v5458 = vsel %vm983, %v5457, %v5048
        %v5460 = vunpack.c.l.s4 1983009808
        %v5461 = vunpack.c.0.s8 %v5460
        %v5462 = vperm.slane %v5458, %v5461
        %v5463 = vrot.slane %v5451, 4
        %v5464 = vsel %vm983, %v5463, %v5445
        %v5465 = vrot.slane %v5445, 4
        %v5466 = vsel %vm983, %v5451, %v5465
        %v5468 = vunpack.c.l.s4 1934713408
        %v5469 = vunpack.c.0.s8 %v5468
        %v5470 = vperm.slane %v5464, %v5469
        %v5472 = vunpack.c.l.s4 1934713408
        %v5473 = vunpack.c.0.s8 %v5472
        %v5474 = vperm.slane %v5466, %v5473
        %v5475 = vrot.slane %v5462, 4
        %v5476 = vsel %vm983, %v5475, %v5456
        %v5477 = vrot.slane %v5456, 4
        %v5478 = vsel %vm983, %v5462, %v5477
        %v5480 = vunpack.c.l.s4 1934713408
        %v5481 = vunpack.c.0.s8 %v5480
        %v5482 = vperm.slane %v5476, %v5481
        %v5484 = vunpack.c.l.s4 1934713408
        %v5485 = vunpack.c.0.s8 %v5484
        %v5486 = vperm.slane %v5478, %v5485
        %v5487 = vrot.slane %v5482, 4
        %v5488 = vsel %vm983, %v5487, %v5470
        %v5489 = vrot.slane %v5470, 4
        %v5490 = vsel %vm983, %v5482, %v5489
        %v5491 = vrot.slane %v5486, 4
        %v5492 = vsel %vm983, %v5491, %v5474
        %v5493 = vrot.slane %v5474, 4
        %v5494 = vsel %vm983, %v5486, %v5493
        %v5495 = vsel %vm983, %v5101, %v5082
        %v5497 = vunpack.c.l.s4 1983009808
        %v5498 = vunpack.c.0.s8 %v5497
        %v5499 = vperm.slane %v5495, %v5498
        %v5500 = vrot.slane %v5102, 4
        %v5501 = vsel %vm983, %v5500, %v5100
        %v5503 = vunpack.c.l.s4 1983009808
        %v5504 = vunpack.c.0.s8 %v5503
        %v5505 = vperm.slane %v5501, %v5504
        %v5506 = vsel %vm983, %v5105, %v5094
        %v5508 = vunpack.c.l.s4 1983009808
        %v5509 = vunpack.c.0.s8 %v5508
        %v5510 = vperm.slane %v5506, %v5509
        %v5511 = vrot.slane %v5106, 4
        %v5512 = vsel %vm983, %v5511, %v5104
        %v5514 = vunpack.c.l.s4 1983009808
        %v5515 = vunpack.c.0.s8 %v5514
        %v5516 = vperm.slane %v5512, %v5515
        %v5517 = vrot.slane %v5505, 4
        %v5518 = vsel %vm983, %v5517, %v5499
        %v5519 = vrot.slane %v5499, 4
        %v5520 = vsel %vm983, %v5505, %v5519
        %v5522 = vunpack.c.l.s4 1934713408
        %v5523 = vunpack.c.0.s8 %v5522
        %v5524 = vperm.slane %v5518, %v5523
        %v5526 = vunpack.c.l.s4 1934713408
        %v5527 = vunpack.c.0.s8 %v5526
        %v5528 = vperm.slane %v5520, %v5527
        %v5529 = vrot.slane %v5516, 4
        %v5530 = vsel %vm983, %v5529, %v5510
        %v5531 = vrot.slane %v5510, 4
        %v5532 = vsel %vm983, %v5516, %v5531
        %v5534 = vunpack.c.l.s4 1934713408
        %v5535 = vunpack.c.0.s8 %v5534
        %v5536 = vperm.slane %v5530, %v5535
        %v5538 = vunpack.c.l.s4 1934713408
        %v5539 = vunpack.c.0.s8 %v5538
        %v5540 = vperm.slane %v5532, %v5539
        %v5541 = vrot.slane %v5536, 4
        %v5542 = vsel %vm983, %v5541, %v5524
        %v5543 = vrot.slane %v5524, 4
        %v5544 = vsel %vm983, %v5536, %v5543
        %v5545 = vrot.slane %v5540, 4
        %v5546 = vsel %vm983, %v5545, %v5528
        %v5547 = vrot.slane %v5528, 4
        %v5548 = vsel %vm983, %v5540, %v5547
        %v5549 = vsel %vm983, %v5157, %v5138
        %v5551 = vunpack.c.l.s4 1983009808
        %v5552 = vunpack.c.0.s8 %v5551
        %v5553 = vperm.slane %v5549, %v5552
        %v5554 = vrot.slane %v5158, 4
        %v5555 = vsel %vm983, %v5554, %v5156
        %v5557 = vunpack.c.l.s4 1983009808
        %v5558 = vunpack.c.0.s8 %v5557
        %v5559 = vperm.slane %v5555, %v5558
        %v5560 = vsel %vm983, %v5161, %v5150
        %v5562 = vunpack.c.l.s4 1983009808
        %v5563 = vunpack.c.0.s8 %v5562
        %v5564 = vperm.slane %v5560, %v5563
        %v5565 = vrot.slane %v5162, 4
        %v5566 = vsel %vm983, %v5565, %v5160
        %v5568 = vunpack.c.l.s4 1983009808
        %v5569 = vunpack.c.0.s8 %v5568
        %v5570 = vperm.slane %v5566, %v5569
        %v5571 = vrot.slane %v5559, 4
        %v5572 = vsel %vm983, %v5571, %v5553
        %v5573 = vrot.slane %v5553, 4
        %v5574 = vsel %vm983, %v5559, %v5573
        %v5576 = vunpack.c.l.s4 1934713408
        %v5577 = vunpack.c.0.s8 %v5576
        %v5578 = vperm.slane %v5572, %v5577
        %v5580 = vunpack.c.l.s4 1934713408
        %v5581 = vunpack.c.0.s8 %v5580
        %v5582 = vperm.slane %v5574, %v5581
        %v5583 = vrot.slane %v5570, 4
        %v5584 = vsel %vm983, %v5583, %v5564
        %v5585 = vrot.slane %v5564, 4
        %v5586 = vsel %vm983, %v5570, %v5585
        %v5588 = vunpack.c.l.s4 1934713408
        %v5589 = vunpack.c.0.s8 %v5588
        %v5590 = vperm.slane %v5584, %v5589
        %v5592 = vunpack.c.l.s4 1934713408
        %v5593 = vunpack.c.0.s8 %v5592
        %v5594 = vperm.slane %v5586, %v5593
        %v5595 = vrot.slane %v5590, 4
        %v5596 = vsel %vm983, %v5595, %v5578
        %v5597 = vrot.slane %v5578, 4
        %v5598 = vsel %vm983, %v5590, %v5597
        %v5599 = vrot.slane %v5594, 4
        %v5600 = vsel %vm983, %v5599, %v5582
        %v5601 = vrot.slane %v5582, 4
        %v5602 = vsel %vm983, %v5594, %v5601
        %v5603 = vsel %vm983, %v5213, %v5194
        %v5605 = vunpack.c.l.s4 1983009808
        %v5606 = vunpack.c.0.s8 %v5605
        %v5607 = vperm.slane %v5603, %v5606
        %v5608 = vrot.slane %v5214, 4
        %v5609 = vsel %vm983, %v5608, %v5212
        %v5611 = vunpack.c.l.s4 1983009808
        %v5612 = vunpack.c.0.s8 %v5611
        %v5613 = vperm.slane %v5609, %v5612
        %v5614 = vsel %vm983, %v5217, %v5206
        %v5616 = vunpack.c.l.s4 1983009808
        %v5617 = vunpack.c.0.s8 %v5616
        %v5618 = vperm.slane %v5614, %v5617
        %v5619 = vrot.slane %v5218, 4
        %v5620 = vsel %vm983, %v5619, %v5216
        %v5622 = vunpack.c.l.s4 1983009808
        %v5623 = vunpack.c.0.s8 %v5622
        %v5624 = vperm.slane %v5620, %v5623
        %v5625 = vrot.slane %v5613, 4
        %v5626 = vsel %vm983, %v5625, %v5607
        %v5627 = vrot.slane %v5607, 4
        %v5628 = vsel %vm983, %v5613, %v5627
        %v5630 = vunpack.c.l.s4 1934713408
        %v5631 = vunpack.c.0.s8 %v5630
        %v5632 = vperm.slane %v5626, %v5631
        %v5634 = vunpack.c.l.s4 1934713408
        %v5635 = vunpack.c.0.s8 %v5634
        %v5636 = vperm.slane %v5628, %v5635
        %v5637 = vrot.slane %v5624, 4
        %v5638 = vsel %vm983, %v5637, %v5618
        %v5639 = vrot.slane %v5618, 4
        %v5640 = vsel %vm983, %v5624, %v5639
        %v5642 = vunpack.c.l.s4 1934713408
        %v5643 = vunpack.c.0.s8 %v5642
        %v5644 = vperm.slane %v5638, %v5643
        %v5646 = vunpack.c.l.s4 1934713408
        %v5647 = vunpack.c.0.s8 %v5646
        %v5648 = vperm.slane %v5640, %v5647
        %v5649 = vrot.slane %v5644, 4
        %v5650 = vsel %vm983, %v5649, %v5632
        %v5651 = vrot.slane %v5632, 4
        %v5652 = vsel %vm983, %v5644, %v5651
        %v5653 = vrot.slane %v5648, 4
        %v5654 = vsel %vm983, %v5653, %v5636
        %v5655 = vrot.slane %v5636, 4
        %v5656 = vsel %vm983, %v5648, %v5655
        %v5657 = vsel %vm983, %v5269, %v5250
        %v5659 = vunpack.c.l.s4 1983009808
        %v5660 = vunpack.c.0.s8 %v5659
        %v5661 = vperm.slane %v5657, %v5660
        %v5662 = vrot.slane %v5270, 4
        %v5663 = vsel %vm983, %v5662, %v5268
        %v5665 = vunpack.c.l.s4 1983009808
        %v5666 = vunpack.c.0.s8 %v5665
        %v5667 = vperm.slane %v5663, %v5666
        %v5668 = vsel %vm983, %v5273, %v5262
        %v5670 = vunpack.c.l.s4 1983009808
        %v5671 = vunpack.c.0.s8 %v5670
        %v5672 = vperm.slane %v5668, %v5671
        %v5673 = vrot.slane %v5274, 4
        %v5674 = vsel %vm983, %v5673, %v5272
        %v5676 = vunpack.c.l.s4 1983009808
        %v5677 = vunpack.c.0.s8 %v5676
        %v5678 = vperm.slane %v5674, %v5677
        %v5679 = vrot.slane %v5667, 4
        %v5680 = vsel %vm983, %v5679, %v5661
        %v5681 = vrot.slane %v5661, 4
        %v5682 = vsel %vm983, %v5667, %v5681
        %v5684 = vunpack.c.l.s4 1934713408
        %v5685 = vunpack.c.0.s8 %v5684
        %v5686 = vperm.slane %v5680, %v5685
        %v5688 = vunpack.c.l.s4 1934713408
        %v5689 = vunpack.c.0.s8 %v5688
        %v5690 = vperm.slane %v5682, %v5689
        %v5691 = vrot.slane %v5678, 4
        %v5692 = vsel %vm983, %v5691, %v5672
        %v5693 = vrot.slane %v5672, 4
        %v5694 = vsel %vm983, %v5678, %v5693
        %v5696 = vunpack.c.l.s4 1934713408
        %v5697 = vunpack.c.0.s8 %v5696
        %v5698 = vperm.slane %v5692, %v5697
        %v5700 = vunpack.c.l.s4 1934713408
        %v5701 = vunpack.c.0.s8 %v5700
        %v5702 = vperm.slane %v5694, %v5701
        %v5703 = vrot.slane %v5698, 4
        %v5704 = vsel %vm983, %v5703, %v5686
        %v5705 = vrot.slane %v5686, 4
        %v5706 = vsel %vm983, %v5698, %v5705
        %v5707 = vrot.slane %v5702, 4
        %v5708 = vsel %vm983, %v5707, %v5690
        %v5709 = vrot.slane %v5690, 4
        %v5710 = vsel %vm983, %v5702, %v5709
        %v5711 = vsel %vm983, %v5325, %v5306
        %v5713 = vunpack.c.l.s4 1983009808
        %v5714 = vunpack.c.0.s8 %v5713
        %v5715 = vperm.slane %v5711, %v5714
        %v5716 = vrot.slane %v5326, 4
        %v5717 = vsel %vm983, %v5716, %v5324
        %v5719 = vunpack.c.l.s4 1983009808
        %v5720 = vunpack.c.0.s8 %v5719
        %v5721 = vperm.slane %v5717, %v5720
        %v5722 = vsel %vm983, %v5329, %v5318
        %v5724 = vunpack.c.l.s4 1983009808
        %v5725 = vunpack.c.0.s8 %v5724
        %v5726 = vperm.slane %v5722, %v5725
        %v5727 = vrot.slane %v5330, 4
        %v5728 = vsel %vm983, %v5727, %v5328
        %v5730 = vunpack.c.l.s4 1983009808
        %v5731 = vunpack.c.0.s8 %v5730
        %v5732 = vperm.slane %v5728, %v5731
        %v5733 = vrot.slane %v5721, 4
        %v5734 = vsel %vm983, %v5733, %v5715
        %v5735 = vrot.slane %v5715, 4
        %v5736 = vsel %vm983, %v5721, %v5735
        %v5738 = vunpack.c.l.s4 1934713408
        %v5739 = vunpack.c.0.s8 %v5738
        %v5740 = vperm.slane %v5734, %v5739
        %v5742 = vunpack.c.l.s4 1934713408
        %v5743 = vunpack.c.0.s8 %v5742
        %v5744 = vperm.slane %v5736, %v5743
        %v5745 = vrot.slane %v5732, 4
        %v5746 = vsel %vm983, %v5745, %v5726
        %v5747 = vrot.slane %v5726, 4
        %v5748 = vsel %vm983, %v5732, %v5747
        %v5750 = vunpack.c.l.s4 1934713408
        %v5751 = vunpack.c.0.s8 %v5750
        %v5752 = vperm.slane %v5746, %v5751
        %v5754 = vunpack.c.l.s4 1934713408
        %v5755 = vunpack.c.0.s8 %v5754
        %v5756 = vperm.slane %v5748, %v5755
        %v5757 = vrot.slane %v5752, 4
        %v5758 = vsel %vm983, %v5757, %v5740
        %v5759 = vrot.slane %v5740, 4
        %v5760 = vsel %vm983, %v5752, %v5759
        %v5761 = vrot.slane %v5756, 4
        %v5762 = vsel %vm983, %v5761, %v5744
        %v5763 = vrot.slane %v5744, 4
        %v5764 = vsel %vm983, %v5756, %v5763
        %v5765 = vsel %vm983, %v5381, %v5362
        %v5767 = vunpack.c.l.s4 1983009808
        %v5768 = vunpack.c.0.s8 %v5767
        %v5769 = vperm.slane %v5765, %v5768
        %v5770 = vrot.slane %v5382, 4
        %v5771 = vsel %vm983, %v5770, %v5380
        %v5773 = vunpack.c.l.s4 1983009808
        %v5774 = vunpack.c.0.s8 %v5773
        %v5775 = vperm.slane %v5771, %v5774
        %v5776 = vsel %vm983, %v5385, %v5374
        %v5778 = vunpack.c.l.s4 1983009808
        %v5779 = vunpack.c.0.s8 %v5778
        %v5780 = vperm.slane %v5776, %v5779
        %v5781 = vrot.slane %v5386, 4
        %v5782 = vsel %vm983, %v5781, %v5384
        %v5784 = vunpack.c.l.s4 1983009808
        %v5785 = vunpack.c.0.s8 %v5784
        %v5786 = vperm.slane %v5782, %v5785
        %v5787 = vrot.slane %v5775, 4
        %v5788 = vsel %vm983, %v5787, %v5769
        %v5789 = vrot.slane %v5769, 4
        %v5790 = vsel %vm983, %v5775, %v5789
        %v5792 = vunpack.c.l.s4 1934713408
        %v5793 = vunpack.c.0.s8 %v5792
        %v5794 = vperm.slane %v5788, %v5793
        %v5796 = vunpack.c.l.s4 1934713408
        %v5797 = vunpack.c.0.s8 %v5796
        %v5798 = vperm.slane %v5790, %v5797
        %v5799 = vrot.slane %v5786, 4
        %v5800 = vsel %vm983, %v5799, %v5780
        %v5801 = vrot.slane %v5780, 4
        %v5802 = vsel %vm983, %v5786, %v5801
        %v5804 = vunpack.c.l.s4 1934713408
        %v5805 = vunpack.c.0.s8 %v5804
        %v5806 = vperm.slane %v5800, %v5805
        %v5808 = vunpack.c.l.s4 1934713408
        %v5809 = vunpack.c.0.s8 %v5808
        %v5810 = vperm.slane %v5802, %v5809
        %v5811 = vrot.slane %v5806, 4
        %v5812 = vsel %vm983, %v5811, %v5794
        %v5813 = vrot.slane %v5794, 4
        %v5814 = vsel %vm983, %v5806, %v5813
        %v5815 = vrot.slane %v5810, 4
        %v5816 = vsel %vm983, %v5815, %v5798
        %v5817 = vrot.slane %v5798, 4
        %v5818 = vsel %vm983, %v5810, %v5817
        %5827 = vrot.lane.b32.xlu0 %v5436, 32
        %v5828 = vpop.permute.xlu0 %5827
        %5829 = vrot.lane.b32.xlu0 %v5490, 32
        %v5830 = vpop.permute.xlu0 %5829
        %5831 = vrot.lane.b32.xlu0 %v5544, 32
        %v5832 = vpop.permute.xlu0 %5831
        %5833 = vrot.lane.b32.xlu0 %v5598, 32
        %v5834 = vpop.permute.xlu0 %5833
        %5835 = vrot.lane.b32.xlu0 %v5652, 32
        %v5836 = vpop.permute.xlu0 %5835
        %5837 = vrot.lane.b32.xlu0 %v5706, 32
        %v5838 = vpop.permute.xlu0 %5837
        %5839 = vrot.lane.b32.xlu0 %v5760, 32
        %v5840 = vpop.permute.xlu0 %5839
        %5841 = vrot.lane.b32.xlu0 %v5814, 32
        %v5842 = vpop.permute.xlu0 %5841
        %5859 = vrot.lane.b32.xlu0 %v5438, 64
        %v5860 = vpop.permute.xlu0 %5859
        %5861 = vrot.lane.b32.xlu0 %v5492, 64
        %v5862 = vpop.permute.xlu0 %5861
        %5863 = vrot.lane.b32.xlu0 %v5546, 64
        %v5864 = vpop.permute.xlu0 %5863
        %5865 = vrot.lane.b32.xlu0 %v5600, 64
        %v5866 = vpop.permute.xlu0 %5865
        %5867 = vrot.lane.b32.xlu0 %v5654, 64
        %v5868 = vpop.permute.xlu0 %5867
        %5869 = vrot.lane.b32.xlu0 %v5708, 64
        %v5870 = vpop.permute.xlu0 %5869
        %5871 = vrot.lane.b32.xlu0 %v5762, 64
        %v5872 = vpop.permute.xlu0 %5871
        %5873 = vrot.lane.b32.xlu0 %v5816, 64
        %v5874 = vpop.permute.xlu0 %5873
        %5891 = vrot.lane.b32.xlu0 %v5440, 96
        %v5892 = vpop.permute.xlu0 %5891
        %5893 = vrot.lane.b32.xlu0 %v5494, 96
        %v5894 = vpop.permute.xlu0 %5893
        %5895 = vrot.lane.b32.xlu0 %v5548, 96
        %v5896 = vpop.permute.xlu0 %5895
        %5897 = vrot.lane.b32.xlu0 %v5602, 96
        %v5898 = vpop.permute.xlu0 %5897
        %5899 = vrot.lane.b32.xlu0 %v5656, 96
        %v5900 = vpop.permute.xlu0 %5899
        %5901 = vrot.lane.b32.xlu0 %v5710, 96
        %v5902 = vpop.permute.xlu0 %5901
        %5903 = vrot.lane.b32.xlu0 %v5764, 96
        %v5904 = vpop.permute.xlu0 %5903
        %5905 = vrot.lane.b32.xlu0 %v5818, 96
        %v5906 = vpop.permute.xlu0 %5905
        %v5915 = vsel %vm3783, %v5434, %v5828
        %v5916 = vsel %vm3783, %v5488, %v5830
        %v5917 = vsel %vm3783, %v5542, %v5832
        %v5918 = vsel %vm3783, %v5596, %v5834
        %v5919 = vsel %vm3783, %v5650, %v5836
        %v5920 = vsel %vm3783, %v5704, %v5838
        %v5921 = vsel %vm3783, %v5758, %v5840
        %v5922 = vsel %vm3783, %v5812, %v5842
        %vm5923 = vcmask 523264
        %v5924 = vsel %vm5923, %v5915, %v5860
        %v5925 = vsel %vm5923, %v5916, %v5862
        %v5926 = vsel %vm5923, %v5917, %v5864
        %v5927 = vsel %vm5923, %v5918, %v5866
        %v5928 = vsel %vm5923, %v5919, %v5868
        %v5929 = vsel %vm5923, %v5920, %v5870
        %v5930 = vsel %vm5923, %v5921, %v5872
        %v5931 = vsel %vm5923, %v5922, %v5874
        %vm5932 = vcmask 785408
        %v5933 = vsel %vm5932, %v5924, %v5892
        %v5934 = vsel %vm5932, %v5925, %v5894
        %v5935 = vsel %vm5932, %v5926, %v5896
        %v5936 = vsel %vm5932, %v5927, %v5898
        %v5937 = vsel %vm5932, %v5928, %v5900
        %v5938 = vsel %vm5932, %v5929, %v5902
        %v5939 = vsel %vm5932, %v5930, %v5904
        %v5940 = vsel %vm5932, %v5931, %v5906
        %v5941 = vld [vmem:[#allocation8] sm:$0xff]
        %v5942 = vld [vmem:[#allocation8 + $0x8] sm:$0xff]
        %v5943 = vld [vmem:[#allocation8 + $0x10] sm:$0xff]
        %v5944 = vld [vmem:[#allocation8 + $0x18] sm:$0xff]
        %v5945 = vld [vmem:[#allocation8 + $0x20] sm:$0xff]
        %v5946 = vld [vmem:[#allocation8 + $0x28] sm:$0xff]
        %v5947 = vld [vmem:[#allocation8 + $0x30] sm:$0xff]
        %v5948 = vld [vmem:[#allocation8 + $0x38] sm:$0xff]
        %v5949 = vld [vmem:[#allocation8 + $0x40] sm:$0xff]
        %v5950 = vld [vmem:[#allocation8 + $0x48] sm:$0xff]
        %v5951 = vld [vmem:[#allocation8 + $0x50] sm:$0xff]
        %v5952 = vld [vmem:[#allocation8 + $0x58] sm:$0xff]
        %v5953 = vld [vmem:[#allocation8 + $0x60] sm:$0xff]
        %v5954 = vld [vmem:[#allocation8 + $0x68] sm:$0xff]
        %v5955 = vld [vmem:[#allocation8 + $0x70] sm:$0xff]
        %v5956 = vld [vmem:[#allocation8 + $0x78] sm:$0xff]
        %v5957 = vld [vmem:[%s5] sm:$0x1]
        %v5959 = vperm.slane %v5957, 0
        %5961 = vmatpush.msra.mxu0 %v5956
        %5962 = vmatpush.msra.mxu0 %v5955
        %5963 = vmatpush.msra.mxu0 %v5954
        %5964 = vmatpush.msra.mxu0 %v5953
        %5965 = vmatpush.msra.mxu0 %v5952
        %5966 = vmatpush.msra.mxu0 %v5951
        %5967 = vmatpush.msra.mxu0 %v5950
        %5968 = vmatpush.msra.mxu0 %v5949
        %5969 = vmatpush.msra.mxu0 %v5948
        %5970 = vmatpush.msra.mxu0 %v5947
        %5971 = vmatpush.msra.mxu0 %v5946
        %5972 = vmatpush.msra.mxu0 %v5945
        %5973 = vmatpush.msra.mxu0 %v5944
        %5974 = vmatpush.msra.mxu0 %v5943
        %5975 = vmatpush.msra.mxu0 %v5942
        %5976 = vmatpush.msra.mxu0 %v5941
        %5977 = vmatmul.f32.gmra.mxu0 %v5933
        %v5978 = vpop.f32.mrf.mxu0
        %v5979 = vadd.f32 %v5959, %v5978
        %5980 = vmatmul.f32.gmra.mxu0 %v5934
        %v5981 = vpop.f32.mrf.mxu0
        %v5982 = vadd.f32 %v5959, %v5981
        %5983 = vmatmul.f32.gmra.mxu0 %v5935
        %v5984 = vpop.f32.mrf.mxu0
        %v5985 = vadd.f32 %v5959, %v5984
        %5986 = vmatmul.f32.gmra.mxu0 %v5936
        %v5987 = vpop.f32.mrf.mxu0
        %v5988 = vadd.f32 %v5959, %v5987
        %5989 = vmatmul.f32.gmra.mxu0 %v5937
        %v5990 = vpop.f32.mrf.mxu0
        %v5991 = vadd.f32 %v5959, %v5990
        %5992 = vmatmul.f32.gmra.mxu0 %v5938
        %v5993 = vpop.f32.mrf.mxu0
        %v5994 = vadd.f32 %v5959, %v5993
        %5995 = vmatmul.f32.gmra.mxu0 %v5939
        %v5996 = vpop.f32.mrf.mxu0
        %v5997 = vadd.f32 %v5959, %v5996
        %5998 = vmatmul.f32.gmra.mxu0 %v5940
        %v5999 = vpop.f32.mrf.mxu0
        %v6000 = vadd.f32 %v5959, %v5999
        %6001 = vdwg.mxu0
        %v6002 = vadd.f32 %v532, %v5979
        %v6003 = vadd.f32 %v533, %v5982
        %v6004 = vadd.f32 %v534, %v5985
        %v6005 = vadd.f32 %v535, %v5988
        %v6006 = vadd.f32 %v536, %v5991
        %v6007 = vadd.f32 %v537, %v5994
        %v6008 = vadd.f32 %v538, %v5997
        %v6009 = vadd.f32 %v539, %v6000
        %v6010 = vld [vmem:[%s6] sm:$0x1]
        %v6011 = vld [vmem:[#allocation10] sm:$0x1]
        %6012 = vadd.xlane.f32.xlu0 %v6002
        %v6013 = vpop.xlane.xlu0 %6012
        %6014 = vadd.xlane.f32.xlu0 %v6003
        %v6015 = vpop.xlane.xlu0 %6014
        %6016 = vadd.xlane.f32.xlu0 %v6004
        %v6017 = vpop.xlane.xlu0 %6016
        %6018 = vadd.xlane.f32.xlu0 %v6005
        %v6019 = vpop.xlane.xlu0 %6018
        %6020 = vadd.xlane.f32.xlu0 %v6006
        %v6021 = vpop.xlane.xlu0 %6020
        %6022 = vadd.xlane.f32.xlu0 %v6007
        %v6023 = vpop.xlane.xlu0 %6022
        %6024 = vadd.xlane.f32.xlu0 %v6008
        %v6025 = vpop.xlane.xlu0 %6024
        %6026 = vadd.xlane.f32.xlu0 %v6009
        %v6027 = vpop.xlane.xlu0 %6026
        %v6028 = vmul.f32 %v6013, %v564
        %v6029 = vmul.f32 %v6015, %v564
        %v6030 = vmul.f32 %v6017, %v564
        %v6031 = vmul.f32 %v6019, %v564
        %v6032 = vmul.f32 %v6021, %v564
        %v6033 = vmul.f32 %v6023, %v564
        %v6034 = vmul.f32 %v6025, %v564
        %v6035 = vmul.f32 %v6027, %v564
        %v6036 = vsub.f32 %v6002, %v6028
        %v6037 = vsub.f32 %v6003, %v6029
        %v6038 = vsub.f32 %v6004, %v6030
        %v6039 = vsub.f32 %v6005, %v6031
        %v6040 = vsub.f32 %v6006, %v6032
        %v6041 = vsub.f32 %v6007, %v6033
        %v6042 = vsub.f32 %v6008, %v6034
        %v6043 = vsub.f32 %v6009, %v6035
        %v6044 = vmul.f32 %v6036, %v6036
        %v6045 = vmul.f32 %v6037, %v6037
        %v6046 = vmul.f32 %v6038, %v6038
        %v6047 = vmul.f32 %v6039, %v6039
        %v6048 = vmul.f32 %v6040, %v6040
        %v6049 = vmul.f32 %v6041, %v6041
        %v6050 = vmul.f32 %v6042, %v6042
        %v6051 = vmul.f32 %v6043, %v6043
        %6052 = vadd.xlane.f32.xlu0 %v6044
        %v6053 = vpop.xlane.xlu0 %6052
        %6054 = vadd.xlane.f32.xlu0 %v6045
        %v6055 = vpop.xlane.xlu0 %6054
        %6056 = vadd.xlane.f32.xlu0 %v6046
        %v6057 = vpop.xlane.xlu0 %6056
        %6058 = vadd.xlane.f32.xlu0 %v6047
        %v6059 = vpop.xlane.xlu0 %6058
        %6060 = vadd.xlane.f32.xlu0 %v6048
        %v6061 = vpop.xlane.xlu0 %6060
        %6062 = vadd.xlane.f32.xlu0 %v6049
        %v6063 = vpop.xlane.xlu0 %6062
        %6064 = vadd.xlane.f32.xlu0 %v6050
        %v6065 = vpop.xlane.xlu0 %6064
        %6066 = vadd.xlane.f32.xlu0 %v6051
        %v6067 = vpop.xlane.xlu0 %6066
        %v6068 = vmul.f32 %v6053, %v564
        %v6069 = vmul.f32 %v6055, %v564
        %v6070 = vmul.f32 %v6057, %v564
        %v6071 = vmul.f32 %v6059, %v564
        %v6072 = vmul.f32 %v6061, %v564
        %v6073 = vmul.f32 %v6063, %v564
        %v6074 = vmul.f32 %v6065, %v564
        %v6075 = vmul.f32 %v6067, %v564
        %v6076 = vadd.f32 %v6068, 1e-05
        %v6077 = vadd.f32 %v6069, 1e-05
        %v6078 = vadd.f32 %v6070, 1e-05
        %v6079 = vadd.f32 %v6071, 1e-05
        %v6080 = vadd.f32 %v6072, 1e-05
        %v6081 = vadd.f32 %v6073, 1e-05
        %v6082 = vadd.f32 %v6074, 1e-05
        %v6083 = vadd.f32 %v6075, 1e-05
        %v6084 = vrsqrt.pop %v6076
        %v6085 = vmul.f32 %v6084, %v6076
        %v6086 = vmul.f32 %v6085, %v6084
        %v6087 = vmul.f32 0.5, %v6086
        %v6088 = vsub.f32 1.5, %v6087
        %v6089 = vmul.f32 %v6084, %v6088
        %vm6090 = vweird.f32 %v6076
        %vm6091 = vweird.f32 %v6084
        %vm6092 = vmor %vm6090, %vm6091
        %v6093 = vsel %vm6092, %v6084, %v6089
        %v6094 = vrsqrt.pop %v6077
        %v6095 = vmul.f32 %v6094, %v6077
        %v6096 = vmul.f32 %v6095, %v6094
        %v6097 = vmul.f32 0.5, %v6096
        %v6098 = vsub.f32 1.5, %v6097
        %v6099 = vmul.f32 %v6094, %v6098
        %vm6100 = vweird.f32 %v6077
        %vm6101 = vweird.f32 %v6094
        %vm6102 = vmor %vm6100, %vm6101
        %v6103 = vsel %vm6102, %v6094, %v6099
        %v6104 = vrsqrt.pop %v6078
        %v6105 = vmul.f32 %v6104, %v6078
        %v6106 = vmul.f32 %v6105, %v6104
        %v6107 = vmul.f32 0.5, %v6106
        %v6108 = vsub.f32 1.5, %v6107
        %v6109 = vmul.f32 %v6104, %v6108
        %vm6110 = vweird.f32 %v6078
        %vm6111 = vweird.f32 %v6104
        %vm6112 = vmor %vm6110, %vm6111
        %v6113 = vsel %vm6112, %v6104, %v6109
        %v6114 = vrsqrt.pop %v6079
        %v6115 = vmul.f32 %v6114, %v6079
        %v6116 = vmul.f32 %v6115, %v6114
        %v6117 = vmul.f32 0.5, %v6116
        %v6118 = vsub.f32 1.5, %v6117
        %v6119 = vmul.f32 %v6114, %v6118
        %vm6120 = vweird.f32 %v6079
        %vm6121 = vweird.f32 %v6114
        %vm6122 = vmor %vm6120, %vm6121
        %v6123 = vsel %vm6122, %v6114, %v6119
        %v6124 = vrsqrt.pop %v6080
        %v6125 = vmul.f32 %v6124, %v6080
        %v6126 = vmul.f32 %v6125, %v6124
        %v6127 = vmul.f32 0.5, %v6126
        %v6128 = vsub.f32 1.5, %v6127
        %v6129 = vmul.f32 %v6124, %v6128
        %vm6130 = vweird.f32 %v6080
        %vm6131 = vweird.f32 %v6124
        %vm6132 = vmor %vm6130, %vm6131
        %v6133 = vsel %vm6132, %v6124, %v6129
        %v6134 = vrsqrt.pop %v6081
        %v6135 = vmul.f32 %v6134, %v6081
        %v6136 = vmul.f32 %v6135, %v6134
        %v6137 = vmul.f32 0.5, %v6136
        %v6138 = vsub.f32 1.5, %v6137
        %v6139 = vmul.f32 %v6134, %v6138
        %vm6140 = vweird.f32 %v6081
        %vm6141 = vweird.f32 %v6134
        %vm6142 = vmor %vm6140, %vm6141
        %v6143 = vsel %vm6142, %v6134, %v6139
        %v6144 = vrsqrt.pop %v6082
        %v6145 = vmul.f32 %v6144, %v6082
        %v6146 = vmul.f32 %v6145, %v6144
        %v6147 = vmul.f32 0.5, %v6146
        %v6148 = vsub.f32 1.5, %v6147
        %v6149 = vmul.f32 %v6144, %v6148
        %vm6150 = vweird.f32 %v6082
        %vm6151 = vweird.f32 %v6144
        %vm6152 = vmor %vm6150, %vm6151
        %v6153 = vsel %vm6152, %v6144, %v6149
        %v6154 = vrsqrt.pop %v6083
        %v6155 = vmul.f32 %v6154, %v6083
        %v6156 = vmul.f32 %v6155, %v6154
        %v6157 = vmul.f32 0.5, %v6156
        %v6158 = vsub.f32 1.5, %v6157
        %v6159 = vmul.f32 %v6154, %v6158
        %vm6160 = vweird.f32 %v6083
        %vm6161 = vweird.f32 %v6154
        %vm6162 = vmor %vm6160, %vm6161
        %v6163 = vsel %vm6162, %v6154, %v6159
        %v6164 = vmul.f32 %v6036, %v6093
        %v6165 = vmul.f32 %v6037, %v6103
        %v6166 = vmul.f32 %v6038, %v6113
        %v6167 = vmul.f32 %v6039, %v6123
        %v6168 = vmul.f32 %v6040, %v6133
        %v6169 = vmul.f32 %v6041, %v6143
        %v6170 = vmul.f32 %v6042, %v6153
        %v6171 = vmul.f32 %v6043, %v6163
        %v6173 = vperm.slane %v6010, 0
        %v6175 = vmul.f32 %v6164, %v6173
        %v6176 = vmul.f32 %v6165, %v6173
        %v6177 = vmul.f32 %v6166, %v6173
        %v6178 = vmul.f32 %v6167, %v6173
        %v6179 = vmul.f32 %v6168, %v6173
        %v6180 = vmul.f32 %v6169, %v6173
        %v6181 = vmul.f32 %v6170, %v6173
        %v6182 = vmul.f32 %v6171, %v6173
        %v6184 = vperm.slane %v6011, 0
        %v6186 = vadd.f32 %v6175, %v6184
        %v6187 = vadd.f32 %v6176, %v6184
        %v6188 = vadd.f32 %v6177, %v6184
        %v6189 = vadd.f32 %v6178, %v6184
        %v6190 = vadd.f32 %v6179, %v6184
        %v6191 = vadd.f32 %v6180, %v6184
        %v6192 = vadd.f32 %v6181, %v6184
        %v6193 = vadd.f32 %v6182, %v6184
        %v6194 = vld [vmem:[#allocation11] sm:$0xff]
        %v6195 = vld [vmem:[#allocation11 + $0x8] sm:$0xff]
        %v6196 = vld [vmem:[#allocation11 + $0x10] sm:$0xff]
        %v6197 = vld [vmem:[#allocation11 + $0x18] sm:$0xff]
        %v6198 = vld [vmem:[#allocation11 + $0x20] sm:$0xff]
        %v6199 = vld [vmem:[#allocation11 + $0x28] sm:$0xff]
        %v6200 = vld [vmem:[#allocation11 + $0x30] sm:$0xff]
        %v6201 = vld [vmem:[#allocation11 + $0x38] sm:$0xff]
        %v6202 = vld [vmem:[#allocation11 + $0x40] sm:$0xff]
        %v6203 = vld [vmem:[#allocation11 + $0x48] sm:$0xff]
        %v6204 = vld [vmem:[#allocation11 + $0x50] sm:$0xff]
        %v6205 = vld [vmem:[#allocation11 + $0x58] sm:$0xff]
        %v6206 = vld [vmem:[#allocation11 + $0x60] sm:$0xff]
        %v6207 = vld [vmem:[#allocation11 + $0x68] sm:$0xff]
        %v6208 = vld [vmem:[#allocation11 + $0x70] sm:$0xff]
        %v6209 = vld [vmem:[#allocation11 + $0x78] sm:$0xff]
        %v6210 = vld [vmem:[#allocation11 + $0x80] sm:$0xff]
        %v6211 = vld [vmem:[#allocation11 + $0x88] sm:$0xff]
        %v6212 = vld [vmem:[#allocation11 + $0x90] sm:$0xff]
        %v6213 = vld [vmem:[#allocation11 + $0x98] sm:$0xff]
        %v6214 = vld [vmem:[#allocation11 + $0xa0] sm:$0xff]
        %v6215 = vld [vmem:[#allocation11 + $0xa8] sm:$0xff]
        %v6216 = vld [vmem:[#allocation11 + $0xb0] sm:$0xff]
        %v6217 = vld [vmem:[#allocation11 + $0xb8] sm:$0xff]
        %v6218 = vld [vmem:[#allocation11 + $0xc0] sm:$0xff]
        %v6219 = vld [vmem:[#allocation11 + $0xc8] sm:$0xff]
        %v6220 = vld [vmem:[#allocation11 + $0xd0] sm:$0xff]
        %v6221 = vld [vmem:[#allocation11 + $0xd8] sm:$0xff]
        %v6222 = vld [vmem:[#allocation11 + $0xe0] sm:$0xff]
        %v6223 = vld [vmem:[#allocation11 + $0xe8] sm:$0xff]
        %v6224 = vld [vmem:[#allocation11 + $0xf0] sm:$0xff]
        %v6225 = vld [vmem:[#allocation11 + $0xf8] sm:$0xff]
        %v6226 = vld [vmem:[#allocation11 + $0x100] sm:$0xff]
        %v6227 = vld [vmem:[#allocation11 + $0x108] sm:$0xff]
        %v6228 = vld [vmem:[#allocation11 + $0x110] sm:$0xff]
        %v6229 = vld [vmem:[#allocation11 + $0x118] sm:$0xff]
        %v6230 = vld [vmem:[#allocation11 + $0x120] sm:$0xff]
        %v6231 = vld [vmem:[#allocation11 + $0x128] sm:$0xff]
        %v6232 = vld [vmem:[#allocation11 + $0x130] sm:$0xff]
        %v6233 = vld [vmem:[#allocation11 + $0x138] sm:$0xff]
        %v6234 = vld [vmem:[#allocation11 + $0x140] sm:$0xff]
        %v6235 = vld [vmem:[#allocation11 + $0x148] sm:$0xff]
        %v6236 = vld [vmem:[#allocation11 + $0x150] sm:$0xff]
        %v6237 = vld [vmem:[#allocation11 + $0x158] sm:$0xff]
        %v6238 = vld [vmem:[#allocation11 + $0x160] sm:$0xff]
        %v6239 = vld [vmem:[#allocation11 + $0x168] sm:$0xff]
        %v6240 = vld [vmem:[#allocation11 + $0x170] sm:$0xff]
        %v6241 = vld [vmem:[#allocation11 + $0x178] sm:$0xff]
        %v6242 = vld [vmem:[#allocation11 + $0x180] sm:$0xff]
        %v6243 = vld [vmem:[#allocation11 + $0x188] sm:$0xff]
        %v6244 = vld [vmem:[#allocation11 + $0x190] sm:$0xff]
        %v6245 = vld [vmem:[#allocation11 + $0x198] sm:$0xff]
        %v6246 = vld [vmem:[#allocation11 + $0x1a0] sm:$0xff]
        %v6247 = vld [vmem:[#allocation11 + $0x1a8] sm:$0xff]
        %v6248 = vld [vmem:[#allocation11 + $0x1b0] sm:$0xff]
        %v6249 = vld [vmem:[#allocation11 + $0x1b8] sm:$0xff]
        %v6250 = vld [vmem:[#allocation11 + $0x1c0] sm:$0xff]
        %v6251 = vld [vmem:[#allocation11 + $0x1c8] sm:$0xff]
        %v6252 = vld [vmem:[#allocation11 + $0x1d0] sm:$0xff]
        %v6253 = vld [vmem:[#allocation11 + $0x1d8] sm:$0xff]
        %v6254 = vld [vmem:[#allocation11 + $0x1e0] sm:$0xff]
        %v6255 = vld [vmem:[#allocation11 + $0x1e8] sm:$0xff]
        %v6256 = vld [vmem:[#allocation11 + $0x1f0] sm:$0xff]
        %v6257 = vld [vmem:[#allocation11 + $0x1f8] sm:$0xff]
        %v6258 = vld [vmem:[%s9] sm:$0xf]
        %v6260 = vperm.slane %v6258, 0
        %v6261 = vperm.slane %v6258, 1
        %v6262 = vperm.slane %v6258, 2
        %v6263 = vperm.slane %v6258, 3
        %6268 = vmatpush.msra.mxu0 %v6254
        %6269 = vmatpush.msra.mxu0 %v6250
        %6270 = vmatpush.msra.mxu0 %v6246
        %6271 = vmatpush.msra.mxu0 %v6242
        %6272 = vmatpush.msra.mxu0 %v6238
        %6273 = vmatpush.msra.mxu0 %v6234
        %6274 = vmatpush.msra.mxu0 %v6230
        %6275 = vmatpush.msra.mxu0 %v6226
        %6276 = vmatpush.msra.mxu0 %v6222
        %6277 = vmatpush.msra.mxu0 %v6218
        %6278 = vmatpush.msra.mxu0 %v6214
        %6279 = vmatpush.msra.mxu0 %v6210
        %6280 = vmatpush.msra.mxu0 %v6206
        %6281 = vmatpush.msra.mxu0 %v6202
        %6282 = vmatpush.msra.mxu0 %v6198
        %6283 = vmatpush.msra.mxu0 %v6194
        %6284 = vmatmul.f32.gmra.mxu0 %v6186
        %v6285 = vpop.f32.mrf.mxu0
        %v6286 = vadd.f32 %v6260, %v6285
        %6287 = vmatmul.f32.gmra.mxu0 %v6187
        %v6288 = vpop.f32.mrf.mxu0
        %v6289 = vadd.f32 %v6260, %v6288
        %6290 = vmatmul.f32.gmra.mxu0 %v6188
        %v6291 = vpop.f32.mrf.mxu0
        %v6292 = vadd.f32 %v6260, %v6291
        %6293 = vmatmul.f32.gmra.mxu0 %v6189
        %v6294 = vpop.f32.mrf.mxu0
        %v6295 = vadd.f32 %v6260, %v6294
        %6296 = vmatmul.f32.gmra.mxu0 %v6190
        %v6297 = vpop.f32.mrf.mxu0
        %v6298 = vadd.f32 %v6260, %v6297
        %6299 = vmatmul.f32.gmra.mxu0 %v6191
        %v6300 = vpop.f32.mrf.mxu0
        %v6301 = vadd.f32 %v6260, %v6300
        %6302 = vmatmul.f32.gmra.mxu0 %v6192
        %v6303 = vpop.f32.mrf.mxu0
        %v6304 = vadd.f32 %v6260, %v6303
        %6305 = vmatmul.f32.gmra.mxu0 %v6193
        %v6306 = vpop.f32.mrf.mxu0
        %v6307 = vadd.f32 %v6260, %v6306
        %6308 = vdwg.mxu0
        %6309 = vmatpush.msra.mxu0 %v6255
        %6310 = vmatpush.msra.mxu0 %v6251
        %6311 = vmatpush.msra.mxu0 %v6247
        %6312 = vmatpush.msra.mxu0 %v6243
        %6313 = vmatpush.msra.mxu0 %v6239
        %6314 = vmatpush.msra.mxu0 %v6235
        %6315 = vmatpush.msra.mxu0 %v6231
        %6316 = vmatpush.msra.mxu0 %v6227
        %6317 = vmatpush.msra.mxu0 %v6223
        %6318 = vmatpush.msra.mxu0 %v6219
        %6319 = vmatpush.msra.mxu0 %v6215
        %6320 = vmatpush.msra.mxu0 %v6211
        %6321 = vmatpush.msra.mxu0 %v6207
        %6322 = vmatpush.msra.mxu0 %v6203
        %6323 = vmatpush.msra.mxu0 %v6199
        %6324 = vmatpush.msra.mxu0 %v6195
        %6325 = vmatmul.f32.gmra.mxu0 %v6186
        %v6326 = vpop.f32.mrf.mxu0
        %v6327 = vadd.f32 %v6261, %v6326
        %6328 = vmatmul.f32.gmra.mxu0 %v6187
        %v6329 = vpop.f32.mrf.mxu0
        %v6330 = vadd.f32 %v6261, %v6329
        %6331 = vmatmul.f32.gmra.mxu0 %v6188
        %v6332 = vpop.f32.mrf.mxu0
        %v6333 = vadd.f32 %v6261, %v6332
        %6334 = vmatmul.f32.gmra.mxu0 %v6189
        %v6335 = vpop.f32.mrf.mxu0
        %v6336 = vadd.f32 %v6261, %v6335
        %6337 = vmatmul.f32.gmra.mxu0 %v6190
        %v6338 = vpop.f32.mrf.mxu0
        %v6339 = vadd.f32 %v6261, %v6338
        %6340 = vmatmul.f32.gmra.mxu0 %v6191
        %v6341 = vpop.f32.mrf.mxu0
        %v6342 = vadd.f32 %v6261, %v6341
        %6343 = vmatmul.f32.gmra.mxu0 %v6192
        %v6344 = vpop.f32.mrf.mxu0
        %v6345 = vadd.f32 %v6261, %v6344
        %6346 = vmatmul.f32.gmra.mxu0 %v6193
        %v6347 = vpop.f32.mrf.mxu0
        %v6348 = vadd.f32 %v6261, %v6347
        %6349 = vdwg.mxu0
        %6350 = vmatpush.msra.mxu0 %v6256
        %6351 = vmatpush.msra.mxu0 %v6252
        %6352 = vmatpush.msra.mxu0 %v6248
        %6353 = vmatpush.msra.mxu0 %v6244
        %6354 = vmatpush.msra.mxu0 %v6240
        %6355 = vmatpush.msra.mxu0 %v6236
        %6356 = vmatpush.msra.mxu0 %v6232
        %6357 = vmatpush.msra.mxu0 %v6228
        %6358 = vmatpush.msra.mxu0 %v6224
        %6359 = vmatpush.msra.mxu0 %v6220
        %6360 = vmatpush.msra.mxu0 %v6216
        %6361 = vmatpush.msra.mxu0 %v6212
        %6362 = vmatpush.msra.mxu0 %v6208
        %6363 = vmatpush.msra.mxu0 %v6204
        %6364 = vmatpush.msra.mxu0 %v6200
        %6365 = vmatpush.msra.mxu0 %v6196
        %6366 = vmatmul.f32.gmra.mxu0 %v6186
        %v6367 = vpop.f32.mrf.mxu0
        %v6368 = vadd.f32 %v6262, %v6367
        %6369 = vmatmul.f32.gmra.mxu0 %v6187
        %v6370 = vpop.f32.mrf.mxu0
        %v6371 = vadd.f32 %v6262, %v6370
        %6372 = vmatmul.f32.gmra.mxu0 %v6188
        %v6373 = vpop.f32.mrf.mxu0
        %v6374 = vadd.f32 %v6262, %v6373
        %6375 = vmatmul.f32.gmra.mxu0 %v6189
        %v6376 = vpop.f32.mrf.mxu0
        %v6377 = vadd.f32 %v6262, %v6376
        %6378 = vmatmul.f32.gmra.mxu0 %v6190
        %v6379 = vpop.f32.mrf.mxu0
        %v6380 = vadd.f32 %v6262, %v6379
        %6381 = vmatmul.f32.gmra.mxu0 %v6191
        %v6382 = vpop.f32.mrf.mxu0
        %v6383 = vadd.f32 %v6262, %v6382
        %6384 = vmatmul.f32.gmra.mxu0 %v6192
        %v6385 = vpop.f32.mrf.mxu0
        %v6386 = vadd.f32 %v6262, %v6385
        %6387 = vmatmul.f32.gmra.mxu0 %v6193
        %v6388 = vpop.f32.mrf.mxu0
        %v6389 = vadd.f32 %v6262, %v6388
        %6390 = vdwg.mxu0
        %6391 = vmatpush.msra.mxu0 %v6257
        %6392 = vmatpush.msra.mxu0 %v6253
        %6393 = vmatpush.msra.mxu0 %v6249
        %6394 = vmatpush.msra.mxu0 %v6245
        %6395 = vmatpush.msra.mxu0 %v6241
        %6396 = vmatpush.msra.mxu0 %v6237
        %6397 = vmatpush.msra.mxu0 %v6233
        %6398 = vmatpush.msra.mxu0 %v6229
        %6399 = vmatpush.msra.mxu0 %v6225
        %6400 = vmatpush.msra.mxu0 %v6221
        %6401 = vmatpush.msra.mxu0 %v6217
        %6402 = vmatpush.msra.mxu0 %v6213
        %6403 = vmatpush.msra.mxu0 %v6209
        %6404 = vmatpush.msra.mxu0 %v6205
        %6405 = vmatpush.msra.mxu0 %v6201
        %6406 = vmatpush.msra.mxu0 %v6197
        %6407 = vmatmul.f32.gmra.mxu0 %v6186
        %v6408 = vpop.f32.mrf.mxu0
        %v6409 = vadd.f32 %v6263, %v6408
        %6410 = vmatmul.f32.gmra.mxu0 %v6187
        %v6411 = vpop.f32.mrf.mxu0
        %v6412 = vadd.f32 %v6263, %v6411
        %6413 = vmatmul.f32.gmra.mxu0 %v6188
        %v6414 = vpop.f32.mrf.mxu0
        %v6415 = vadd.f32 %v6263, %v6414
        %6416 = vmatmul.f32.gmra.mxu0 %v6189
        %v6417 = vpop.f32.mrf.mxu0
        %v6418 = vadd.f32 %v6263, %v6417
        %6419 = vmatmul.f32.gmra.mxu0 %v6190
        %v6420 = vpop.f32.mrf.mxu0
        %v6421 = vadd.f32 %v6263, %v6420
        %6422 = vmatmul.f32.gmra.mxu0 %v6191
        %v6423 = vpop.f32.mrf.mxu0
        %v6424 = vadd.f32 %v6263, %v6423
        %6425 = vmatmul.f32.gmra.mxu0 %v6192
        %v6426 = vpop.f32.mrf.mxu0
        %v6427 = vadd.f32 %v6263, %v6426
        %6428 = vmatmul.f32.gmra.mxu0 %v6193
        %v6429 = vpop.f32.mrf.mxu0
        %v6430 = vadd.f32 %v6263, %v6429
        %6431 = vdwg.mxu0
        %v6432 = vmax.f32 %v6286, 0.0
        %v6433 = vmax.f32 %v6327, 0.0
        %v6434 = vmax.f32 %v6368, 0.0
        %v6435 = vmax.f32 %v6409, 0.0
        %v6436 = vmax.f32 %v6289, 0.0
        %v6437 = vmax.f32 %v6330, 0.0
        %v6438 = vmax.f32 %v6371, 0.0
        %v6439 = vmax.f32 %v6412, 0.0
        %v6440 = vmax.f32 %v6292, 0.0
        %v6441 = vmax.f32 %v6333, 0.0
        %v6442 = vmax.f32 %v6374, 0.0
        %v6443 = vmax.f32 %v6415, 0.0
        %v6444 = vmax.f32 %v6295, 0.0
        %v6445 = vmax.f32 %v6336, 0.0
        %v6446 = vmax.f32 %v6377, 0.0
        %v6447 = vmax.f32 %v6418, 0.0
        %v6448 = vmax.f32 %v6298, 0.0
        %v6449 = vmax.f32 %v6339, 0.0
        %v6450 = vmax.f32 %v6380, 0.0
        %v6451 = vmax.f32 %v6421, 0.0
        %v6452 = vmax.f32 %v6301, 0.0
        %v6453 = vmax.f32 %v6342, 0.0
        %v6454 = vmax.f32 %v6383, 0.0
        %v6455 = vmax.f32 %v6424, 0.0
        %v6456 = vmax.f32 %v6304, 0.0
        %v6457 = vmax.f32 %v6345, 0.0
        %v6458 = vmax.f32 %v6386, 0.0
        %v6459 = vmax.f32 %v6427, 0.0
        %v6460 = vmax.f32 %v6307, 0.0
        %v6461 = vmax.f32 %v6348, 0.0
        %v6462 = vmax.f32 %v6389, 0.0
        %v6463 = vmax.f32 %v6430, 0.0
        %v6464 = vld [vmem:[#allocation13] sm:$0xff]
        %v6465 = vld [vmem:[#allocation13 + $0x8] sm:$0xff]
        %v6466 = vld [vmem:[#allocation13 + $0x10] sm:$0xff]
        %v6467 = vld [vmem:[#allocation13 + $0x18] sm:$0xff]
        %v6468 = vld [vmem:[#allocation13 + $0x20] sm:$0xff]
        %v6469 = vld [vmem:[#allocation13 + $0x28] sm:$0xff]
        %v6470 = vld [vmem:[#allocation13 + $0x30] sm:$0xff]
        %v6471 = vld [vmem:[#allocation13 + $0x38] sm:$0xff]
        %v6472 = vld [vmem:[#allocation13 + $0x40] sm:$0xff]
        %v6473 = vld [vmem:[#allocation13 + $0x48] sm:$0xff]
        %v6474 = vld [vmem:[#allocation13 + $0x50] sm:$0xff]
        %v6475 = vld [vmem:[#allocation13 + $0x58] sm:$0xff]
        %v6476 = vld [vmem:[#allocation13 + $0x60] sm:$0xff]
        %v6477 = vld [vmem:[#allocation13 + $0x68] sm:$0xff]
        %v6478 = vld [vmem:[#allocation13 + $0x70] sm:$0xff]
        %v6479 = vld [vmem:[#allocation13 + $0x78] sm:$0xff]
        %v6480 = vld [vmem:[#allocation13 + $0x80] sm:$0xff]
        %v6481 = vld [vmem:[#allocation13 + $0x88] sm:$0xff]
        %v6482 = vld [vmem:[#allocation13 + $0x90] sm:$0xff]
        %v6483 = vld [vmem:[#allocation13 + $0x98] sm:$0xff]
        %v6484 = vld [vmem:[#allocation13 + $0xa0] sm:$0xff]
        %v6485 = vld [vmem:[#allocation13 + $0xa8] sm:$0xff]
        %v6486 = vld [vmem:[#allocation13 + $0xb0] sm:$0xff]
        %v6487 = vld [vmem:[#allocation13 + $0xb8] sm:$0xff]
        %v6488 = vld [vmem:[#allocation13 + $0xc0] sm:$0xff]
        %v6489 = vld [vmem:[#allocation13 + $0xc8] sm:$0xff]
        %v6490 = vld [vmem:[#allocation13 + $0xd0] sm:$0xff]
        %v6491 = vld [vmem:[#allocation13 + $0xd8] sm:$0xff]
        %v6492 = vld [vmem:[#allocation13 + $0xe0] sm:$0xff]
        %v6493 = vld [vmem:[#allocation13 + $0xe8] sm:$0xff]
        %v6494 = vld [vmem:[#allocation13 + $0xf0] sm:$0xff]
        %v6495 = vld [vmem:[#allocation13 + $0xf8] sm:$0xff]
        %v6496 = vld [vmem:[#allocation13 + $0x100] sm:$0xff]
        %v6497 = vld [vmem:[#allocation13 + $0x108] sm:$0xff]
        %v6498 = vld [vmem:[#allocation13 + $0x110] sm:$0xff]
        %v6499 = vld [vmem:[#allocation13 + $0x118] sm:$0xff]
        %v6500 = vld [vmem:[#allocation13 + $0x120] sm:$0xff]
        %v6501 = vld [vmem:[#allocation13 + $0x128] sm:$0xff]
        %v6502 = vld [vmem:[#allocation13 + $0x130] sm:$0xff]
        %v6503 = vld [vmem:[#allocation13 + $0x138] sm:$0xff]
        %v6504 = vld [vmem:[#allocation13 + $0x140] sm:$0xff]
        %v6505 = vld [vmem:[#allocation13 + $0x148] sm:$0xff]
        %v6506 = vld [vmem:[#allocation13 + $0x150] sm:$0xff]
        %v6507 = vld [vmem:[#allocation13 + $0x158] sm:$0xff]
        %v6508 = vld [vmem:[#allocation13 + $0x160] sm:$0xff]
        %v6509 = vld [vmem:[#allocation13 + $0x168] sm:$0xff]
        %v6510 = vld [vmem:[#allocation13 + $0x170] sm:$0xff]
        %v6511 = vld [vmem:[#allocation13 + $0x178] sm:$0xff]
        %v6512 = vld [vmem:[#allocation13 + $0x180] sm:$0xff]
        %v6513 = vld [vmem:[#allocation13 + $0x188] sm:$0xff]
        %v6514 = vld [vmem:[#allocation13 + $0x190] sm:$0xff]
        %v6515 = vld [vmem:[#allocation13 + $0x198] sm:$0xff]
        %v6516 = vld [vmem:[#allocation13 + $0x1a0] sm:$0xff]
        %v6517 = vld [vmem:[#allocation13 + $0x1a8] sm:$0xff]
        %v6518 = vld [vmem:[#allocation13 + $0x1b0] sm:$0xff]
        %v6519 = vld [vmem:[#allocation13 + $0x1b8] sm:$0xff]
        %v6520 = vld [vmem:[#allocation13 + $0x1c0] sm:$0xff]
        %v6521 = vld [vmem:[#allocation13 + $0x1c8] sm:$0xff]
        %v6522 = vld [vmem:[#allocation13 + $0x1d0] sm:$0xff]
        %v6523 = vld [vmem:[#allocation13 + $0x1d8] sm:$0xff]
        %v6524 = vld [vmem:[#allocation13 + $0x1e0] sm:$0xff]
        %v6525 = vld [vmem:[#allocation13 + $0x1e8] sm:$0xff]
        %v6526 = vld [vmem:[#allocation13 + $0x1f0] sm:$0xff]
        %v6527 = vld [vmem:[#allocation13 + $0x1f8] sm:$0xff]
        %v6528 = vld [vmem:[%s11] sm:$0x1]
        %v6530 = vperm.slane %v6528, 0
        %6532 = vmatpush.msra.mxu0 %v6479
        %6533 = vmatpush.msra.mxu0 %v6478
        %6534 = vmatpush.msra.mxu0 %v6477
        %6535 = vmatpush.msra.mxu0 %v6476
        %6536 = vmatpush.msra.mxu0 %v6475
        %6537 = vmatpush.msra.mxu0 %v6474
        %6538 = vmatpush.msra.mxu0 %v6473
        %6539 = vmatpush.msra.mxu0 %v6472
        %6540 = vmatpush.msra.mxu0 %v6471
        %6541 = vmatpush.msra.mxu0 %v6470
        %6542 = vmatpush.msra.mxu0 %v6469
        %6543 = vmatpush.msra.mxu0 %v6468
        %6544 = vmatpush.msra.mxu0 %v6467
        %6545 = vmatpush.msra.mxu0 %v6466
        %6546 = vmatpush.msra.mxu0 %v6465
        %6547 = vmatpush.msra.mxu0 %v6464
        %6548 = vmatmul.f32.gmra.mxu0 %v6432
        %v6549 = vpop.f32.mrf.mxu0
        %v6550 = vadd.f32 %v6530, %v6549
        %6551 = vmatmul.f32.gmra.mxu0 %v6436
        %v6552 = vpop.f32.mrf.mxu0
        %v6553 = vadd.f32 %v6530, %v6552
        %6554 = vmatmul.f32.gmra.mxu0 %v6440
        %v6555 = vpop.f32.mrf.mxu0
        %v6556 = vadd.f32 %v6530, %v6555
        %6557 = vmatmul.f32.gmra.mxu0 %v6444
        %v6558 = vpop.f32.mrf.mxu0
        %v6559 = vadd.f32 %v6530, %v6558
        %6560 = vmatmul.f32.gmra.mxu0 %v6448
        %v6561 = vpop.f32.mrf.mxu0
        %v6562 = vadd.f32 %v6530, %v6561
        %6563 = vmatmul.f32.gmra.mxu0 %v6452
        %v6564 = vpop.f32.mrf.mxu0
        %v6565 = vadd.f32 %v6530, %v6564
        %6566 = vmatmul.f32.gmra.mxu0 %v6456
        %v6567 = vpop.f32.mrf.mxu0
        %v6568 = vadd.f32 %v6530, %v6567
        %6569 = vmatmul.f32.gmra.mxu0 %v6460
        %v6570 = vpop.f32.mrf.mxu0
        %v6571 = vadd.f32 %v6530, %v6570
        %6572 = vdwg.mxu0
        %6573 = vmatpush.msra.mxu0 %v6495
        %6574 = vmatpush.msra.mxu0 %v6494
        %6575 = vmatpush.msra.mxu0 %v6493
        %6576 = vmatpush.msra.mxu0 %v6492
        %6577 = vmatpush.msra.mxu0 %v6491
        %6578 = vmatpush.msra.mxu0 %v6490
        %6579 = vmatpush.msra.mxu0 %v6489
        %6580 = vmatpush.msra.mxu0 %v6488
        %6581 = vmatpush.msra.mxu0 %v6487
        %6582 = vmatpush.msra.mxu0 %v6486
        %6583 = vmatpush.msra.mxu0 %v6485
        %6584 = vmatpush.msra.mxu0 %v6484
        %6585 = vmatpush.msra.mxu0 %v6483
        %6586 = vmatpush.msra.mxu0 %v6482
        %6587 = vmatpush.msra.mxu0 %v6481
        %6588 = vmatpush.msra.mxu0 %v6480
        %6589 = vmatmul.f32.gmra.mxu0 %v6433
        %v6590 = vpop.f32.mrf.mxu0
        %v6591 = vadd.f32 %v6550, %v6590
        %6592 = vmatmul.f32.gmra.mxu0 %v6437
        %v6593 = vpop.f32.mrf.mxu0
        %v6594 = vadd.f32 %v6553, %v6593
        %6595 = vmatmul.f32.gmra.mxu0 %v6441
        %v6596 = vpop.f32.mrf.mxu0
        %v6597 = vadd.f32 %v6556, %v6596
        %6598 = vmatmul.f32.gmra.mxu0 %v6445
        %v6599 = vpop.f32.mrf.mxu0
        %v6600 = vadd.f32 %v6559, %v6599
        %6601 = vmatmul.f32.gmra.mxu0 %v6449
        %v6602 = vpop.f32.mrf.mxu0
        %v6603 = vadd.f32 %v6562, %v6602
        %6604 = vmatmul.f32.gmra.mxu0 %v6453
        %v6605 = vpop.f32.mrf.mxu0
        %v6606 = vadd.f32 %v6565, %v6605
        %6607 = vmatmul.f32.gmra.mxu0 %v6457
        %v6608 = vpop.f32.mrf.mxu0
        %v6609 = vadd.f32 %v6568, %v6608
        %6610 = vmatmul.f32.gmra.mxu0 %v6461
        %v6611 = vpop.f32.mrf.mxu0
        %v6612 = vadd.f32 %v6571, %v6611
        %6613 = vdwg.mxu0
        %6614 = vmatpush.msra.mxu0 %v6511
        %6615 = vmatpush.msra.mxu0 %v6510
        %6616 = vmatpush.msra.mxu0 %v6509
        %6617 = vmatpush.msra.mxu0 %v6508
        %6618 = vmatpush.msra.mxu0 %v6507
        %6619 = vmatpush.msra.mxu0 %v6506
        %6620 = vmatpush.msra.mxu0 %v6505
        %6621 = vmatpush.msra.mxu0 %v6504
        %6622 = vmatpush.msra.mxu0 %v6503
        %6623 = vmatpush.msra.mxu0 %v6502
        %6624 = vmatpush.msra.mxu0 %v6501
        %6625 = vmatpush.msra.mxu0 %v6500
        %6626 = vmatpush.msra.mxu0 %v6499
        %6627 = vmatpush.msra.mxu0 %v6498
        %6628 = vmatpush.msra.mxu0 %v6497
        %6629 = vmatpush.msra.mxu0 %v6496
        %6630 = vmatmul.f32.gmra.mxu0 %v6434
        %v6631 = vpop.f32.mrf.mxu0
        %v6632 = vadd.f32 %v6591, %v6631
        %6633 = vmatmul.f32.gmra.mxu0 %v6438
        %v6634 = vpop.f32.mrf.mxu0
        %v6635 = vadd.f32 %v6594, %v6634
        %6636 = vmatmul.f32.gmra.mxu0 %v6442
        %v6637 = vpop.f32.mrf.mxu0
        %v6638 = vadd.f32 %v6597, %v6637
        %6639 = vmatmul.f32.gmra.mxu0 %v6446
        %v6640 = vpop.f32.mrf.mxu0
        %v6641 = vadd.f32 %v6600, %v6640
        %6642 = vmatmul.f32.gmra.mxu0 %v6450
        %v6643 = vpop.f32.mrf.mxu0
        %v6644 = vadd.f32 %v6603, %v6643
        %6645 = vmatmul.f32.gmra.mxu0 %v6454
        %v6646 = vpop.f32.mrf.mxu0
        %v6647 = vadd.f32 %v6606, %v6646
        %6648 = vmatmul.f32.gmra.mxu0 %v6458
        %v6649 = vpop.f32.mrf.mxu0
        %v6650 = vadd.f32 %v6609, %v6649
        %6651 = vmatmul.f32.gmra.mxu0 %v6462
        %v6652 = vpop.f32.mrf.mxu0
        %v6653 = vadd.f32 %v6612, %v6652
        %6654 = vdwg.mxu0
        %6655 = vmatpush.msra.mxu0 %v6527
        %6656 = vmatpush.msra.mxu0 %v6526
        %6657 = vmatpush.msra.mxu0 %v6525
        %6658 = vmatpush.msra.mxu0 %v6524
        %6659 = vmatpush.msra.mxu0 %v6523
        %6660 = vmatpush.msra.mxu0 %v6522
        %6661 = vmatpush.msra.mxu0 %v6521
        %6662 = vmatpush.msra.mxu0 %v6520
        %6663 = vmatpush.msra.mxu0 %v6519
        %6664 = vmatpush.msra.mxu0 %v6518
        %6665 = vmatpush.msra.mxu0 %v6517
        %6666 = vmatpush.msra.mxu0 %v6516
        %6667 = vmatpush.msra.mxu0 %v6515
        %6668 = vmatpush.msra.mxu0 %v6514
        %6669 = vmatpush.msra.mxu0 %v6513
        %6670 = vmatpush.msra.mxu0 %v6512
        %6671 = vmatmul.f32.gmra.mxu0 %v6435
        %v6672 = vpop.f32.mrf.mxu0
        %v6673 = vadd.f32 %v6632, %v6672
        %6674 = vmatmul.f32.gmra.mxu0 %v6439
        %v6675 = vpop.f32.mrf.mxu0
        %v6676 = vadd.f32 %v6635, %v6675
        %6677 = vmatmul.f32.gmra.mxu0 %v6443
        %v6678 = vpop.f32.mrf.mxu0
        %v6679 = vadd.f32 %v6638, %v6678
        %6680 = vmatmul.f32.gmra.mxu0 %v6447
        %v6681 = vpop.f32.mrf.mxu0
        %v6682 = vadd.f32 %v6641, %v6681
        %6683 = vmatmul.f32.gmra.mxu0 %v6451
        %v6684 = vpop.f32.mrf.mxu0
        %v6685 = vadd.f32 %v6644, %v6684
        %6686 = vmatmul.f32.gmra.mxu0 %v6455
        %v6687 = vpop.f32.mrf.mxu0
        %v6688 = vadd.f32 %v6647, %v6687
        %6689 = vmatmul.f32.gmra.mxu0 %v6459
        %v6690 = vpop.f32.mrf.mxu0
        %v6691 = vadd.f32 %v6650, %v6690
        %6692 = vmatmul.f32.gmra.mxu0 %v6463
        %v6693 = vpop.f32.mrf.mxu0
        %v6694 = vadd.f32 %v6653, %v6693
        %6695 = vdwg.mxu0
        %v6696 = vadd.f32 %v6002, %v6673
        %v6697 = vadd.f32 %v6003, %v6676
        %v6698 = vadd.f32 %v6004, %v6679
        %v6699 = vadd.f32 %v6005, %v6682
        %v6700 = vadd.f32 %v6006, %v6685
        %v6701 = vadd.f32 %v6007, %v6688
        %v6702 = vadd.f32 %v6008, %v6691
        %v6703 = vadd.f32 %v6009, %v6694
        %6704 = vst [vmem:[%s529] sm:$0xff] %v6696
        %6705 = vst [vmem:[%s529 + $0x8] sm:$0xff] %v6697
        %6706 = vst [vmem:[%s529 + $0x10] sm:$0xff] %v6698
        %6707 = vst [vmem:[%s529 + $0x18] sm:$0xff] %v6699
        %6708 = vst [vmem:[%s529 + $0x20] sm:$0xff] %v6700
        %6709 = vst [vmem:[%s529 + $0x28] sm:$0xff] %v6701
        %6710 = vst [vmem:[%s529 + $0x30] sm:$0xff] %v6702
        %6711 = vst [vmem:[%s529 + $0x38] sm:$0xff] %v6703
        %s6712 = sand.u32 %s297, 1
        %s6713 = scalar_lea.sflag [#allocation4], %s6712
        %s6714 = sand.u32 %s297, 1
        %s6715 = smul.addr %s6714, 64
        %s6716 = scalar_lea.vmem [#allocation14], %s6715
        // Predicated region
        $region97: #{tpu_custom_call.1} parent=67 // pred_check
          %p6717 = pneg %p307
        $region98: #{tpu_custom_call.1} parent=67 // pred_check_branch
          %6719 = sbr.rel (%p6717) target = $region100
        $region99: #{tpu_custom_call.1} parent=67 // pred_region
          %s6720 = smul.u32 2, %s32
          %6722 = vsyncadd %s6713, 0
          %s6723 = smul.addr %s6720, 4
          %s6724 = smul.addr %s6723, 8
          %s6725 = scalar_lea.hbm %s12, %s6724
          %s6726 = sshll.u32 %s6716, 4
          %s6727 = int_to_ptr.vmem [resolvable:$true] %s6726
          %s6728 = sshll.u32 %s6725, 4
          %s6729 = int_to_ptr.hbm [resolvable:$true] %s6728
          %6734 = dma.vmem_to_hbm [thread:$0]  %s6727, 1024, %s6729, %s6713, 128, 128, 8
        $region100: #{tpu_custom_call.1} parent=67 // pred_fallthru
          _
      $region68: #{tpu_custom_call.1} parent=5 // pred_fallthru
        _
      %p6735 = scmp.le.s32.totalorder 2, %s27
      // Predicated region
      $region101: #{tpu_custom_call.1} parent=5 // pred_check
        %p6736 = pneg %p6735
      $region102: #{tpu_custom_call.1} parent=5 // pred_check_branch
        %6738 = sbr.rel (%p6736) target = $region104
      $region103: #{tpu_custom_call.1} parent=5 // pred_region
        %s6739 = ssub.s32 %s27, 2
        // Predicated region
        $region105: #{tpu_custom_call.1} parent=103 // pred_check
          %p6740 = pneg %p313
        $region106: #{tpu_custom_call.1} parent=103 // pred_check_branch
          %6742 = sbr.rel (%p6740) target = $region108
        $region107: #{tpu_custom_call.1} parent=103 // pred_region
          %s6743 = sand.u32 %s298, 1
          %s6744 = scalar_lea.sflag [#allocation4], %s6743
          %s6745 = sand.u32 %s298, 1
          %s6746 = smul.addr %s6745, 64
          %s6747 = scalar_lea.vmem [#allocation14], %s6746
          %6749 = dma.done %s6744, 1024
        $region108: #{tpu_custom_call.1} parent=103 // pred_fallthru
          _
      $region104: #{tpu_custom_call.1} parent=5 // pred_fallthru
        _
    $region6: #{tpu_custom_call.1} parent=1 // loop_footer
      %s31 = sadd.s32 1, %s27
    $region7: #{tpu_custom_call.1} parent=1 // loop_footer_branch
      %26 = sbr.rel target = $region3
    $region8: #{tpu_custom_call.1} parent=1 // loop_exit
      _
    %6750 = vsyncpa [#allocation3], 1
    %s6751 = scalar_lea.sflag [#allocation3], 1
    %6752 = vsyncpa %s6751, 1
    %6753 = vsyncpa [#allocation6], 1
    %6754 = vsyncpa [#allocation9], 1
    %6755 = vsyncpa [#allocation12], 1
    %6756 = vsyncpa [#allocation4], 1
    %s6757 = scalar_lea.sflag [#allocation4], 1
    %6758 = vsyncpa %s6757, 1

</llo_original>
